<compile_context>
chip_gen: v7x
topology: tpu7x:2x2x1
jax: 0.10.0
libtpu: 0.0.40
codegen_flags: <defaults>
</compile_context>

<pallas_src>
import functools

import jax
import jax.numpy as jnp
from jax.experimental import pallas as pl
from jax.experimental.pallas import tpu as pltpu

X_DIM = 104      # input_size
XP = 128         # lane-padded input / x_rec width
Z_DIM = 10       # gaussian_size
Y_DIM = 10       # num_classes
HID = 512        # hidden width of the GMVAE MLPs
SLAB_W = 128     # packed output slab width (8 heads x 10 lanes, padded)
NOISE_W = 2 * XP  # packed noise width: gumbel lanes [0:10], eps lanes [128:138]
YYW = HID + 2 * Z_DIM   # fused [w3y | wym | wyv] output width = 532
GUMBEL_EPS = 1e-20
VAR_EPS = 1e-10
TB_MAX = 512     # max batch tile (MXU-bound kernel; amortizes per-step cost)


def _round_up(n, m):
    return ((n + m - 1) // m) * m


def _cdiv(a, b):
    return -(-a // b)


def _softplus(x):
    # numerically-stable softplus = max(x,0) + log1p(exp(-|x|))
    return jnp.maximum(x, 0.0) + jnp.log1p(jnp.exp(-jnp.abs(x)))


def _softmax(x, approx):
    m = jnp.max(x, axis=-1, keepdims=True)
    e = jnp.exp(x - m)
    s = jnp.sum(e, axis=-1, keepdims=True)
    if approx:
        # EUP reciprocal: fine for the stochastic gumbel-softmax sample.
        return e * pl.reciprocal(s, approx=True)
    # exact divide: prob_cat feeds log-prob / entropy terms downstream.
    return e / s


def gmvae_kernel(
    # data
    x_ref, noise_ref,
    # fused / padded weights (bf16) and biases (f32)
    wx12_ref, b1_ref,           # [128,1024] = [w1_pad | w3x_pad], b1 [1,512]
    w2_ref, b2_ref,             # [512,512], [1,512]
    wl_ref, bl_ref,             # [512,10],  [1,10]
    w3yy_ref, b3_ref, byy_ref,  # [10,532] = [w3y|wym|wyv], [1,512], [1,20]
    w4_ref, b4_ref,             # [512,512], [1,512]
    wmv_ref, bmv_ref,           # [512,20] = [wmu|wvar], [1,20]
    wg1_ref, bg1_ref,           # [10,512],  [1,512]
    wg2_ref, bg2_ref,           # [512,512], [1,512]
    wg3_ref, bg3_ref,           # [512,128] (padded), [1,128] (padded)
    # outputs
    slab_ref, xrec_ref,
):
    def mm(a, w_ref):
        # bf16 operands on the MXU, f32 accumulation.
        return jnp.dot(a.astype(jnp.bfloat16), w_ref[...],
                       preferred_element_type=jnp.float32)

    x = x_ref[...]                                   # bf16 [TB, 128], zero-padded lanes
    noise = noise_ref[...]                           # f32 [TB, 256]
    gumbel = noise[:, :Y_DIM]                        # lanes 0:10
    eps = noise[:, XP:XP + Z_DIM]                    # lanes 128:138 (tile-aligned)

    # ---------------- shared x matmul: [w1 | w3x] ----------------
    xh = mm(x, wx12_ref)                             # [TB, 1024] f32

    # ---------------- inference: q(y|x) ----------------
    h = jnp.maximum(xh[:, :HID] + b1_ref[...], 0.0)
    h = jnp.maximum(mm(h, w2_ref) + b2_ref[...], 0.0)
    logits = mm(h, wl_ref) + bl_ref[...]             # [TB, 10]
    prob = _softmax(logits, approx=False)
    # Gumbel-Softmax sample, temperature=1.0, hard=False (module defaults)
    y = _softmax(logits + gumbel, approx=True)

    # ---------------- fused y heads: [w3y | wym | wyv] ----------------
    yh = mm(y, w3yy_ref)                             # [TB, 532] f32

    # ---------------- inference: q(z|x,y) ----------------
    h = jnp.maximum(xh[:, HID:] + yh[:, :HID] + b3_ref[...], 0.0)
    h = jnp.maximum(mm(h, w4_ref) + b4_ref[...], 0.0)
    mv = mm(h, wmv_ref) + bmv_ref[...]               # [TB, 20]
    mu = mv[:, :Z_DIM]
    var = _softplus(mv[:, Z_DIM:])
    z = mu + eps * jnp.sqrt(var + VAR_EPS)

    # ---------------- generative: p(z|y) ----------------
    yy = yh[:, HID:HID + 2 * Z_DIM] + byy_ref[...]   # [TB, 20]
    y_mu = yy[:, :Z_DIM]
    y_var = _softplus(yy[:, Z_DIM:])

    # ---------------- generative: p(x|z) ----------------
    g = jnp.maximum(mm(z, wg1_ref) + bg1_ref[...], 0.0)
    g = jnp.maximum(mm(g, wg2_ref) + bg2_ref[...], 0.0)
    x_rec = jax.nn.sigmoid(mm(g, wg3_ref) + bg3_ref[...])   # [TB, 128] (padded)

    # ---------------- lane-dense packed outputs ----------------
    tb = x.shape[0]
    pad = jnp.zeros((tb, SLAB_W - 8 * Z_DIM), jnp.float32)
    slab_ref[...] = jnp.concatenate(
        [mu, var, z, logits, prob, y, y_mu, y_var, pad], axis=-1)
    xrec_ref[...] = x_rec


def init_params(key):
    """Deterministic PyTorch-Linear-style init (uniform +/- 1/sqrt(fan_in)).

    Weights are stored [in, out]; biases as [1, out] for TPU 2-D layout.
    """
    shapes = {
        "w1": (X_DIM, HID), "b1": (1, HID),
        "w2": (HID, HID), "b2": (1, HID),
        "wl": (HID, Y_DIM), "bl": (1, Y_DIM),
        "w3x": (X_DIM, HID), "w3y": (Y_DIM, HID), "b3": (1, HID),
        "w4": (HID, HID), "b4": (1, HID),
        "wmu": (HID, Z_DIM), "bmu": (1, Z_DIM),
        "wvar": (HID, Z_DIM), "bvar": (1, Z_DIM),
        "wym": (Y_DIM, Z_DIM), "bym": (1, Z_DIM),
        "wyv": (Y_DIM, Z_DIM), "byv": (1, Z_DIM),
        "wg1": (Z_DIM, HID), "bg1": (1, HID),
        "wg2": (HID, HID), "bg2": (1, HID),
        "wg3": (HID, X_DIM), "bg3": (1, X_DIM),
    }
    fan_in = {
        "w1": X_DIM, "b1": X_DIM, "w2": HID, "b2": HID, "wl": HID, "bl": HID,
        # q(z|x,y) first layer takes concat([x, y]) -> fan_in = X_DIM+Y_DIM
        "w3x": X_DIM + Y_DIM, "w3y": X_DIM + Y_DIM, "b3": X_DIM + Y_DIM,
        "w4": HID, "b4": HID,
        "wmu": HID, "bmu": HID, "wvar": HID, "bvar": HID,
        "wym": Y_DIM, "bym": Y_DIM, "wyv": Y_DIM, "byv": Y_DIM,
        "wg1": Z_DIM, "bg1": Z_DIM, "wg2": HID, "bg2": HID,
        "wg3": HID, "bg3": HID,
    }
    params = {}
    names = list(shapes.keys())
    keys = jax.random.split(key, len(names))
    for name, k in zip(names, keys):
        bound = 1.0 / float(jnp.sqrt(jnp.float32(fan_in[name])))
        params[name] = jax.random.uniform(
            k, shapes[name], dtype=jnp.float32, minval=-bound, maxval=bound)
    return params


# kernel-side packed parameter order (matches gmvae_kernel signature)
PACKED_ORDER = [
    "wx12", "b1", "w2", "b2", "wl", "bl",
    "w3yy", "b3", "byy",
    "w4", "b4", "wmv", "bmv",
    "wg1", "bg1", "wg2", "bg2", "wg3", "bg3",
]

OUT_NAMES = ["mean", "var", "gaussian", "logits", "prob_cat", "categorical",
             "y_mean", "y_var", "x_rec"]


def pack_params(params):
    """Pad/fuse the PyTorch-style params into the kernel layout (bf16 weights)."""
    def pad_rows(w, to):
        return jnp.pad(w, ((0, to - w.shape[0]), (0, 0)))

    def pad_cols(w, to):
        return jnp.pad(w, ((0, 0), (0, to - w.shape[1])))

    bf = lambda a: a.astype(jnp.bfloat16)
    return {
        "wx12": bf(jnp.concatenate([pad_rows(params["w1"], XP),
                                    pad_rows(params["w3x"], XP)], axis=1)),
        "b1": params["b1"],
        "w2": bf(params["w2"]), "b2": params["b2"],
        "wl": bf(params["wl"]), "bl": params["bl"],
        # fused y heads: [w3y | wym | wyv]  -> [10, 532]
        "w3yy": bf(jnp.concatenate([params["w3y"], params["wym"],
                                    params["wyv"]], axis=1)),
        "b3": params["b3"],
        "byy": jnp.concatenate([params["bym"], params["byv"]], axis=1),
        "w4": bf(params["w4"]), "b4": params["b4"],
        "wmv": bf(jnp.concatenate([params["wmu"], params["wvar"]], axis=1)),
        "bmv": jnp.concatenate([params["bmu"], params["bvar"]], axis=1),
        "wg1": bf(params["wg1"]), "bg1": params["bg1"],
        "wg2": bf(params["wg2"]), "bg2": params["bg2"],
        "wg3": bf(pad_cols(params["wg3"], XP)),
        "bg3": pad_cols(params["bg3"], XP),
    }


@functools.partial(jax.jit, static_argnames=("tb",))
def gmvae_forward(x, gumbel_noise, eps_noise, packed, tb=None):
    """Runs the fused GMVAENet forward as a single pallas_call (batch tiled)."""
    B = x.shape[0]
    if tb is None:
        # Waste-aware tile choice: balance tiles instead of always padding to a
        # fixed TB, and force >= 2 grid steps whenever feasible so the
        # "parallel" batch axis shards across both v7x TensorCores.
        n_tiles = max(_cdiv(B, TB_MAX), 2 if B >= 16 else 1)
        TB = _round_up(_cdiv(B, n_tiles), 8)
    else:
        assert tb % 8 == 0, "tile batch must be a multiple of 8"
        TB = tb
    Bp = _round_up(B, TB)

    # pad batch to a multiple of TB; pad x lanes 104 -> 128 (zeros), cast bf16;
    # pack both noise tensors into one lane-dense [Bp, 256] slab.
    xp = jnp.pad(x, ((0, Bp - B), (0, XP - X_DIM))).astype(jnp.bfloat16)
    gp = jnp.pad(gumbel_noise, ((0, Bp - B), (0, XP - Y_DIM)))
    ep = jnp.pad(eps_noise, ((0, Bp - B), (0, XP - Z_DIM)))
    noise = jnp.concatenate([gp, ep], axis=-1).astype(jnp.float32)  # [Bp, 256]

    def batch_spec(feat):
        return pl.BlockSpec((TB, feat), lambda i: (i, 0))

    def full_spec(shape):
        # constant index_map -> weights stay VMEM-resident across grid steps
        return pl.BlockSpec(shape, lambda i: (0, 0))

    in_specs = [batch_spec(XP), batch_spec(NOISE_W)]
    in_specs += [full_spec(packed[name].shape) for name in PACKED_ORDER]

    out_specs = (batch_spec(SLAB_W), batch_spec(XP))
    out_shapes = (jax.ShapeDtypeStruct((Bp, SLAB_W), jnp.float32),
                  jax.ShapeDtypeStruct((Bp, XP), jnp.float32))

    # Advisory cost estimate so XLA schedules surrounding ops sensibly.
    flops_per_row = 2 * (XP * 2 * HID            # x @ [w1|w3x]
                         + HID * HID             # w2
                         + HID * Y_DIM           # wl
                         + Y_DIM * YYW           # [w3y|wym|wyv]
                         + HID * HID             # w4
                         + HID * 2 * Z_DIM       # [wmu|wvar]
                         + Z_DIM * HID           # wg1
                         + HID * HID             # wg2
                         + HID * XP)             # wg3 (padded)
    weight_bytes = sum(int(packed[n].size) * packed[n].dtype.itemsize
                       for n in PACKED_ORDER)
    io_bytes_per_row = XP * 2 + NOISE_W * 4 + SLAB_W * 4 + XP * 4
    cost = pl.CostEstimate(
        flops=int(flops_per_row * Bp),
        transcendentals=int(200 * Bp),
        bytes_accessed=int(weight_bytes + io_bytes_per_row * Bp))

    slab, xrec_p = pl.pallas_call(
        gmvae_kernel,
        out_shape=out_shapes,
        grid_spec=pltpu.PrefetchScalarGridSpec(
            num_scalar_prefetch=0,
            grid=(Bp // TB,),
            in_specs=in_specs,
            out_specs=out_specs,
        ),
        compiler_params=pltpu.CompilerParams(
            dimension_semantics=("parallel",),
            vmem_limit_bytes=32 << 20,
        ),
        cost_estimate=cost,
    )(xp, noise, *[packed[n] for n in PACKED_ORDER])

    slab = slab[:B]
    widths = [Z_DIM, Z_DIM, Z_DIM, Y_DIM, Y_DIM, Y_DIM, Z_DIM, Z_DIM]
    outs = {}
    off = 0
    for name, w in zip(OUT_NAMES[:-1], widths):
        outs[name] = slab[:, off:off + w]
        off += w
    outs["x_rec"] = xrec_p[:B, :X_DIM]
    return outs


def gmvae_forward_ref(x, gumbel_noise, eps_noise, params):
    """Plain-JAX f32 reference of the same forward (for sanity checking)."""
    p = params
    h = jax.nn.relu(x @ p["w1"] + p["b1"])
    h = jax.nn.relu(h @ p["w2"] + p["b2"])
    logits = h @ p["wl"] + p["bl"]
    prob = jax.nn.softmax(logits, axis=-1)
    y = jax.nn.softmax(logits + gumbel_noise, axis=-1)
    h = jax.nn.relu(x @ p["w3x"] + y @ p["w3y"] + p["b3"])
    h = jax.nn.relu(h @ p["w4"] + p["b4"])
    mu = h @ p["wmu"] + p["bmu"]
    var = jax.nn.softplus(h @ p["wvar"] + p["bvar"])
    z = mu + eps_noise * jnp.sqrt(var + VAR_EPS)
    y_mu = y @ p["wym"] + p["bym"]
    y_var = jax.nn.softplus(y @ p["wyv"] + p["byv"])
    g = jax.nn.relu(z @ p["wg1"] + p["bg1"])
    g = jax.nn.relu(g @ p["wg2"] + p["bg2"])
    x_rec = jax.nn.sigmoid(g @ p["wg3"] + p["bg3"])
    return dict(zip(OUT_NAMES, [mu, var, z, logits, prob, y, y_mu, y_var, x_rec]))


def _make_inputs(key, B):
    k_x, k_gumbel, k_eps = jax.random.split(key, 3)
    x = jax.random.uniform(k_x, (B, X_DIM), dtype=jnp.float32)  # features in [0,1)
    u = jax.random.uniform(k_gumbel, (B, Y_DIM), dtype=jnp.float32)
    gumbel_noise = -jnp.log(-jnp.log(u + GUMBEL_EPS) + GUMBEL_EPS)
    eps_noise = jax.random.normal(k_eps, (B, Z_DIM), dtype=jnp.float32)
    return x, gumbel_noise, eps_noise


def _check(out, ref):
    # bf16 matmuls + approx reciprocal (gumbel sample) -> loose-ish tolerance.
    for name in OUT_NAMES:
        assert out[name].shape == ref[name].shape, name
        assert bool(jnp.all(jnp.isfinite(out[name]))), name
        assert bool(jnp.allclose(out[name], ref[name], rtol=3e-2, atol=3e-2)), (
            name, float(jnp.max(jnp.abs(out[name] - ref[name]))))


if __name__ == "__main__":
    key = jax.random.PRNGKey(0)
    k_param, k_data1, k_data2 = jax.random.split(key, 3)

    params = init_params(k_param)
    packed = pack_params(params)

    # --- small batch, single tile (B < 16 -> grid=(1,)) ---
    B = 8
    x, gumbel_noise, eps_noise = _make_inputs(k_data1, B)
    out = gmvae_forward(x, gumbel_noise, eps_noise, packed)
    out = jax.tree_util.tree_map(jax.block_until_ready, out)
    _check(out, gmvae_forward_ref(x, gumbel_noise, eps_noise, params))

    # --- non-multiple batch, default waste-aware tiling (TB=24, grid=(2,)) ---
    B2 = 40
    x2, g2, e2 = _make_inputs(k_data2, B2)
    out2 = gmvae_forward(x2, g2, e2, packed)
    out2 = jax.tree_util.tree_map(jax.block_until_ready, out2)
    _check(out2, gmvae_forward_ref(x2, g2, e2, params))

    # --- forced tiling override (TB=16, Bp=48, grid=(3,), exercises padding) ---
    out3 = gmvae_forward(x2, g2, e2, packed, tb=16)
    out3 = jax.tree_util.tree_map(jax.block_until_ready, out3)
    _check(out3, gmvae_forward_ref(x2, g2, e2, params))

    print("KERNEL_OK")
</pallas_src>

<mosaic_0001>
module attributes {stable_mosaic.version = 11 : i64} {
  func.func @gmvae_kernel(%arg0: i32, %arg1: memref<8x128xbf16, #tpu.memory_space<vmem>>, %arg2: memref<8x256xf32, #tpu.memory_space<vmem>>, %arg3: memref<128x1024xbf16, #tpu.memory_space<vmem>>, %arg4: memref<1x512xf32, #tpu.memory_space<vmem>>, %arg5: memref<512x512xbf16, #tpu.memory_space<vmem>>, %arg6: memref<1x512xf32, #tpu.memory_space<vmem>>, %arg7: memref<512x10xbf16, #tpu.memory_space<vmem>>, %arg8: memref<1x10xf32, #tpu.memory_space<vmem>>, %arg9: memref<10x532xbf16, #tpu.memory_space<vmem>>, %arg10: memref<1x512xf32, #tpu.memory_space<vmem>>, %arg11: memref<1x20xf32, #tpu.memory_space<vmem>>, %arg12: memref<512x512xbf16, #tpu.memory_space<vmem>>, %arg13: memref<1x512xf32, #tpu.memory_space<vmem>>, %arg14: memref<512x20xbf16, #tpu.memory_space<vmem>>, %arg15: memref<1x20xf32, #tpu.memory_space<vmem>>, %arg16: memref<10x512xbf16, #tpu.memory_space<vmem>>, %arg17: memref<1x512xf32, #tpu.memory_space<vmem>>, %arg18: memref<512x512xbf16, #tpu.memory_space<vmem>>, %arg19: memref<1x512xf32, #tpu.memory_space<vmem>>, %arg20: memref<512x128xbf16, #tpu.memory_space<vmem>>, %arg21: memref<1x128xf32, #tpu.memory_space<vmem>>, %arg22: memref<8x128xf32, #tpu.memory_space<vmem>>, %arg23: memref<8x128xf32, #tpu.memory_space<vmem>>) attributes {dimension_semantics = [#tpu.dimension_semantics<parallel>], iteration_bounds = array<i64: 1>, scalar_prefetch = 0 : i64, scratch_operands = 0 : i64, tpu.core_type = #tpu.core_type<tc>, window_params = [{transform_indices = @transform_0, window_bounds = array<i64: 8, 128>}, {transform_indices = @transform_1, window_bounds = array<i64: 8, 256>}, {pipeline_mode = #tpu.pipeline_mode<synchronous>, transform_indices = @transform_2, window_bounds = array<i64: 128, 1024>}, {pipeline_mode = #tpu.pipeline_mode<synchronous>, transform_indices = @transform_3, window_bounds = array<i64: 1, 512>}, {pipeline_mode = #tpu.pipeline_mode<synchronous>, transform_indices = @transform_4, window_bounds = array<i64: 512, 512>}, {pipeline_mode = #tpu.pipeline_mode<synchronous>, transform_indices = @transform_5, window_bounds = array<i64: 1, 512>}, {pipeline_mode = #tpu.pipeline_mode<synchronous>, transform_indices = @transform_6, window_bounds = array<i64: 512, 10>}, {pipeline_mode = #tpu.pipeline_mode<synchronous>, transform_indices = @transform_7, window_bounds = array<i64: 1, 10>}, {pipeline_mode = #tpu.pipeline_mode<synchronous>, transform_indices = @transform_8, window_bounds = array<i64: 10, 532>}, {pipeline_mode = #tpu.pipeline_mode<synchronous>, transform_indices = @transform_9, window_bounds = array<i64: 1, 512>}, {pipeline_mode = #tpu.pipeline_mode<synchronous>, transform_indices = @transform_10, window_bounds = array<i64: 1, 20>}, {pipeline_mode = #tpu.pipeline_mode<synchronous>, transform_indices = @transform_11, window_bounds = array<i64: 512, 512>}, {pipeline_mode = #tpu.pipeline_mode<synchronous>, transform_indices = @transform_12, window_bounds = array<i64: 1, 512>}, {pipeline_mode = #tpu.pipeline_mode<synchronous>, transform_indices = @transform_13, window_bounds = array<i64: 512, 20>}, {pipeline_mode = #tpu.pipeline_mode<synchronous>, transform_indices = @transform_14, window_bounds = array<i64: 1, 20>}, {pipeline_mode = #tpu.pipeline_mode<synchronous>, transform_indices = @transform_15, window_bounds = array<i64: 10, 512>}, {pipeline_mode = #tpu.pipeline_mode<synchronous>, transform_indices = @transform_16, window_bounds = array<i64: 1, 512>}, {pipeline_mode = #tpu.pipeline_mode<synchronous>, transform_indices = @transform_17, window_bounds = array<i64: 512, 512>}, {pipeline_mode = #tpu.pipeline_mode<synchronous>, transform_indices = @transform_18, window_bounds = array<i64: 1, 512>}, {pipeline_mode = #tpu.pipeline_mode<synchronous>, transform_indices = @transform_19, window_bounds = array<i64: 512, 128>}, {pipeline_mode = #tpu.pipeline_mode<synchronous>, transform_indices = @transform_20, window_bounds = array<i64: 1, 128>}, {transform_indices = @transform_21, window_bounds = array<i64: 8, 128>}, {transform_indices = @transform_22, window_bounds = array<i64: 8, 128>}]} {
    %c0 = arith.constant 0 : index
    %c0_0 = arith.constant 0 : index
    %0 = vector.load %arg1[%c0, %c0_0] : memref<8x128xbf16, #tpu.memory_space<vmem>>, vector<8x128xbf16>
    %c0_1 = arith.constant 0 : index
    %c0_2 = arith.constant 0 : index
    %1 = vector.load %arg2[%c0_1, %c0_2] : memref<8x256xf32, #tpu.memory_space<vmem>>, vector<8x256xf32>
    %2 = vector.extract_strided_slice %1 {offsets = [0, 0], sizes = [8, 10], strides = [1, 1]} : vector<8x256xf32> to vector<8x10xf32>
    %3 = vector.extract_strided_slice %1 {offsets = [0, 128], sizes = [8, 10], strides = [1, 1]} : vector<8x256xf32> to vector<8x10xf32>
    %c0_3 = arith.constant 0 : index
    %c0_4 = arith.constant 0 : index
    %4 = vector.load %arg3[%c0_3, %c0_4] : memref<128x1024xbf16, #tpu.memory_space<vmem>>, vector<128x1024xbf16>
    %cst = arith.constant dense<0.000000e+00> : vector<8x1024xf32>
    %5 = tpu.matmul %0, %4, %cst {dimension_numbers = #tpu.dot_dimension_numbers<[1], [0], [0], [1], [0, 0, 1, 1], [], []>} : vector<8x128xbf16>, vector<128x1024xbf16>, vector<8x1024xf32> -> vector<8x1024xf32>
    %6 = vector.extract_strided_slice %5 {offsets = [0, 0], sizes = [8, 512], strides = [1, 1]} : vector<8x1024xf32> to vector<8x512xf32>
    %c0_5 = arith.constant 0 : index
    %c0_6 = arith.constant 0 : index
    %7 = vector.load %arg4[%c0_5, %c0_6] : memref<1x512xf32, #tpu.memory_space<vmem>>, vector<1x512xf32>
    %8 = vector.broadcast %7 : vector<1x512xf32> to vector<8x512xf32>
    %9 = arith.addf %6, %8 : vector<8x512xf32>
    %cst_7 = arith.constant 0.000000e+00 : f32
    %10 = vector.broadcast %cst_7 : f32 to vector<8x512xf32>
    %11 = arith.maximumf %9, %10 : vector<8x512xf32>
    %12 = arith.truncf %11 : vector<8x512xf32> to vector<8x512xbf16>
    %c0_8 = arith.constant 0 : index
    %c0_9 = arith.constant 0 : index
    %13 = vector.load %arg5[%c0_8, %c0_9] : memref<512x512xbf16, #tpu.memory_space<vmem>>, vector<512x512xbf16>
    %cst_10 = arith.constant dense<0.000000e+00> : vector<8x512xf32>
    %14 = tpu.matmul %12, %13, %cst_10 {dimension_numbers = #tpu.dot_dimension_numbers<[1], [0], [0], [1], [0, 0, 1, 1], [], []>} : vector<8x512xbf16>, vector<512x512xbf16>, vector<8x512xf32> -> vector<8x512xf32>
    %c0_11 = arith.constant 0 : index
    %c0_12 = arith.constant 0 : index
    %15 = vector.load %arg6[%c0_11, %c0_12] : memref<1x512xf32, #tpu.memory_space<vmem>>, vector<1x512xf32>
    %16 = vector.broadcast %15 : vector<1x512xf32> to vector<8x512xf32>
    %17 = arith.addf %14, %16 : vector<8x512xf32>
    %cst_13 = arith.constant 0.000000e+00 : f32
    %18 = vector.broadcast %cst_13 : f32 to vector<8x512xf32>
    %19 = arith.maximumf %17, %18 : vector<8x512xf32>
    %20 = arith.truncf %19 : vector<8x512xf32> to vector<8x512xbf16>
    %c0_14 = arith.constant 0 : index
    %c0_15 = arith.constant 0 : index
    %21 = vector.load %arg7[%c0_14, %c0_15] : memref<512x10xbf16, #tpu.memory_space<vmem>>, vector<512x10xbf16>
    %cst_16 = arith.constant dense<0.000000e+00> : vector<8x10xf32>
    %22 = tpu.matmul %20, %21, %cst_16 {dimension_numbers = #tpu.dot_dimension_numbers<[1], [0], [0], [1], [0, 0, 1, 1], [], []>} : vector<8x512xbf16>, vector<512x10xbf16>, vector<8x10xf32> -> vector<8x10xf32>
    %c0_17 = arith.constant 0 : index
    %c0_18 = arith.constant 0 : index
    %23 = vector.load %arg8[%c0_17, %c0_18] : memref<1x10xf32, #tpu.memory_space<vmem>>, vector<1x10xf32>
    %24 = vector.broadcast %23 : vector<1x10xf32> to vector<8x10xf32>
    %25 = arith.addf %22, %24 : vector<8x10xf32>
    %cst_19 = arith.constant dense<0xFF800000> : vector<8xf32>
    %26 = vector.multi_reduction <maximumf>, %25, %cst_19 [1] : vector<8x10xf32> to vector<8xf32>
    %27 = vector.shape_cast %26 : vector<8xf32> to vector<8x1xf32>
    %28 = vector.broadcast %27 : vector<8x1xf32> to vector<8x10xf32>
    %29 = arith.subf %25, %28 : vector<8x10xf32>
    %30 = math.exp %29 : vector<8x10xf32>
    %cst_20 = arith.constant dense<0.000000e+00> : vector<8xf32>
    %31 = vector.multi_reduction <add>, %30, %cst_20 [1] : vector<8x10xf32> to vector<8xf32>
    %32 = vector.shape_cast %31 : vector<8xf32> to vector<8x1xf32>
    %33 = vector.broadcast %32 : vector<8x1xf32> to vector<8x10xf32>
    %34 = arith.divf %30, %33 : vector<8x10xf32>
    %35 = arith.addf %25, %2 : vector<8x10xf32>
    %cst_21 = arith.constant dense<0xFF800000> : vector<8xf32>
    %36 = vector.multi_reduction <maximumf>, %35, %cst_21 [1] : vector<8x10xf32> to vector<8xf32>
    %37 = vector.shape_cast %36 : vector<8xf32> to vector<8x1xf32>
    %38 = vector.broadcast %37 : vector<8x1xf32> to vector<8x10xf32>
    %39 = arith.subf %35, %38 : vector<8x10xf32>
    %40 = math.exp %39 : vector<8x10xf32>
    %cst_22 = arith.constant dense<0.000000e+00> : vector<8xf32>
    %41 = vector.multi_reduction <add>, %40, %cst_22 [1] : vector<8x10xf32> to vector<8xf32>
    %42 = vector.shape_cast %41 : vector<8xf32> to vector<8x1xf32>
    %43 = tpu.reciprocal %42 {approx = true} : vector<8x1xf32> -> vector<8x1xf32>
    %44 = vector.broadcast %43 : vector<8x1xf32> to vector<8x10xf32>
    %45 = arith.mulf %40, %44 : vector<8x10xf32>
    %46 = arith.truncf %45 : vector<8x10xf32> to vector<8x10xbf16>
    %c0_23 = arith.constant 0 : index
    %c0_24 = arith.constant 0 : index
    %47 = vector.load %arg9[%c0_23, %c0_24] : memref<10x532xbf16, #tpu.memory_space<vmem>>, vector<10x532xbf16>
    %cst_25 = arith.constant dense<0.000000e+00> : vector<8x532xf32>
    %48 = tpu.matmul %46, %47, %cst_25 {dimension_numbers = #tpu.dot_dimension_numbers<[1], [0], [0], [1], [0, 0, 1, 1], [], []>} : vector<8x10xbf16>, vector<10x532xbf16>, vector<8x532xf32> -> vector<8x532xf32>
    %49 = vector.extract_strided_slice %5 {offsets = [0, 512], sizes = [8, 512], strides = [1, 1]} : vector<8x1024xf32> to vector<8x512xf32>
    %50 = vector.extract_strided_slice %48 {offsets = [0, 0], sizes = [8, 512], strides = [1, 1]} : vector<8x532xf32> to vector<8x512xf32>
    %51 = arith.addf %49, %50 : vector<8x512xf32>
    %c0_26 = arith.constant 0 : index
    %c0_27 = arith.constant 0 : index
    %52 = vector.load %arg10[%c0_26, %c0_27] : memref<1x512xf32, #tpu.memory_space<vmem>>, vector<1x512xf32>
    %53 = vector.broadcast %52 : vector<1x512xf32> to vector<8x512xf32>
    %54 = arith.addf %51, %53 : vector<8x512xf32>
    %cst_28 = arith.constant 0.000000e+00 : f32
    %55 = vector.broadcast %cst_28 : f32 to vector<8x512xf32>
    %56 = arith.maximumf %54, %55 : vector<8x512xf32>
    %57 = arith.truncf %56 : vector<8x512xf32> to vector<8x512xbf16>
    %c0_29 = arith.constant 0 : index
    %c0_30 = arith.constant 0 : index
    %58 = vector.load %arg12[%c0_29, %c0_30] : memref<512x512xbf16, #tpu.memory_space<vmem>>, vector<512x512xbf16>
    %cst_31 = arith.constant dense<0.000000e+00> : vector<8x512xf32>
    %59 = tpu.matmul %57, %58, %cst_31 {dimension_numbers = #tpu.dot_dimension_numbers<[1], [0], [0], [1], [0, 0, 1, 1], [], []>} : vector<8x512xbf16>, vector<512x512xbf16>, vector<8x512xf32> -> vector<8x512xf32>
    %c0_32 = arith.constant 0 : index
    %c0_33 = arith.constant 0 : index
    %60 = vector.load %arg13[%c0_32, %c0_33] : memref<1x512xf32, #tpu.memory_space<vmem>>, vector<1x512xf32>
    %61 = vector.broadcast %60 : vector<1x512xf32> to vector<8x512xf32>
    %62 = arith.addf %59, %61 : vector<8x512xf32>
    %cst_34 = arith.constant 0.000000e+00 : f32
    %63 = vector.broadcast %cst_34 : f32 to vector<8x512xf32>
    %64 = arith.maximumf %62, %63 : vector<8x512xf32>
    %65 = arith.truncf %64 : vector<8x512xf32> to vector<8x512xbf16>
    %c0_35 = arith.constant 0 : index
    %c0_36 = arith.constant 0 : index
    %66 = vector.load %arg14[%c0_35, %c0_36] : memref<512x20xbf16, #tpu.memory_space<vmem>>, vector<512x20xbf16>
    %cst_37 = arith.constant dense<0.000000e+00> : vector<8x20xf32>
    %67 = tpu.matmul %65, %66, %cst_37 {dimension_numbers = #tpu.dot_dimension_numbers<[1], [0], [0], [1], [0, 0, 1, 1], [], []>} : vector<8x512xbf16>, vector<512x20xbf16>, vector<8x20xf32> -> vector<8x20xf32>
    %c0_38 = arith.constant 0 : index
    %c0_39 = arith.constant 0 : index
    %68 = vector.load %arg15[%c0_38, %c0_39] : memref<1x20xf32, #tpu.memory_space<vmem>>, vector<1x20xf32>
    %69 = vector.broadcast %68 : vector<1x20xf32> to vector<8x20xf32>
    %70 = arith.addf %67, %69 : vector<8x20xf32>
    %71 = vector.extract_strided_slice %70 {offsets = [0, 0], sizes = [8, 10], strides = [1, 1]} : vector<8x20xf32> to vector<8x10xf32>
    %72 = vector.extract_strided_slice %70 {offsets = [0, 10], sizes = [8, 10], strides = [1, 1]} : vector<8x20xf32> to vector<8x10xf32>
    %cst_40 = arith.constant 0.000000e+00 : f32
    %73 = vector.broadcast %cst_40 : f32 to vector<8x10xf32>
    %74 = arith.maximumf %72, %73 : vector<8x10xf32>
    %75 = math.absf %72 : vector<8x10xf32>
    %cst_41 = arith.constant 0.000000e+00 : f32
    %76 = vector.broadcast %cst_41 : f32 to vector<8x10xf32>
    %77 = arith.subf %76, %75 : vector<8x10xf32>
    %78 = math.exp %77 : vector<8x10xf32>
    %79 = math.log1p %78 : vector<8x10xf32>
    %80 = arith.addf %74, %79 : vector<8x10xf32>
    %cst_42 = arith.constant 1.000000e-10 : f32
    %81 = vector.broadcast %cst_42 : f32 to vector<8x10xf32>
    %82 = arith.addf %80, %81 : vector<8x10xf32>
    %83 = math.sqrt %82 : vector<8x10xf32>
    %84 = arith.mulf %3, %83 : vector<8x10xf32>
    %85 = arith.addf %71, %84 : vector<8x10xf32>
    %86 = vector.extract_strided_slice %48 {offsets = [0, 512], sizes = [8, 20], strides = [1, 1]} : vector<8x532xf32> to vector<8x20xf32>
    %c0_43 = arith.constant 0 : index
    %c0_44 = arith.constant 0 : index
    %87 = vector.load %arg11[%c0_43, %c0_44] : memref<1x20xf32, #tpu.memory_space<vmem>>, vector<1x20xf32>
    %88 = vector.broadcast %87 : vector<1x20xf32> to vector<8x20xf32>
    %89 = arith.addf %86, %88 : vector<8x20xf32>
    %90 = vector.extract_strided_slice %89 {offsets = [0, 0], sizes = [8, 10], strides = [1, 1]} : vector<8x20xf32> to vector<8x10xf32>
    %91 = vector.extract_strided_slice %89 {offsets = [0, 10], sizes = [8, 10], strides = [1, 1]} : vector<8x20xf32> to vector<8x10xf32>
    %cst_45 = arith.constant 0.000000e+00 : f32
    %92 = vector.broadcast %cst_45 : f32 to vector<8x10xf32>
    %93 = arith.maximumf %91, %92 : vector<8x10xf32>
    %94 = math.absf %91 : vector<8x10xf32>
    %cst_46 = arith.constant 0.000000e+00 : f32
    %95 = vector.broadcast %cst_46 : f32 to vector<8x10xf32>
    %96 = arith.subf %95, %94 : vector<8x10xf32>
    %97 = math.exp %96 : vector<8x10xf32>
    %98 = math.log1p %97 : vector<8x10xf32>
    %99 = arith.addf %93, %98 : vector<8x10xf32>
    %100 = arith.truncf %85 : vector<8x10xf32> to vector<8x10xbf16>
    %c0_47 = arith.constant 0 : index
    %c0_48 = arith.constant 0 : index
    %101 = vector.load %arg16[%c0_47, %c0_48] : memref<10x512xbf16, #tpu.memory_space<vmem>>, vector<10x512xbf16>
    %cst_49 = arith.constant dense<0.000000e+00> : vector<8x512xf32>
    %102 = tpu.matmul %100, %101, %cst_49 {dimension_numbers = #tpu.dot_dimension_numbers<[1], [0], [0], [1], [0, 0, 1, 1], [], []>} : vector<8x10xbf16>, vector<10x512xbf16>, vector<8x512xf32> -> vector<8x512xf32>
    %c0_50 = arith.constant 0 : index
    %c0_51 = arith.constant 0 : index
    %103 = vector.load %arg17[%c0_50, %c0_51] : memref<1x512xf32, #tpu.memory_space<vmem>>, vector<1x512xf32>
    %104 = vector.broadcast %103 : vector<1x512xf32> to vector<8x512xf32>
    %105 = arith.addf %102, %104 : vector<8x512xf32>
    %cst_52 = arith.constant 0.000000e+00 : f32
    %106 = vector.broadcast %cst_52 : f32 to vector<8x512xf32>
    %107 = arith.maximumf %105, %106 : vector<8x512xf32>
    %108 = arith.truncf %107 : vector<8x512xf32> to vector<8x512xbf16>
    %c0_53 = arith.constant 0 : index
    %c0_54 = arith.constant 0 : index
    %109 = vector.load %arg18[%c0_53, %c0_54] : memref<512x512xbf16, #tpu.memory_space<vmem>>, vector<512x512xbf16>
    %cst_55 = arith.constant dense<0.000000e+00> : vector<8x512xf32>
    %110 = tpu.matmul %108, %109, %cst_55 {dimension_numbers = #tpu.dot_dimension_numbers<[1], [0], [0], [1], [0, 0, 1, 1], [], []>} : vector<8x512xbf16>, vector<512x512xbf16>, vector<8x512xf32> -> vector<8x512xf32>
    %c0_56 = arith.constant 0 : index
    %c0_57 = arith.constant 0 : index
    %111 = vector.load %arg19[%c0_56, %c0_57] : memref<1x512xf32, #tpu.memory_space<vmem>>, vector<1x512xf32>
    %112 = vector.broadcast %111 : vector<1x512xf32> to vector<8x512xf32>
    %113 = arith.addf %110, %112 : vector<8x512xf32>
    %cst_58 = arith.constant 0.000000e+00 : f32
    %114 = vector.broadcast %cst_58 : f32 to vector<8x512xf32>
    %115 = arith.maximumf %113, %114 : vector<8x512xf32>
    %116 = arith.truncf %115 : vector<8x512xf32> to vector<8x512xbf16>
    %c0_59 = arith.constant 0 : index
    %c0_60 = arith.constant 0 : index
    %117 = vector.load %arg20[%c0_59, %c0_60] : memref<512x128xbf16, #tpu.memory_space<vmem>>, vector<512x128xbf16>
    %cst_61 = arith.constant dense<0.000000e+00> : vector<8x128xf32>
    %118 = tpu.matmul %116, %117, %cst_61 {dimension_numbers = #tpu.dot_dimension_numbers<[1], [0], [0], [1], [0, 0, 1, 1], [], []>} : vector<8x512xbf16>, vector<512x128xbf16>, vector<8x128xf32> -> vector<8x128xf32>
    %c0_62 = arith.constant 0 : index
    %c0_63 = arith.constant 0 : index
    %119 = vector.load %arg21[%c0_62, %c0_63] : memref<1x128xf32, #tpu.memory_space<vmem>>, vector<1x128xf32>
    %120 = vector.broadcast %119 : vector<1x128xf32> to vector<8x128xf32>
    %121 = arith.addf %118, %120 : vector<8x128xf32>
    %122 = arith.negf %121 : vector<8x128xf32>
    %123 = math.exp %122 : vector<8x128xf32>
    %cst_64 = arith.constant 1.000000e+00 : f32
    %124 = vector.broadcast %cst_64 : f32 to vector<8x128xf32>
    %125 = arith.addf %124, %123 : vector<8x128xf32>
    %126 = arith.divf %124, %125 : vector<8x128xf32>
    %cst_65 = arith.constant 0.000000e+00 : f32
    %127 = vector.broadcast %cst_65 : f32 to vector<8x48xf32>
    %128 = tpu.concatenate %71, %80, %85, %25, %34, %45, %90, %99, %127 in 1 : vector<8x10xf32>, vector<8x10xf32>, vector<8x10xf32>, vector<8x10xf32>, vector<8x10xf32>, vector<8x10xf32>, vector<8x10xf32>, vector<8x10xf32>, vector<8x48xf32> -> vector<8x128xf32>
    %c0_66 = arith.constant 0 : index
    %c0_67 = arith.constant 0 : index
    %129 = vector.load %arg22[%c0_66, %c0_67] : memref<8x128xf32, #tpu.memory_space<vmem>>, vector<8x128xf32>
    tpu.vector_store %arg22[%c0_66, %c0_67], %128 {strides = array<i32>} : memref<8x128xf32, #tpu.memory_space<vmem>>, vector<8x128xf32>,
    %c0_68 = arith.constant 0 : index
    %c0_69 = arith.constant 0 : index
    %130 = vector.load %arg23[%c0_68, %c0_69] : memref<8x128xf32, #tpu.memory_space<vmem>>, vector<8x128xf32>
    tpu.vector_store %arg23[%c0_68, %c0_69], %126 {strides = array<i32>} : memref<8x128xf32, #tpu.memory_space<vmem>>, vector<8x128xf32>,
    return
  }
  func.func @transform_0(%arg0: i32) -> (i32, i32) {
    %c0_i32 = arith.constant 0 : i32
    %c0_i32_0 = arith.constant 0 : i32
    return %arg0, %c0_i32 : i32, i32
  }
  func.func @transform_1(%arg0: i32) -> (i32, i32) {
    %c0_i32 = arith.constant 0 : i32
    %c0_i32_0 = arith.constant 0 : i32
    return %arg0, %c0_i32 : i32, i32
  }
  func.func @transform_2(%arg0: i32) -> (i32, i32) {
    %c0_i32 = arith.constant 0 : i32
    %c0_i32_0 = arith.constant 0 : i32
    %c0_i32_1 = arith.constant 0 : i32
    return %c0_i32, %c0_i32_0 : i32, i32
  }
  func.func @transform_3(%arg0: i32) -> (i32, i32) {
    %c0_i32 = arith.constant 0 : i32
    %c0_i32_0 = arith.constant 0 : i32
    %c0_i32_1 = arith.constant 0 : i32
    return %c0_i32, %c0_i32_0 : i32, i32
  }
  func.func @transform_4(%arg0: i32) -> (i32, i32) {
    %c0_i32 = arith.constant 0 : i32
    %c0_i32_0 = arith.constant 0 : i32
    %c0_i32_1 = arith.constant 0 : i32
    return %c0_i32, %c0_i32_0 : i32, i32
  }
  func.func @transform_5(%arg0: i32) -> (i32, i32) {
    %c0_i32 = arith.constant 0 : i32
    %c0_i32_0 = arith.constant 0 : i32
    %c0_i32_1 = arith.constant 0 : i32
    return %c0_i32, %c0_i32_0 : i32, i32
  }
  func.func @transform_6(%arg0: i32) -> (i32, i32) {
    %c0_i32 = arith.constant 0 : i32
    %c0_i32_0 = arith.constant 0 : i32
    %c0_i32_1 = arith.constant 0 : i32
    return %c0_i32, %c0_i32_0 : i32, i32
  }
  func.func @transform_7(%arg0: i32) -> (i32, i32) {
    %c0_i32 = arith.constant 0 : i32
    %c0_i32_0 = arith.constant 0 : i32
    %c0_i32_1 = arith.constant 0 : i32
    return %c0_i32, %c0_i32_0 : i32, i32
  }
  func.func @transform_8(%arg0: i32) -> (i32, i32) {
    %c0_i32 = arith.constant 0 : i32
    %c0_i32_0 = arith.constant 0 : i32
    %c0_i32_1 = arith.constant 0 : i32
    return %c0_i32, %c0_i32_0 : i32, i32
  }
  func.func @transform_9(%arg0: i32) -> (i32, i32) {
    %c0_i32 = arith.constant 0 : i32
    %c0_i32_0 = arith.constant 0 : i32
    %c0_i32_1 = arith.constant 0 : i32
    return %c0_i32, %c0_i32_0 : i32, i32
  }
  func.func @transform_10(%arg0: i32) -> (i32, i32) {
    %c0_i32 = arith.constant 0 : i32
    %c0_i32_0 = arith.constant 0 : i32
    %c0_i32_1 = arith.constant 0 : i32
    return %c0_i32, %c0_i32_0 : i32, i32
  }
  func.func @transform_11(%arg0: i32) -> (i32, i32) {
    %c0_i32 = arith.constant 0 : i32
    %c0_i32_0 = arith.constant 0 : i32
    %c0_i32_1 = arith.constant 0 : i32
    return %c0_i32, %c0_i32_0 : i32, i32
  }
  func.func @transform_12(%arg0: i32) -> (i32, i32) {
    %c0_i32 = arith.constant 0 : i32
    %c0_i32_0 = arith.constant 0 : i32
    %c0_i32_1 = arith.constant 0 : i32
    return %c0_i32, %c0_i32_0 : i32, i32
  }
  func.func @transform_13(%arg0: i32) -> (i32, i32) {
    %c0_i32 = arith.constant 0 : i32
    %c0_i32_0 = arith.constant 0 : i32
    %c0_i32_1 = arith.constant 0 : i32
    return %c0_i32, %c0_i32_0 : i32, i32
  }
  func.func @transform_14(%arg0: i32) -> (i32, i32) {
    %c0_i32 = arith.constant 0 : i32
    %c0_i32_0 = arith.constant 0 : i32
    %c0_i32_1 = arith.constant 0 : i32
    return %c0_i32, %c0_i32_0 : i32, i32
  }
  func.func @transform_15(%arg0: i32) -> (i32, i32) {
    %c0_i32 = arith.constant 0 : i32
    %c0_i32_0 = arith.constant 0 : i32
    %c0_i32_1 = arith.constant 0 : i32
    return %c0_i32, %c0_i32_0 : i32, i32
  }
  func.func @transform_16(%arg0: i32) -> (i32, i32) {
    %c0_i32 = arith.constant 0 : i32
    %c0_i32_0 = arith.constant 0 : i32
    %c0_i32_1 = arith.constant 0 : i32
    return %c0_i32, %c0_i32_0 : i32, i32
  }
  func.func @transform_17(%arg0: i32) -> (i32, i32) {
    %c0_i32 = arith.constant 0 : i32
    %c0_i32_0 = arith.constant 0 : i32
    %c0_i32_1 = arith.constant 0 : i32
    return %c0_i32, %c0_i32_0 : i32, i32
  }
  func.func @transform_18(%arg0: i32) -> (i32, i32) {
    %c0_i32 = arith.constant 0 : i32
    %c0_i32_0 = arith.constant 0 : i32
    %c0_i32_1 = arith.constant 0 : i32
    return %c0_i32, %c0_i32_0 : i32, i32
  }
  func.func @transform_19(%arg0: i32) -> (i32, i32) {
    %c0_i32 = arith.constant 0 : i32
    %c0_i32_0 = arith.constant 0 : i32
    %c0_i32_1 = arith.constant 0 : i32
    return %c0_i32, %c0_i32_0 : i32, i32
  }
  func.func @transform_20(%arg0: i32) -> (i32, i32) {
    %c0_i32 = arith.constant 0 : i32
    %c0_i32_0 = arith.constant 0 : i32
    %c0_i32_1 = arith.constant 0 : i32
    return %c0_i32, %c0_i32_0 : i32, i32
  }
  func.func @transform_21(%arg0: i32) -> (i32, i32) {
    %c0_i32 = arith.constant 0 : i32
    %c0_i32_0 = arith.constant 0 : i32
    return %arg0, %c0_i32 : i32, i32
  }
  func.func @transform_22(%arg0: i32) -> (i32, i32) {
    %c0_i32 = arith.constant 0 : i32
    %c0_i32_0 = arith.constant 0 : i32
    return %arg0, %c0_i32 : i32, i32
  }
}

</mosaic_0001>

<llo_original>
// kernel: gmvae_forward.1
$region0: #{gmvae_forward.1}
  #allocation0 [shape = 'u32[]', space=smem, size = 0x4, offset = 0x4, fixed_abs, tag = 'smem constant byte address 0x4 - core index']
  #allocation1 [shape = 'u32[144,128]{1,0:T(1,128)}', space=vmem, size = 0x12000, scoped, tag = 'internal scratch']
  %s0 = inlined_call_operand.vmem [shape: bf16[8,128], index: 0, kind: input, shape index: {}]
  %s1 = inlined_call_operand.vmem [shape: f32[8,256], index: 1, kind: input, shape index: {}]
  %s2 = inlined_call_operand.vmem [shape: bf16[128,1024], index: 2, kind: input, shape index: {}]
  %s3 = inlined_call_operand.vmem [shape: f32[1,512], index: 3, kind: input, shape index: {}]
  %s4 = inlined_call_operand.hbm [shape: bf16[512,512], index: 4, kind: input, shape index: {}]
  %s5 = inlined_call_operand.vmem [shape: f32[1,512], index: 5, kind: input, shape index: {}]
  %s6 = inlined_call_operand.vmem [shape: bf16[512,10], index: 6, kind: input, shape index: {}]
  %s7 = inlined_call_operand.vmem [shape: f32[1,10], index: 7, kind: input, shape index: {}]
  %s8 = inlined_call_operand.vmem [shape: bf16[10,532], index: 8, kind: input, shape index: {}]
  %s9 = inlined_call_operand.vmem [shape: f32[1,512], index: 9, kind: input, shape index: {}]
  %s10 = inlined_call_operand.vmem [shape: f32[1,20], index: 10, kind: input, shape index: {}]
  %s11 = inlined_call_operand.hbm [shape: bf16[512,512], index: 11, kind: input, shape index: {}]
  %s12 = inlined_call_operand.vmem [shape: f32[1,512], index: 12, kind: input, shape index: {}]
  %s13 = inlined_call_operand.vmem [shape: bf16[512,20], index: 13, kind: input, shape index: {}]
  %s14 = inlined_call_operand.vmem [shape: f32[1,20], index: 14, kind: input, shape index: {}]
  %s15 = inlined_call_operand.vmem [shape: bf16[10,512], index: 15, kind: input, shape index: {}]
  %s16 = inlined_call_operand.vmem [shape: f32[1,512], index: 16, kind: input, shape index: {}]
  %s17 = inlined_call_operand.hbm [shape: bf16[512,512], index: 17, kind: input, shape index: {}]
  %s18 = inlined_call_operand.vmem [shape: f32[1,512], index: 18, kind: input, shape index: {}]
  %s19 = inlined_call_operand.hbm [shape: bf16[512,128], index: 19, kind: input, shape index: {}]
  %s20 = inlined_call_operand.vmem [shape: f32[1,128], index: 20, kind: input, shape index: {}]
  %s21 = inlined_call_operand.vmem [shape: f32[8,128], index: 21, kind: output, shape index: {0}]
  %s22 = inlined_call_operand.hbm [shape: f32[8,128], index: 22, kind: output, shape index: {1}]
  %23 = xla_tuple %s21, %s22
  %s24 = sld [smem:[#allocation0]]
  $region118: #{gmvae_forward.1} parent=0
    _
  %s26 = ssub.s32 1, %s24
  %s27 = scalar_select 0, %s26, %s24
  $region1: #{gmvae_forward.1} parent=0
    #allocation2 [shape = 'u8[524288]{0}', space=vmem, size = 0x80000, scoped, tag = 'input window, operand 4, single buffered']
    #allocation3 [shape = 's32[1]{0}', space=sflag, size = 0x4, scoped, tag = 'scoped memory for gmvae_forward.1']
    #allocation4 [shape = 's32[1]{0}', space=sflag, size = 0x4, scoped, tag = 'scoped memory for gmvae_forward.1']
    #allocation5 [shape = 'u8[524288]{0}', space=vmem, size = 0x80000, scoped, tag = 'input window, operand 11, single buffered']
    #allocation6 [shape = 's32[1]{0}', space=sflag, size = 0x4, scoped, tag = 'scoped memory for gmvae_forward.1']
    #allocation7 [shape = 'u8[524288]{0}', space=vmem, size = 0x80000, scoped, tag = 'input window, operand 17, single buffered']
    #allocation8 [shape = 'u8[131072]{0}', space=vmem, size = 0x20000, scoped, tag = 'input window, operand 19, single buffered']
    #allocation9 [shape = 's32[1]{0}', space=sflag, size = 0x4, scoped, tag = 'scoped memory for gmvae_forward.1']
    #allocation10 [shape = 'u8[4096]{0}', space=vmem, size = 0x1000, scoped, tag = 'output window, operand 1, single buffered']
    %28 = vsyncpa [#allocation3], 0
    %29 = vsyncpa [#allocation6], 0
    %30 = vsyncpa [#allocation9], 0
    %31 = vsyncpa [#allocation4], 0
    // Predicated region
    $region2: #{gmvae_forward.1} parent=1 // pred_check
      _
    $region3: #{gmvae_forward.1} parent=1 // pred_check_branch
      %33 = sbr.rel (0) target = $region5
    $region4: #{gmvae_forward.1} parent=1 // pred_region
      _
    $region5: #{gmvae_forward.1} parent=1 // pred_fallthru
      _
    // Predicated region
    $region6: #{gmvae_forward.1} parent=1 // pred_check
      _
    $region7: #{gmvae_forward.1} parent=1 // pred_check_branch
      %35 = sbr.rel (0) target = $region9
    $region8: #{gmvae_forward.1} parent=1 // pred_region
      _
    $region9: #{gmvae_forward.1} parent=1 // pred_fallthru
      _
    // Predicated region
    $region10: #{gmvae_forward.1} parent=1 // pred_check
      _
    $region11: #{gmvae_forward.1} parent=1 // pred_check_branch
      %37 = sbr.rel (0) target = $region13
    $region12: #{gmvae_forward.1} parent=1 // pred_region
      _
    $region13: #{gmvae_forward.1} parent=1 // pred_fallthru
      _
    // Predicated region
    $region14: #{gmvae_forward.1} parent=1 // pred_check
      _
    $region15: #{gmvae_forward.1} parent=1 // pred_check_branch
      %39 = sbr.rel (0) target = $region17
    $region16: #{gmvae_forward.1} parent=1 // pred_region
      _
    $region17: #{gmvae_forward.1} parent=1 // pred_fallthru
      _
    // Predicated region
    $region18: #{gmvae_forward.1} parent=1 // pred_check
      _
    $region19: #{gmvae_forward.1} parent=1 // pred_check_branch
      %41 = sbr.rel (0) target = $region21
    $region20: #{gmvae_forward.1} parent=1 // pred_region
      %s43 = ssub.s32 16384, 16384
      %44 = vsyncadd [#allocation3], %s43
      %s45 = sshll.u32 [#allocation2], 4
      %s46 = int_to_ptr.vmem [resolvable:$true] %s45
      %51 = dma.hbm_to_vmem [thread:$0]  %s4, 16384, %s46, [#allocation3], 256, 256, 16
    $region21: #{gmvae_forward.1} parent=1 // pred_fallthru
      _
    // Predicated region
    $region22: #{gmvae_forward.1} parent=1 // pred_check
      _
    $region23: #{gmvae_forward.1} parent=1 // pred_check_branch
      %53 = sbr.rel (0) target = $region25
    $region24: #{gmvae_forward.1} parent=1 // pred_region
      _
    $region25: #{gmvae_forward.1} parent=1 // pred_fallthru
      _
    // Predicated region
    $region26: #{gmvae_forward.1} parent=1 // pred_check
      _
    $region27: #{gmvae_forward.1} parent=1 // pred_check_branch
      %55 = sbr.rel (0) target = $region29
    $region28: #{gmvae_forward.1} parent=1 // pred_region
      _
    $region29: #{gmvae_forward.1} parent=1 // pred_fallthru
      _
    // Predicated region
    $region30: #{gmvae_forward.1} parent=1 // pred_check
      _
    $region31: #{gmvae_forward.1} parent=1 // pred_check_branch
      %57 = sbr.rel (0) target = $region33
    $region32: #{gmvae_forward.1} parent=1 // pred_region
      _
    $region33: #{gmvae_forward.1} parent=1 // pred_fallthru
      _
    // Predicated region
    $region34: #{gmvae_forward.1} parent=1 // pred_check
      _
    $region35: #{gmvae_forward.1} parent=1 // pred_check_branch
      %59 = sbr.rel (0) target = $region37
    $region36: #{gmvae_forward.1} parent=1 // pred_region
      _
    $region37: #{gmvae_forward.1} parent=1 // pred_fallthru
      _
    // Predicated region
    $region38: #{gmvae_forward.1} parent=1 // pred_check
      _
    $region39: #{gmvae_forward.1} parent=1 // pred_check_branch
      %61 = sbr.rel (0) target = $region41
    $region40: #{gmvae_forward.1} parent=1 // pred_region
      _
    $region41: #{gmvae_forward.1} parent=1 // pred_fallthru
      _
    // Predicated region
    $region42: #{gmvae_forward.1} parent=1 // pred_check
      _
    $region43: #{gmvae_forward.1} parent=1 // pred_check_branch
      %63 = sbr.rel (0) target = $region45
    $region44: #{gmvae_forward.1} parent=1 // pred_region
      _
    $region45: #{gmvae_forward.1} parent=1 // pred_fallthru
      _
    // Predicated region
    $region46: #{gmvae_forward.1} parent=1 // pred_check
      _
    $region47: #{gmvae_forward.1} parent=1 // pred_check_branch
      %65 = sbr.rel (0) target = $region49
    $region48: #{gmvae_forward.1} parent=1 // pred_region
      %s67 = ssub.s32 16384, 16384
      %68 = vsyncadd [#allocation6], %s67
      %s69 = sshll.u32 [#allocation5], 4
      %s70 = int_to_ptr.vmem [resolvable:$true] %s69
      %75 = dma.hbm_to_vmem [thread:$0]  %s11, 16384, %s70, [#allocation6], 256, 256, 16
    $region49: #{gmvae_forward.1} parent=1 // pred_fallthru
      _
    // Predicated region
    $region50: #{gmvae_forward.1} parent=1 // pred_check
      _
    $region51: #{gmvae_forward.1} parent=1 // pred_check_branch
      %77 = sbr.rel (0) target = $region53
    $region52: #{gmvae_forward.1} parent=1 // pred_region
      _
    $region53: #{gmvae_forward.1} parent=1 // pred_fallthru
      _
    // Predicated region
    $region54: #{gmvae_forward.1} parent=1 // pred_check
      _
    $region55: #{gmvae_forward.1} parent=1 // pred_check_branch
      %79 = sbr.rel (0) target = $region57
    $region56: #{gmvae_forward.1} parent=1 // pred_region
      _
    $region57: #{gmvae_forward.1} parent=1 // pred_fallthru
      _
    // Predicated region
    $region58: #{gmvae_forward.1} parent=1 // pred_check
      _
    $region59: #{gmvae_forward.1} parent=1 // pred_check_branch
      %81 = sbr.rel (0) target = $region61
    $region60: #{gmvae_forward.1} parent=1 // pred_region
      _
    $region61: #{gmvae_forward.1} parent=1 // pred_fallthru
      _
    // Predicated region
    $region62: #{gmvae_forward.1} parent=1 // pred_check
      _
    $region63: #{gmvae_forward.1} parent=1 // pred_check_branch
      %83 = sbr.rel (0) target = $region65
    $region64: #{gmvae_forward.1} parent=1 // pred_region
      _
    $region65: #{gmvae_forward.1} parent=1 // pred_fallthru
      _
    // Predicated region
    $region66: #{gmvae_forward.1} parent=1 // pred_check
      _
    $region67: #{gmvae_forward.1} parent=1 // pred_check_branch
      %85 = sbr.rel (0) target = $region69
    $region68: #{gmvae_forward.1} parent=1 // pred_region
      _
    $region69: #{gmvae_forward.1} parent=1 // pred_fallthru
      _
    // Predicated region
    $region70: #{gmvae_forward.1} parent=1 // pred_check
      _
    $region71: #{gmvae_forward.1} parent=1 // pred_check_branch
      %87 = sbr.rel (0) target = $region73
    $region72: #{gmvae_forward.1} parent=1 // pred_region
      %s89 = ssub.s32 16384, 16384
      %90 = vsyncadd [#allocation6], %s89
      %s91 = sshll.u32 [#allocation7], 4
      %s92 = int_to_ptr.vmem [resolvable:$true] %s91
      %97 = dma.hbm_to_vmem [thread:$0]  %s17, 16384, %s92, [#allocation6], 256, 256, 16
    $region73: #{gmvae_forward.1} parent=1 // pred_fallthru
      _
    // Predicated region
    $region74: #{gmvae_forward.1} parent=1 // pred_check
      _
    $region75: #{gmvae_forward.1} parent=1 // pred_check_branch
      %99 = sbr.rel (0) target = $region77
    $region76: #{gmvae_forward.1} parent=1 // pred_region
      _
    $region77: #{gmvae_forward.1} parent=1 // pred_fallthru
      _
    // Predicated region
    $region78: #{gmvae_forward.1} parent=1 // pred_check
      _
    $region79: #{gmvae_forward.1} parent=1 // pred_check_branch
      %101 = sbr.rel (0) target = $region81
    $region80: #{gmvae_forward.1} parent=1 // pred_region
      %s103 = ssub.s32 4096, 4096
      %104 = vsyncadd [#allocation9], %s103
      %s105 = sshll.u32 [#allocation8], 4
      %s106 = int_to_ptr.vmem [resolvable:$true] %s105
      %111 = dma.hbm_to_vmem [thread:$0]  %s19, 4096, %s106, [#allocation9], 64, 64, 4
    $region81: #{gmvae_forward.1} parent=1 // pred_fallthru
      _
    // Predicated region
    $region82: #{gmvae_forward.1} parent=1 // pred_check
      _
    $region83: #{gmvae_forward.1} parent=1 // pred_check_branch
      %113 = sbr.rel (0) target = $region85
    $region84: #{gmvae_forward.1} parent=1 // pred_region
      _
    $region85: #{gmvae_forward.1} parent=1 // pred_fallthru
      _
    // Predicated region
    $region86: #{gmvae_forward.1} parent=1 // pred_check
      _
    $region87: #{gmvae_forward.1} parent=1 // pred_check_branch
      %115 = sbr.rel (0) target = $region89
    $region88: #{gmvae_forward.1} parent=1 // pred_region
      %116 = dma.done [#allocation3], 16384
    $region89: #{gmvae_forward.1} parent=1 // pred_fallthru
      _
    // Predicated region
    $region90: #{gmvae_forward.1} parent=1 // pred_check
      _
    $region91: #{gmvae_forward.1} parent=1 // pred_check_branch
      %118 = sbr.rel (0) target = $region93
    $region92: #{gmvae_forward.1} parent=1 // pred_region
      %119 = dma.done [#allocation6], 16384
    $region93: #{gmvae_forward.1} parent=1 // pred_fallthru
      _
    // Predicated region
    $region94: #{gmvae_forward.1} parent=1 // pred_check
      _
    $region95: #{gmvae_forward.1} parent=1 // pred_check_branch
      %121 = sbr.rel (0) target = $region97
    $region96: #{gmvae_forward.1} parent=1 // pred_region
      %122 = dma.done [#allocation6], 16384
    $region97: #{gmvae_forward.1} parent=1 // pred_fallthru
      _
    // Predicated region
    $region98: #{gmvae_forward.1} parent=1 // pred_check
      _
    $region99: #{gmvae_forward.1} parent=1 // pred_check_branch
      %124 = sbr.rel (0) target = $region101
    $region100: #{gmvae_forward.1} parent=1 // pred_region
      %125 = dma.done [#allocation9], 4096
    $region101: #{gmvae_forward.1} parent=1 // pred_fallthru
      _
    %v127 = vld [vmem:[%s0] sm:$0xf]
    %v128 = vld [vmem:[%s1] sm:$0xff]
    %v129 = vld [vmem:[%s1 + $0x8] sm:$0xff]
    %v130 = vld [vmem:[%s2] sm:$0xff]
    %v131 = vld [vmem:[%s2 + $0x8] sm:$0xff]
    %v132 = vld [vmem:[%s2 + $0x10] sm:$0xff]
    %v133 = vld [vmem:[%s2 + $0x18] sm:$0xff]
    %v134 = vld [vmem:[%s2 + $0x20] sm:$0xff]
    %v135 = vld [vmem:[%s2 + $0x28] sm:$0xff]
    %v136 = vld [vmem:[%s2 + $0x30] sm:$0xff]
    %v137 = vld [vmem:[%s2 + $0x38] sm:$0xff]
    %v138 = vld [vmem:[%s2 + $0x40] sm:$0xff]
    %v139 = vld [vmem:[%s2 + $0x48] sm:$0xff]
    %v140 = vld [vmem:[%s2 + $0x50] sm:$0xff]
    %v141 = vld [vmem:[%s2 + $0x58] sm:$0xff]
    %v142 = vld [vmem:[%s2 + $0x60] sm:$0xff]
    %v143 = vld [vmem:[%s2 + $0x68] sm:$0xff]
    %v144 = vld [vmem:[%s2 + $0x70] sm:$0xff]
    %v145 = vld [vmem:[%s2 + $0x78] sm:$0xff]
    %v146 = vld [vmem:[%s2 + $0x80] sm:$0xff]
    %v147 = vld [vmem:[%s2 + $0x88] sm:$0xff]
    %v148 = vld [vmem:[%s2 + $0x90] sm:$0xff]
    %v149 = vld [vmem:[%s2 + $0x98] sm:$0xff]
    %v150 = vld [vmem:[%s2 + $0xa0] sm:$0xff]
    %v151 = vld [vmem:[%s2 + $0xa8] sm:$0xff]
    %v152 = vld [vmem:[%s2 + $0xb0] sm:$0xff]
    %v153 = vld [vmem:[%s2 + $0xb8] sm:$0xff]
    %v154 = vld [vmem:[%s2 + $0xc0] sm:$0xff]
    %v155 = vld [vmem:[%s2 + $0xc8] sm:$0xff]
    %v156 = vld [vmem:[%s2 + $0xd0] sm:$0xff]
    %v157 = vld [vmem:[%s2 + $0xd8] sm:$0xff]
    %v158 = vld [vmem:[%s2 + $0xe0] sm:$0xff]
    %v159 = vld [vmem:[%s2 + $0xe8] sm:$0xff]
    %v160 = vld [vmem:[%s2 + $0xf0] sm:$0xff]
    %v161 = vld [vmem:[%s2 + $0xf8] sm:$0xff]
    %v162 = vld [vmem:[%s2 + $0x100] sm:$0xff]
    %v163 = vld [vmem:[%s2 + $0x108] sm:$0xff]
    %v164 = vld [vmem:[%s2 + $0x110] sm:$0xff]
    %v165 = vld [vmem:[%s2 + $0x118] sm:$0xff]
    %v166 = vld [vmem:[%s2 + $0x120] sm:$0xff]
    %v167 = vld [vmem:[%s2 + $0x128] sm:$0xff]
    %v168 = vld [vmem:[%s2 + $0x130] sm:$0xff]
    %v169 = vld [vmem:[%s2 + $0x138] sm:$0xff]
    %v170 = vld [vmem:[%s2 + $0x140] sm:$0xff]
    %v171 = vld [vmem:[%s2 + $0x148] sm:$0xff]
    %v172 = vld [vmem:[%s2 + $0x150] sm:$0xff]
    %v173 = vld [vmem:[%s2 + $0x158] sm:$0xff]
    %v174 = vld [vmem:[%s2 + $0x160] sm:$0xff]
    %v175 = vld [vmem:[%s2 + $0x168] sm:$0xff]
    %v176 = vld [vmem:[%s2 + $0x170] sm:$0xff]
    %v177 = vld [vmem:[%s2 + $0x178] sm:$0xff]
    %v178 = vld [vmem:[%s2 + $0x180] sm:$0xff]
    %v179 = vld [vmem:[%s2 + $0x188] sm:$0xff]
    %v180 = vld [vmem:[%s2 + $0x190] sm:$0xff]
    %v181 = vld [vmem:[%s2 + $0x198] sm:$0xff]
    %v182 = vld [vmem:[%s2 + $0x1a0] sm:$0xff]
    %v183 = vld [vmem:[%s2 + $0x1a8] sm:$0xff]
    %v184 = vld [vmem:[%s2 + $0x1b0] sm:$0xff]
    %v185 = vld [vmem:[%s2 + $0x1b8] sm:$0xff]
    %v186 = vld [vmem:[%s2 + $0x1c0] sm:$0xff]
    %v187 = vld [vmem:[%s2 + $0x1c8] sm:$0xff]
    %v188 = vld [vmem:[%s2 + $0x1d0] sm:$0xff]
    %v189 = vld [vmem:[%s2 + $0x1d8] sm:$0xff]
    %v190 = vld [vmem:[%s2 + $0x1e0] sm:$0xff]
    %v191 = vld [vmem:[%s2 + $0x1e8] sm:$0xff]
    %v192 = vld [vmem:[%s2 + $0x1f0] sm:$0xff]
    %v193 = vld [vmem:[%s2 + $0x1f8] sm:$0xff]
    %v258 = vunpack.c.l.b16 %v130
    %v259 = vunpack.c.h.b16 %v130
    %v260 = vunpack.c.l.b16 %v131
    %v261 = vunpack.c.h.b16 %v131
    %v262 = vunpack.c.l.b16 %v132
    %v263 = vunpack.c.h.b16 %v132
    %v264 = vunpack.c.l.b16 %v133
    %v265 = vunpack.c.h.b16 %v133
    %v266 = vunpack.c.l.b16 %v134
    %v267 = vunpack.c.h.b16 %v134
    %v268 = vunpack.c.l.b16 %v135
    %v269 = vunpack.c.h.b16 %v135
    %v270 = vunpack.c.l.b16 %v136
    %v271 = vunpack.c.h.b16 %v136
    %v272 = vunpack.c.l.b16 %v137
    %v273 = vunpack.c.h.b16 %v137
    %v274 = vunpack.c.l.b16 %v138
    %v275 = vunpack.c.h.b16 %v138
    %v276 = vunpack.c.l.b16 %v139
    %v277 = vunpack.c.h.b16 %v139
    %v278 = vunpack.c.l.b16 %v140
    %v279 = vunpack.c.h.b16 %v140
    %v280 = vunpack.c.l.b16 %v141
    %v281 = vunpack.c.h.b16 %v141
    %v282 = vunpack.c.l.b16 %v142
    %v283 = vunpack.c.h.b16 %v142
    %v284 = vunpack.c.l.b16 %v143
    %v285 = vunpack.c.h.b16 %v143
    %v286 = vunpack.c.l.b16 %v144
    %v287 = vunpack.c.h.b16 %v144
    %v288 = vunpack.c.l.b16 %v145
    %v289 = vunpack.c.h.b16 %v145
    %v290 = vunpack.c.l.b16 %v146
    %v291 = vunpack.c.h.b16 %v146
    %v292 = vunpack.c.l.b16 %v147
    %v293 = vunpack.c.h.b16 %v147
    %v294 = vunpack.c.l.b16 %v148
    %v295 = vunpack.c.h.b16 %v148
    %v296 = vunpack.c.l.b16 %v149
    %v297 = vunpack.c.h.b16 %v149
    %v298 = vunpack.c.l.b16 %v150
    %v299 = vunpack.c.h.b16 %v150
    %v300 = vunpack.c.l.b16 %v151
    %v301 = vunpack.c.h.b16 %v151
    %v302 = vunpack.c.l.b16 %v152
    %v303 = vunpack.c.h.b16 %v152
    %v304 = vunpack.c.l.b16 %v153
    %v305 = vunpack.c.h.b16 %v153
    %v306 = vunpack.c.l.b16 %v154
    %v307 = vunpack.c.h.b16 %v154
    %v308 = vunpack.c.l.b16 %v155
    %v309 = vunpack.c.h.b16 %v155
    %v310 = vunpack.c.l.b16 %v156
    %v311 = vunpack.c.h.b16 %v156
    %v312 = vunpack.c.l.b16 %v157
    %v313 = vunpack.c.h.b16 %v157
    %v314 = vunpack.c.l.b16 %v158
    %v315 = vunpack.c.h.b16 %v158
    %v316 = vunpack.c.l.b16 %v159
    %v317 = vunpack.c.h.b16 %v159
    %v318 = vunpack.c.l.b16 %v160
    %v319 = vunpack.c.h.b16 %v160
    %v320 = vunpack.c.l.b16 %v161
    %v321 = vunpack.c.h.b16 %v161
    %v322 = vunpack.c.l.b16 %v162
    %v323 = vunpack.c.h.b16 %v162
    %v324 = vunpack.c.l.b16 %v163
    %v325 = vunpack.c.h.b16 %v163
    %v326 = vunpack.c.l.b16 %v164
    %v327 = vunpack.c.h.b16 %v164
    %v328 = vunpack.c.l.b16 %v165
    %v329 = vunpack.c.h.b16 %v165
    %v330 = vunpack.c.l.b16 %v166
    %v331 = vunpack.c.h.b16 %v166
    %v332 = vunpack.c.l.b16 %v167
    %v333 = vunpack.c.h.b16 %v167
    %v334 = vunpack.c.l.b16 %v168
    %v335 = vunpack.c.h.b16 %v168
    %v336 = vunpack.c.l.b16 %v169
    %v337 = vunpack.c.h.b16 %v169
    %v338 = vunpack.c.l.b16 %v170
    %v339 = vunpack.c.h.b16 %v170
    %v340 = vunpack.c.l.b16 %v171
    %v341 = vunpack.c.h.b16 %v171
    %v342 = vunpack.c.l.b16 %v172
    %v343 = vunpack.c.h.b16 %v172
    %v344 = vunpack.c.l.b16 %v173
    %v345 = vunpack.c.h.b16 %v173
    %v346 = vunpack.c.l.b16 %v174
    %v347 = vunpack.c.h.b16 %v174
    %v348 = vunpack.c.l.b16 %v175
    %v349 = vunpack.c.h.b16 %v175
    %v350 = vunpack.c.l.b16 %v176
    %v351 = vunpack.c.h.b16 %v176
    %v352 = vunpack.c.l.b16 %v177
    %v353 = vunpack.c.h.b16 %v177
    %v354 = vunpack.c.l.b16 %v178
    %v355 = vunpack.c.h.b16 %v178
    %v356 = vunpack.c.l.b16 %v179
    %v357 = vunpack.c.h.b16 %v179
    %v358 = vunpack.c.l.b16 %v180
    %v359 = vunpack.c.h.b16 %v180
    %v360 = vunpack.c.l.b16 %v181
    %v361 = vunpack.c.h.b16 %v181
    %v362 = vunpack.c.l.b16 %v182
    %v363 = vunpack.c.h.b16 %v182
    %v364 = vunpack.c.l.b16 %v183
    %v365 = vunpack.c.h.b16 %v183
    %v366 = vunpack.c.l.b16 %v184
    %v367 = vunpack.c.h.b16 %v184
    %v368 = vunpack.c.l.b16 %v185
    %v369 = vunpack.c.h.b16 %v185
    %v370 = vunpack.c.l.b16 %v186
    %v371 = vunpack.c.h.b16 %v186
    %v372 = vunpack.c.l.b16 %v187
    %v373 = vunpack.c.h.b16 %v187
    %v374 = vunpack.c.l.b16 %v188
    %v375 = vunpack.c.h.b16 %v188
    %v376 = vunpack.c.l.b16 %v189
    %v377 = vunpack.c.h.b16 %v189
    %v378 = vunpack.c.l.b16 %v190
    %v379 = vunpack.c.h.b16 %v190
    %v380 = vunpack.c.l.b16 %v191
    %v381 = vunpack.c.h.b16 %v191
    %v382 = vunpack.c.l.b16 %v192
    %v383 = vunpack.c.h.b16 %v192
    %v384 = vunpack.c.l.b16 %v193
    %v385 = vunpack.c.h.b16 %v193
    %v386 = vpack.c.b16 %v266, %v258
    %v387 = vpack.c.b16 %v267, %v259
    %v388 = vpack.c.b16 %v268, %v260
    %v389 = vpack.c.b16 %v269, %v261
    %v390 = vpack.c.b16 %v270, %v262
    %v391 = vpack.c.b16 %v271, %v263
    %v392 = vpack.c.b16 %v272, %v264
    %v393 = vpack.c.b16 %v273, %v265
    %v394 = vpack.c.b16 %v282, %v274
    %v395 = vpack.c.b16 %v283, %v275
    %v396 = vpack.c.b16 %v284, %v276
    %v397 = vpack.c.b16 %v285, %v277
    %v398 = vpack.c.b16 %v286, %v278
    %v399 = vpack.c.b16 %v287, %v279
    %v400 = vpack.c.b16 %v288, %v280
    %v401 = vpack.c.b16 %v289, %v281
    %v402 = vpack.c.b16 %v298, %v290
    %v403 = vpack.c.b16 %v299, %v291
    %v404 = vpack.c.b16 %v300, %v292
    %v405 = vpack.c.b16 %v301, %v293
    %v406 = vpack.c.b16 %v302, %v294
    %v407 = vpack.c.b16 %v303, %v295
    %v408 = vpack.c.b16 %v304, %v296
    %v409 = vpack.c.b16 %v305, %v297
    %v410 = vpack.c.b16 %v314, %v306
    %v411 = vpack.c.b16 %v315, %v307
    %v412 = vpack.c.b16 %v316, %v308
    %v413 = vpack.c.b16 %v317, %v309
    %v414 = vpack.c.b16 %v318, %v310
    %v415 = vpack.c.b16 %v319, %v311
    %v416 = vpack.c.b16 %v320, %v312
    %v417 = vpack.c.b16 %v321, %v313
    %v418 = vpack.c.b16 %v330, %v322
    %v419 = vpack.c.b16 %v331, %v323
    %v420 = vpack.c.b16 %v332, %v324
    %v421 = vpack.c.b16 %v333, %v325
    %v422 = vpack.c.b16 %v334, %v326
    %v423 = vpack.c.b16 %v335, %v327
    %v424 = vpack.c.b16 %v336, %v328
    %v425 = vpack.c.b16 %v337, %v329
    %v426 = vpack.c.b16 %v346, %v338
    %v427 = vpack.c.b16 %v347, %v339
    %v428 = vpack.c.b16 %v348, %v340
    %v429 = vpack.c.b16 %v349, %v341
    %v430 = vpack.c.b16 %v350, %v342
    %v431 = vpack.c.b16 %v351, %v343
    %v432 = vpack.c.b16 %v352, %v344
    %v433 = vpack.c.b16 %v353, %v345
    %v434 = vpack.c.b16 %v362, %v354
    %v435 = vpack.c.b16 %v363, %v355
    %v436 = vpack.c.b16 %v364, %v356
    %v437 = vpack.c.b16 %v365, %v357
    %v438 = vpack.c.b16 %v366, %v358
    %v439 = vpack.c.b16 %v367, %v359
    %v440 = vpack.c.b16 %v368, %v360
    %v441 = vpack.c.b16 %v369, %v361
    %v442 = vpack.c.b16 %v378, %v370
    %v443 = vpack.c.b16 %v379, %v371
    %v444 = vpack.c.b16 %v380, %v372
    %v445 = vpack.c.b16 %v381, %v373
    %v446 = vpack.c.b16 %v382, %v374
    %v447 = vpack.c.b16 %v383, %v375
    %v448 = vpack.c.b16 %v384, %v376
    %v449 = vpack.c.b16 %v385, %v377
    %514 = vmatprep.subr.bf16.mxu0 %v387
    %515 = vmatpush1.bf16.msra.mxu0 %v386
    %516 = vmatprep.subr.bf16.mxu0 %v395
    %517 = vmatpush1.bf16.msra.mxu0 %v394
    %518 = vmatprep.subr.bf16.mxu0 %v403
    %519 = vmatpush1.bf16.msra.mxu0 %v402
    %520 = vmatprep.subr.bf16.mxu0 %v411
    %521 = vmatpush1.bf16.msra.mxu0 %v410
    %522 = vmatprep.subr.bf16.mxu0 %v419
    %523 = vmatpush1.bf16.msra.mxu0 %v418
    %524 = vmatprep.subr.bf16.mxu0 %v427
    %525 = vmatpush1.bf16.msra.mxu0 %v426
    %526 = vmatprep.subr.bf16.mxu0 %v435
    %527 = vmatpush1.bf16.msra.mxu0 %v434
    %528 = vmatprep.subr.bf16.mxu0 %v443
    %529 = vmatpush1.bf16.msra.mxu0 %v442
    %530 = vmatprep.subr.bf16.mxu0 0
    %531 = vmatpush1.bf16.msra.mxu0 0
    %532 = vmatprep.subr.bf16.mxu0 0
    %533 = vmatpush1.bf16.msra.mxu0 0
    %534 = vmatprep.subr.bf16.mxu0 0
    %535 = vmatpush1.bf16.msra.mxu0 0
    %536 = vmatprep.subr.bf16.mxu0 0
    %537 = vmatpush1.bf16.msra.mxu0 0
    %538 = vmatprep.subr.bf16.mxu0 0
    %539 = vmatpush1.bf16.msra.mxu0 0
    %540 = vmatprep.subr.bf16.mxu0 0
    %541 = vmatpush1.bf16.msra.mxu0 0
    %542 = vmatprep.subr.bf16.mxu0 0
    %543 = vmatpush1.bf16.msra.mxu0 0
    %544 = vmatprep.subr.bf16.mxu0 0
    %545 = vmatpush1.bf16.msra.mxu0 0
    %546 = vmatprep.mubr.bf16.mxu0 0
    %547 = vmatmul.mubr.bf16.gmra.mrb[0].mxu0 %v127
    %v548 = vpop.f32.mrb[0].mxu0
    %v549 = vadd.f32 0.0, %v548
    %v550 = vpop.f32.mrb[0].mxu0
    %v551 = vadd.f32 0.0, %v550
    %v552 = vpop.f32.mrb[0].mxu0
    %v553 = vpop.f32.mrb[0].mxu0
    %554 = vdwg.mxu0
    %555 = vmatprep.subr.bf16.mxu0 %v389
    %556 = vmatpush1.bf16.msra.mxu0 %v388
    %557 = vmatprep.subr.bf16.mxu0 %v397
    %558 = vmatpush1.bf16.msra.mxu0 %v396
    %559 = vmatprep.subr.bf16.mxu0 %v405
    %560 = vmatpush1.bf16.msra.mxu0 %v404
    %561 = vmatprep.subr.bf16.mxu0 %v413
    %562 = vmatpush1.bf16.msra.mxu0 %v412
    %563 = vmatprep.subr.bf16.mxu0 %v421
    %564 = vmatpush1.bf16.msra.mxu0 %v420
    %565 = vmatprep.subr.bf16.mxu0 %v429
    %566 = vmatpush1.bf16.msra.mxu0 %v428
    %567 = vmatprep.subr.bf16.mxu0 %v437
    %568 = vmatpush1.bf16.msra.mxu0 %v436
    %569 = vmatprep.subr.bf16.mxu0 %v445
    %570 = vmatpush1.bf16.msra.mxu0 %v444
    %571 = vmatprep.subr.bf16.mxu0 0
    %572 = vmatpush1.bf16.msra.mxu0 0
    %573 = vmatprep.subr.bf16.mxu0 0
    %574 = vmatpush1.bf16.msra.mxu0 0
    %575 = vmatprep.subr.bf16.mxu0 0
    %576 = vmatpush1.bf16.msra.mxu0 0
    %577 = vmatprep.subr.bf16.mxu0 0
    %578 = vmatpush1.bf16.msra.mxu0 0
    %579 = vmatprep.subr.bf16.mxu0 0
    %580 = vmatpush1.bf16.msra.mxu0 0
    %581 = vmatprep.subr.bf16.mxu0 0
    %582 = vmatpush1.bf16.msra.mxu0 0
    %583 = vmatprep.subr.bf16.mxu0 0
    %584 = vmatpush1.bf16.msra.mxu0 0
    %585 = vmatprep.subr.bf16.mxu0 0
    %586 = vmatpush1.bf16.msra.mxu0 0
    %587 = vmatprep.mubr.bf16.mxu0 0
    %588 = vmatmul.mubr.bf16.gmra.mrb[0].mxu0 %v127
    %v589 = vpop.f32.mrb[0].mxu0
    %v590 = vadd.f32 0.0, %v589
    %v591 = vpop.f32.mrb[0].mxu0
    %v592 = vadd.f32 0.0, %v591
    %v593 = vpop.f32.mrb[0].mxu0
    %v594 = vpop.f32.mrb[0].mxu0
    %595 = vdwg.mxu0
    %596 = vmatprep.subr.bf16.mxu0 %v391
    %597 = vmatpush1.bf16.msra.mxu0 %v390
    %598 = vmatprep.subr.bf16.mxu0 %v399
    %599 = vmatpush1.bf16.msra.mxu0 %v398
    %600 = vmatprep.subr.bf16.mxu0 %v407
    %601 = vmatpush1.bf16.msra.mxu0 %v406
    %602 = vmatprep.subr.bf16.mxu0 %v415
    %603 = vmatpush1.bf16.msra.mxu0 %v414
    %604 = vmatprep.subr.bf16.mxu0 %v423
    %605 = vmatpush1.bf16.msra.mxu0 %v422
    %606 = vmatprep.subr.bf16.mxu0 %v431
    %607 = vmatpush1.bf16.msra.mxu0 %v430
    %608 = vmatprep.subr.bf16.mxu0 %v439
    %609 = vmatpush1.bf16.msra.mxu0 %v438
    %610 = vmatprep.subr.bf16.mxu0 %v447
    %611 = vmatpush1.bf16.msra.mxu0 %v446
    %612 = vmatprep.subr.bf16.mxu0 0
    %613 = vmatpush1.bf16.msra.mxu0 0
    %614 = vmatprep.subr.bf16.mxu0 0
    %615 = vmatpush1.bf16.msra.mxu0 0
    %616 = vmatprep.subr.bf16.mxu0 0
    %617 = vmatpush1.bf16.msra.mxu0 0
    %618 = vmatprep.subr.bf16.mxu0 0
    %619 = vmatpush1.bf16.msra.mxu0 0
    %620 = vmatprep.subr.bf16.mxu0 0
    %621 = vmatpush1.bf16.msra.mxu0 0
    %622 = vmatprep.subr.bf16.mxu0 0
    %623 = vmatpush1.bf16.msra.mxu0 0
    %624 = vmatprep.subr.bf16.mxu0 0
    %625 = vmatpush1.bf16.msra.mxu0 0
    %626 = vmatprep.subr.bf16.mxu0 0
    %627 = vmatpush1.bf16.msra.mxu0 0
    %628 = vmatprep.mubr.bf16.mxu0 0
    %629 = vmatmul.mubr.bf16.gmra.mrb[0].mxu0 %v127
    %v630 = vpop.f32.mrb[0].mxu0
    %v631 = vadd.f32 0.0, %v630
    %v632 = vpop.f32.mrb[0].mxu0
    %v633 = vadd.f32 0.0, %v632
    %v634 = vpop.f32.mrb[0].mxu0
    %v635 = vpop.f32.mrb[0].mxu0
    %636 = vdwg.mxu0
    %637 = vmatprep.subr.bf16.mxu0 %v393
    %638 = vmatpush1.bf16.msra.mxu0 %v392
    %639 = vmatprep.subr.bf16.mxu0 %v401
    %640 = vmatpush1.bf16.msra.mxu0 %v400
    %641 = vmatprep.subr.bf16.mxu0 %v409
    %642 = vmatpush1.bf16.msra.mxu0 %v408
    %643 = vmatprep.subr.bf16.mxu0 %v417
    %644 = vmatpush1.bf16.msra.mxu0 %v416
    %645 = vmatprep.subr.bf16.mxu0 %v425
    %646 = vmatpush1.bf16.msra.mxu0 %v424
    %647 = vmatprep.subr.bf16.mxu0 %v433
    %648 = vmatpush1.bf16.msra.mxu0 %v432
    %649 = vmatprep.subr.bf16.mxu0 %v441
    %650 = vmatpush1.bf16.msra.mxu0 %v440
    %651 = vmatprep.subr.bf16.mxu0 %v449
    %652 = vmatpush1.bf16.msra.mxu0 %v448
    %653 = vmatprep.subr.bf16.mxu0 0
    %654 = vmatpush1.bf16.msra.mxu0 0
    %655 = vmatprep.subr.bf16.mxu0 0
    %656 = vmatpush1.bf16.msra.mxu0 0
    %657 = vmatprep.subr.bf16.mxu0 0
    %658 = vmatpush1.bf16.msra.mxu0 0
    %659 = vmatprep.subr.bf16.mxu0 0
    %660 = vmatpush1.bf16.msra.mxu0 0
    %661 = vmatprep.subr.bf16.mxu0 0
    %662 = vmatpush1.bf16.msra.mxu0 0
    %663 = vmatprep.subr.bf16.mxu0 0
    %664 = vmatpush1.bf16.msra.mxu0 0
    %665 = vmatprep.subr.bf16.mxu0 0
    %666 = vmatpush1.bf16.msra.mxu0 0
    %667 = vmatprep.subr.bf16.mxu0 0
    %668 = vmatpush1.bf16.msra.mxu0 0
    %669 = vmatprep.mubr.bf16.mxu0 0
    %670 = vmatmul.mubr.bf16.gmra.mrb[0].mxu0 %v127
    %v671 = vpop.f32.mrb[0].mxu0
    %v672 = vadd.f32 0.0, %v671
    %v673 = vpop.f32.mrb[0].mxu0
    %v674 = vadd.f32 0.0, %v673
    %v675 = vpop.f32.mrb[0].mxu0
    %v676 = vpop.f32.mrb[0].mxu0
    %677 = vdwg.mxu0
    %v678 = vld [vmem:[%s3] sm:$0xf]
    %v680 = vlaneseq
    %v681 = vshrl.u32 %v680, 7
    %v682 = vsub.s32 0, %v681
    %v683 = vrot.slane %v678, %v682
    %v684 = vlaneseq
    %v685 = vshrl.u32 %v684, 7
    %v686 = vsub.s32 1, %v685
    %v687 = vrot.slane %v678, %v686
    %v688 = vlaneseq
    %v689 = vshrl.u32 %v688, 7
    %v690 = vsub.s32 2, %v689
    %v691 = vrot.slane %v678, %v690
    %v692 = vlaneseq
    %v693 = vshrl.u32 %v692, 7
    %v694 = vsub.s32 3, %v693
    %v695 = vrot.slane %v678, %v694
    %v700 = vadd.f32 %v549, %v683
    %v701 = vadd.f32 %v551, %v687
    %v702 = vadd.f32 %v590, %v691
    %v703 = vadd.f32 %v592, %v695
    %v704 = vmax.f32 %v700, 0.0
    %v705 = vmax.f32 %v701, 0.0
    %v706 = vmax.f32 %v702, 0.0
    %v707 = vmax.f32 %v703, 0.0
    %v708 = vpack.c.bf16 %v704, %v704
    %v709 = vpack.c.bf16 %v705, %v705
    %v710 = vpack.c.bf16 %v706, %v706
    %v711 = vpack.c.bf16 %v707, %v707
    %v712 = vld [vmem:[#allocation2] sm:$0xff]
    %v713 = vld [vmem:[#allocation2 + $0x8] sm:$0xff]
    %v714 = vld [vmem:[#allocation2 + $0x10] sm:$0xff]
    %v715 = vld [vmem:[#allocation2 + $0x18] sm:$0xff]
    %v716 = vld [vmem:[#allocation2 + $0x20] sm:$0xff]
    %v717 = vld [vmem:[#allocation2 + $0x28] sm:$0xff]
    %v718 = vld [vmem:[#allocation2 + $0x30] sm:$0xff]
    %v719 = vld [vmem:[#allocation2 + $0x38] sm:$0xff]
    %v720 = vld [vmem:[#allocation2 + $0x40] sm:$0xff]
    %v721 = vld [vmem:[#allocation2 + $0x48] sm:$0xff]
    %v722 = vld [vmem:[#allocation2 + $0x50] sm:$0xff]
    %v723 = vld [vmem:[#allocation2 + $0x58] sm:$0xff]
    %v724 = vld [vmem:[#allocation2 + $0x60] sm:$0xff]
    %v725 = vld [vmem:[#allocation2 + $0x68] sm:$0xff]
    %v726 = vld [vmem:[#allocation2 + $0x70] sm:$0xff]
    %v727 = vld [vmem:[#allocation2 + $0x78] sm:$0xff]
    %v728 = vld [vmem:[#allocation2 + $0x80] sm:$0xff]
    %v729 = vld [vmem:[#allocation2 + $0x88] sm:$0xff]
    %v730 = vld [vmem:[#allocation2 + $0x90] sm:$0xff]
    %v731 = vld [vmem:[#allocation2 + $0x98] sm:$0xff]
    %v732 = vld [vmem:[#allocation2 + $0xa0] sm:$0xff]
    %v733 = vld [vmem:[#allocation2 + $0xa8] sm:$0xff]
    %v734 = vld [vmem:[#allocation2 + $0xb0] sm:$0xff]
    %v735 = vld [vmem:[#allocation2 + $0xb8] sm:$0xff]
    %v736 = vld [vmem:[#allocation2 + $0xc0] sm:$0xff]
    %v737 = vld [vmem:[#allocation2 + $0xc8] sm:$0xff]
    %v738 = vld [vmem:[#allocation2 + $0xd0] sm:$0xff]
    %v739 = vld [vmem:[#allocation2 + $0xd8] sm:$0xff]
    %v740 = vld [vmem:[#allocation2 + $0xe0] sm:$0xff]
    %v741 = vld [vmem:[#allocation2 + $0xe8] sm:$0xff]
    %v742 = vld [vmem:[#allocation2 + $0xf0] sm:$0xff]
    %v743 = vld [vmem:[#allocation2 + $0xf8] sm:$0xff]
    %v744 = vld [vmem:[#allocation2 + $0x100] sm:$0xff]
    %v745 = vld [vmem:[#allocation2 + $0x108] sm:$0xff]
    %v746 = vld [vmem:[#allocation2 + $0x110] sm:$0xff]
    %v747 = vld [vmem:[#allocation2 + $0x118] sm:$0xff]
    %v748 = vld [vmem:[#allocation2 + $0x120] sm:$0xff]
    %v749 = vld [vmem:[#allocation2 + $0x128] sm:$0xff]
    %v750 = vld [vmem:[#allocation2 + $0x130] sm:$0xff]
    %v751 = vld [vmem:[#allocation2 + $0x138] sm:$0xff]
    %v752 = vld [vmem:[#allocation2 + $0x140] sm:$0xff]
    %v753 = vld [vmem:[#allocation2 + $0x148] sm:$0xff]
    %v754 = vld [vmem:[#allocation2 + $0x150] sm:$0xff]
    %v755 = vld [vmem:[#allocation2 + $0x158] sm:$0xff]
    %v756 = vld [vmem:[#allocation2 + $0x160] sm:$0xff]
    %v757 = vld [vmem:[#allocation2 + $0x168] sm:$0xff]
    %v758 = vld [vmem:[#allocation2 + $0x170] sm:$0xff]
    %v759 = vld [vmem:[#allocation2 + $0x178] sm:$0xff]
    %v760 = vld [vmem:[#allocation2 + $0x180] sm:$0xff]
    %v761 = vld [vmem:[#allocation2 + $0x188] sm:$0xff]
    %v762 = vld [vmem:[#allocation2 + $0x190] sm:$0xff]
    %v763 = vld [vmem:[#allocation2 + $0x198] sm:$0xff]
    %v764 = vld [vmem:[#allocation2 + $0x1a0] sm:$0xff]
    %v765 = vld [vmem:[#allocation2 + $0x1a8] sm:$0xff]
    %v766 = vld [vmem:[#allocation2 + $0x1b0] sm:$0xff]
    %v767 = vld [vmem:[#allocation2 + $0x1b8] sm:$0xff]
    %v768 = vld [vmem:[#allocation2 + $0x1c0] sm:$0xff]
    %v769 = vld [vmem:[#allocation2 + $0x1c8] sm:$0xff]
    %v770 = vld [vmem:[#allocation2 + $0x1d0] sm:$0xff]
    %v771 = vld [vmem:[#allocation2 + $0x1d8] sm:$0xff]
    %v772 = vld [vmem:[#allocation2 + $0x1e0] sm:$0xff]
    %v773 = vld [vmem:[#allocation2 + $0x1e8] sm:$0xff]
    %v774 = vld [vmem:[#allocation2 + $0x1f0] sm:$0xff]
    %v775 = vld [vmem:[#allocation2 + $0x1f8] sm:$0xff]
    %v776 = vld [vmem:[#allocation2 + $0x200] sm:$0xff]
    %v777 = vld [vmem:[#allocation2 + $0x208] sm:$0xff]
    %v778 = vld [vmem:[#allocation2 + $0x210] sm:$0xff]
    %v779 = vld [vmem:[#allocation2 + $0x218] sm:$0xff]
    %v780 = vld [vmem:[#allocation2 + $0x220] sm:$0xff]
    %v781 = vld [vmem:[#allocation2 + $0x228] sm:$0xff]
    %v782 = vld [vmem:[#allocation2 + $0x230] sm:$0xff]
    %v783 = vld [vmem:[#allocation2 + $0x238] sm:$0xff]
    %v784 = vld [vmem:[#allocation2 + $0x240] sm:$0xff]
    %v785 = vld [vmem:[#allocation2 + $0x248] sm:$0xff]
    %v786 = vld [vmem:[#allocation2 + $0x250] sm:$0xff]
    %v787 = vld [vmem:[#allocation2 + $0x258] sm:$0xff]
    %v788 = vld [vmem:[#allocation2 + $0x260] sm:$0xff]
    %v789 = vld [vmem:[#allocation2 + $0x268] sm:$0xff]
    %v790 = vld [vmem:[#allocation2 + $0x270] sm:$0xff]
    %v791 = vld [vmem:[#allocation2 + $0x278] sm:$0xff]
    %v792 = vld [vmem:[#allocation2 + $0x280] sm:$0xff]
    %v793 = vld [vmem:[#allocation2 + $0x288] sm:$0xff]
    %v794 = vld [vmem:[#allocation2 + $0x290] sm:$0xff]
    %v795 = vld [vmem:[#allocation2 + $0x298] sm:$0xff]
    %v796 = vld [vmem:[#allocation2 + $0x2a0] sm:$0xff]
    %v797 = vld [vmem:[#allocation2 + $0x2a8] sm:$0xff]
    %v798 = vld [vmem:[#allocation2 + $0x2b0] sm:$0xff]
    %v799 = vld [vmem:[#allocation2 + $0x2b8] sm:$0xff]
    %v800 = vld [vmem:[#allocation2 + $0x2c0] sm:$0xff]
    %v801 = vld [vmem:[#allocation2 + $0x2c8] sm:$0xff]
    %v802 = vld [vmem:[#allocation2 + $0x2d0] sm:$0xff]
    %v803 = vld [vmem:[#allocation2 + $0x2d8] sm:$0xff]
    %v804 = vld [vmem:[#allocation2 + $0x2e0] sm:$0xff]
    %v805 = vld [vmem:[#allocation2 + $0x2e8] sm:$0xff]
    %v806 = vld [vmem:[#allocation2 + $0x2f0] sm:$0xff]
    %v807 = vld [vmem:[#allocation2 + $0x2f8] sm:$0xff]
    %v808 = vld [vmem:[#allocation2 + $0x300] sm:$0xff]
    %v809 = vld [vmem:[#allocation2 + $0x308] sm:$0xff]
    %v810 = vld [vmem:[#allocation2 + $0x310] sm:$0xff]
    %v811 = vld [vmem:[#allocation2 + $0x318] sm:$0xff]
    %v812 = vld [vmem:[#allocation2 + $0x320] sm:$0xff]
    %v813 = vld [vmem:[#allocation2 + $0x328] sm:$0xff]
    %v814 = vld [vmem:[#allocation2 + $0x330] sm:$0xff]
    %v815 = vld [vmem:[#allocation2 + $0x338] sm:$0xff]
    %v816 = vld [vmem:[#allocation2 + $0x340] sm:$0xff]
    %v817 = vld [vmem:[#allocation2 + $0x348] sm:$0xff]
    %v818 = vld [vmem:[#allocation2 + $0x350] sm:$0xff]
    %v819 = vld [vmem:[#allocation2 + $0x358] sm:$0xff]
    %v820 = vld [vmem:[#allocation2 + $0x360] sm:$0xff]
    %v821 = vld [vmem:[#allocation2 + $0x368] sm:$0xff]
    %v822 = vld [vmem:[#allocation2 + $0x370] sm:$0xff]
    %v823 = vld [vmem:[#allocation2 + $0x378] sm:$0xff]
    %v824 = vld [vmem:[#allocation2 + $0x380] sm:$0xff]
    %v825 = vld [vmem:[#allocation2 + $0x388] sm:$0xff]
    %v826 = vld [vmem:[#allocation2 + $0x390] sm:$0xff]
    %v827 = vld [vmem:[#allocation2 + $0x398] sm:$0xff]
    %v828 = vld [vmem:[#allocation2 + $0x3a0] sm:$0xff]
    %v829 = vld [vmem:[#allocation2 + $0x3a8] sm:$0xff]
    %v830 = vld [vmem:[#allocation2 + $0x3b0] sm:$0xff]
    %v831 = vld [vmem:[#allocation2 + $0x3b8] sm:$0xff]
    %v832 = vld [vmem:[#allocation2 + $0x3c0] sm:$0xff]
    %v833 = vld [vmem:[#allocation2 + $0x3c8] sm:$0xff]
    %v834 = vld [vmem:[#allocation2 + $0x3d0] sm:$0xff]
    %v835 = vld [vmem:[#allocation2 + $0x3d8] sm:$0xff]
    %v836 = vld [vmem:[#allocation2 + $0x3e0] sm:$0xff]
    %v837 = vld [vmem:[#allocation2 + $0x3e8] sm:$0xff]
    %v838 = vld [vmem:[#allocation2 + $0x3f0] sm:$0xff]
    %v839 = vld [vmem:[#allocation2 + $0x3f8] sm:$0xff]
    %v840 = vld [vmem:[%s5] sm:$0xf]
    %v842 = vlaneseq
    %v843 = vshrl.u32 %v842, 7
    %v844 = vsub.s32 0, %v843
    %v845 = vrot.slane %v840, %v844
    %v846 = vlaneseq
    %v847 = vshrl.u32 %v846, 7
    %v848 = vsub.s32 1, %v847
    %v849 = vrot.slane %v840, %v848
    %v850 = vlaneseq
    %v851 = vshrl.u32 %v850, 7
    %v852 = vsub.s32 2, %v851
    %v853 = vrot.slane %v840, %v852
    %v854 = vlaneseq
    %v855 = vshrl.u32 %v854, 7
    %v856 = vsub.s32 3, %v855
    %v857 = vrot.slane %v840, %v856
    %v990 = vunpack.c.l.b16 %v712
    %v991 = vunpack.c.h.b16 %v712
    %v992 = vunpack.c.l.b16 %v713
    %v993 = vunpack.c.h.b16 %v713
    %v994 = vunpack.c.l.b16 %v714
    %v995 = vunpack.c.h.b16 %v714
    %v996 = vunpack.c.l.b16 %v715
    %v997 = vunpack.c.h.b16 %v715
    %v998 = vunpack.c.l.b16 %v716
    %v999 = vunpack.c.h.b16 %v716
    %v1000 = vunpack.c.l.b16 %v717
    %v1001 = vunpack.c.h.b16 %v717
    %v1002 = vunpack.c.l.b16 %v718
    %v1003 = vunpack.c.h.b16 %v718
    %v1004 = vunpack.c.l.b16 %v719
    %v1005 = vunpack.c.h.b16 %v719
    %v1006 = vunpack.c.l.b16 %v720
    %v1007 = vunpack.c.h.b16 %v720
    %v1008 = vunpack.c.l.b16 %v721
    %v1009 = vunpack.c.h.b16 %v721
    %v1010 = vunpack.c.l.b16 %v722
    %v1011 = vunpack.c.h.b16 %v722
    %v1012 = vunpack.c.l.b16 %v723
    %v1013 = vunpack.c.h.b16 %v723
    %v1014 = vunpack.c.l.b16 %v724
    %v1015 = vunpack.c.h.b16 %v724
    %v1016 = vunpack.c.l.b16 %v725
    %v1017 = vunpack.c.h.b16 %v725
    %v1018 = vunpack.c.l.b16 %v726
    %v1019 = vunpack.c.h.b16 %v726
    %v1020 = vunpack.c.l.b16 %v727
    %v1021 = vunpack.c.h.b16 %v727
    %v1022 = vunpack.c.l.b16 %v728
    %v1023 = vunpack.c.h.b16 %v728
    %v1024 = vunpack.c.l.b16 %v729
    %v1025 = vunpack.c.h.b16 %v729
    %v1026 = vunpack.c.l.b16 %v730
    %v1027 = vunpack.c.h.b16 %v730
    %v1028 = vunpack.c.l.b16 %v731
    %v1029 = vunpack.c.h.b16 %v731
    %v1030 = vunpack.c.l.b16 %v732
    %v1031 = vunpack.c.h.b16 %v732
    %v1032 = vunpack.c.l.b16 %v733
    %v1033 = vunpack.c.h.b16 %v733
    %v1034 = vunpack.c.l.b16 %v734
    %v1035 = vunpack.c.h.b16 %v734
    %v1036 = vunpack.c.l.b16 %v735
    %v1037 = vunpack.c.h.b16 %v735
    %v1038 = vunpack.c.l.b16 %v736
    %v1039 = vunpack.c.h.b16 %v736
    %v1040 = vunpack.c.l.b16 %v737
    %v1041 = vunpack.c.h.b16 %v737
    %v1042 = vunpack.c.l.b16 %v738
    %v1043 = vunpack.c.h.b16 %v738
    %v1044 = vunpack.c.l.b16 %v739
    %v1045 = vunpack.c.h.b16 %v739
    %v1046 = vunpack.c.l.b16 %v740
    %v1047 = vunpack.c.h.b16 %v740
    %v1048 = vunpack.c.l.b16 %v741
    %v1049 = vunpack.c.h.b16 %v741
    %v1050 = vunpack.c.l.b16 %v742
    %v1051 = vunpack.c.h.b16 %v742
    %v1052 = vunpack.c.l.b16 %v743
    %v1053 = vunpack.c.h.b16 %v743
    %v1054 = vunpack.c.l.b16 %v744
    %v1055 = vunpack.c.h.b16 %v744
    %v1056 = vunpack.c.l.b16 %v745
    %v1057 = vunpack.c.h.b16 %v745
    %v1058 = vunpack.c.l.b16 %v746
    %v1059 = vunpack.c.h.b16 %v746
    %v1060 = vunpack.c.l.b16 %v747
    %v1061 = vunpack.c.h.b16 %v747
    %v1062 = vunpack.c.l.b16 %v748
    %v1063 = vunpack.c.h.b16 %v748
    %v1064 = vunpack.c.l.b16 %v749
    %v1065 = vunpack.c.h.b16 %v749
    %v1066 = vunpack.c.l.b16 %v750
    %v1067 = vunpack.c.h.b16 %v750
    %v1068 = vunpack.c.l.b16 %v751
    %v1069 = vunpack.c.h.b16 %v751
    %v1070 = vunpack.c.l.b16 %v752
    %v1071 = vunpack.c.h.b16 %v752
    %v1072 = vunpack.c.l.b16 %v753
    %v1073 = vunpack.c.h.b16 %v753
    %v1074 = vunpack.c.l.b16 %v754
    %v1075 = vunpack.c.h.b16 %v754
    %v1076 = vunpack.c.l.b16 %v755
    %v1077 = vunpack.c.h.b16 %v755
    %v1078 = vunpack.c.l.b16 %v756
    %v1079 = vunpack.c.h.b16 %v756
    %v1080 = vunpack.c.l.b16 %v757
    %v1081 = vunpack.c.h.b16 %v757
    %v1082 = vunpack.c.l.b16 %v758
    %v1083 = vunpack.c.h.b16 %v758
    %v1084 = vunpack.c.l.b16 %v759
    %v1085 = vunpack.c.h.b16 %v759
    %v1086 = vunpack.c.l.b16 %v760
    %v1087 = vunpack.c.h.b16 %v760
    %v1088 = vunpack.c.l.b16 %v761
    %v1089 = vunpack.c.h.b16 %v761
    %v1090 = vunpack.c.l.b16 %v762
    %v1091 = vunpack.c.h.b16 %v762
    %v1092 = vunpack.c.l.b16 %v763
    %v1093 = vunpack.c.h.b16 %v763
    %v1094 = vunpack.c.l.b16 %v764
    %v1095 = vunpack.c.h.b16 %v764
    %v1096 = vunpack.c.l.b16 %v765
    %v1097 = vunpack.c.h.b16 %v765
    %v1098 = vunpack.c.l.b16 %v766
    %v1099 = vunpack.c.h.b16 %v766
    %v1100 = vunpack.c.l.b16 %v767
    %v1101 = vunpack.c.h.b16 %v767
    %v1102 = vunpack.c.l.b16 %v768
    %v1103 = vunpack.c.h.b16 %v768
    %v1104 = vunpack.c.l.b16 %v769
    %v1105 = vunpack.c.h.b16 %v769
    %v1106 = vunpack.c.l.b16 %v770
    %v1107 = vunpack.c.h.b16 %v770
    %v1108 = vunpack.c.l.b16 %v771
    %v1109 = vunpack.c.h.b16 %v771
    %v1110 = vunpack.c.l.b16 %v772
    %v1111 = vunpack.c.h.b16 %v772
    %v1112 = vunpack.c.l.b16 %v773
    %v1113 = vunpack.c.h.b16 %v773
    %v1114 = vunpack.c.l.b16 %v774
    %v1115 = vunpack.c.h.b16 %v774
    %v1116 = vunpack.c.l.b16 %v775
    %v1117 = vunpack.c.h.b16 %v775
    %v1118 = vunpack.c.l.b16 %v776
    %v1119 = vunpack.c.h.b16 %v776
    %v1120 = vunpack.c.l.b16 %v777
    %v1121 = vunpack.c.h.b16 %v777
    %v1122 = vunpack.c.l.b16 %v778
    %v1123 = vunpack.c.h.b16 %v778
    %v1124 = vunpack.c.l.b16 %v779
    %v1125 = vunpack.c.h.b16 %v779
    %v1126 = vunpack.c.l.b16 %v780
    %v1127 = vunpack.c.h.b16 %v780
    %v1128 = vunpack.c.l.b16 %v781
    %v1129 = vunpack.c.h.b16 %v781
    %v1130 = vunpack.c.l.b16 %v782
    %v1131 = vunpack.c.h.b16 %v782
    %v1132 = vunpack.c.l.b16 %v783
    %v1133 = vunpack.c.h.b16 %v783
    %v1134 = vunpack.c.l.b16 %v784
    %v1135 = vunpack.c.h.b16 %v784
    %v1136 = vunpack.c.l.b16 %v785
    %v1137 = vunpack.c.h.b16 %v785
    %v1138 = vunpack.c.l.b16 %v786
    %v1139 = vunpack.c.h.b16 %v786
    %v1140 = vunpack.c.l.b16 %v787
    %v1141 = vunpack.c.h.b16 %v787
    %v1142 = vunpack.c.l.b16 %v788
    %v1143 = vunpack.c.h.b16 %v788
    %v1144 = vunpack.c.l.b16 %v789
    %v1145 = vunpack.c.h.b16 %v789
    %v1146 = vunpack.c.l.b16 %v790
    %v1147 = vunpack.c.h.b16 %v790
    %v1148 = vunpack.c.l.b16 %v791
    %v1149 = vunpack.c.h.b16 %v791
    %v1150 = vunpack.c.l.b16 %v792
    %v1151 = vunpack.c.h.b16 %v792
    %v1152 = vunpack.c.l.b16 %v793
    %v1153 = vunpack.c.h.b16 %v793
    %v1154 = vunpack.c.l.b16 %v794
    %v1155 = vunpack.c.h.b16 %v794
    %v1156 = vunpack.c.l.b16 %v795
    %v1157 = vunpack.c.h.b16 %v795
    %v1158 = vunpack.c.l.b16 %v796
    %v1159 = vunpack.c.h.b16 %v796
    %v1160 = vunpack.c.l.b16 %v797
    %v1161 = vunpack.c.h.b16 %v797
    %v1162 = vunpack.c.l.b16 %v798
    %v1163 = vunpack.c.h.b16 %v798
    %v1164 = vunpack.c.l.b16 %v799
    %v1165 = vunpack.c.h.b16 %v799
    %v1166 = vunpack.c.l.b16 %v800
    %v1167 = vunpack.c.h.b16 %v800
    %v1168 = vunpack.c.l.b16 %v801
    %v1169 = vunpack.c.h.b16 %v801
    %v1170 = vunpack.c.l.b16 %v802
    %v1171 = vunpack.c.h.b16 %v802
    %v1172 = vunpack.c.l.b16 %v803
    %v1173 = vunpack.c.h.b16 %v803
    %v1174 = vunpack.c.l.b16 %v804
    %v1175 = vunpack.c.h.b16 %v804
    %v1176 = vunpack.c.l.b16 %v805
    %v1177 = vunpack.c.h.b16 %v805
    %v1178 = vunpack.c.l.b16 %v806
    %v1179 = vunpack.c.h.b16 %v806
    %v1180 = vunpack.c.l.b16 %v807
    %v1181 = vunpack.c.h.b16 %v807
    %v1182 = vunpack.c.l.b16 %v808
    %v1183 = vunpack.c.h.b16 %v808
    %v1184 = vunpack.c.l.b16 %v809
    %v1185 = vunpack.c.h.b16 %v809
    %v1186 = vunpack.c.l.b16 %v810
    %v1187 = vunpack.c.h.b16 %v810
    %v1188 = vunpack.c.l.b16 %v811
    %v1189 = vunpack.c.h.b16 %v811
    %v1190 = vunpack.c.l.b16 %v812
    %v1191 = vunpack.c.h.b16 %v812
    %v1192 = vunpack.c.l.b16 %v813
    %v1193 = vunpack.c.h.b16 %v813
    %v1194 = vunpack.c.l.b16 %v814
    %v1195 = vunpack.c.h.b16 %v814
    %v1196 = vunpack.c.l.b16 %v815
    %v1197 = vunpack.c.h.b16 %v815
    %v1198 = vunpack.c.l.b16 %v816
    %v1199 = vunpack.c.h.b16 %v816
    %v1200 = vunpack.c.l.b16 %v817
    %v1201 = vunpack.c.h.b16 %v817
    %v1202 = vunpack.c.l.b16 %v818
    %v1203 = vunpack.c.h.b16 %v818
    %v1204 = vunpack.c.l.b16 %v819
    %v1205 = vunpack.c.h.b16 %v819
    %v1206 = vunpack.c.l.b16 %v820
    %v1207 = vunpack.c.h.b16 %v820
    %v1208 = vunpack.c.l.b16 %v821
    %v1209 = vunpack.c.h.b16 %v821
    %v1210 = vunpack.c.l.b16 %v822
    %v1211 = vunpack.c.h.b16 %v822
    %v1212 = vunpack.c.l.b16 %v823
    %v1213 = vunpack.c.h.b16 %v823
    %v1214 = vunpack.c.l.b16 %v824
    %v1215 = vunpack.c.h.b16 %v824
    %v1216 = vunpack.c.l.b16 %v825
    %v1217 = vunpack.c.h.b16 %v825
    %v1218 = vunpack.c.l.b16 %v826
    %v1219 = vunpack.c.h.b16 %v826
    %v1220 = vunpack.c.l.b16 %v827
    %v1221 = vunpack.c.h.b16 %v827
    %v1222 = vunpack.c.l.b16 %v828
    %v1223 = vunpack.c.h.b16 %v828
    %v1224 = vunpack.c.l.b16 %v829
    %v1225 = vunpack.c.h.b16 %v829
    %v1226 = vunpack.c.l.b16 %v830
    %v1227 = vunpack.c.h.b16 %v830
    %v1228 = vunpack.c.l.b16 %v831
    %v1229 = vunpack.c.h.b16 %v831
    %v1230 = vunpack.c.l.b16 %v832
    %v1231 = vunpack.c.h.b16 %v832
    %v1232 = vunpack.c.l.b16 %v833
    %v1233 = vunpack.c.h.b16 %v833
    %v1234 = vunpack.c.l.b16 %v834
    %v1235 = vunpack.c.h.b16 %v834
    %v1236 = vunpack.c.l.b16 %v835
    %v1237 = vunpack.c.h.b16 %v835
    %v1238 = vunpack.c.l.b16 %v836
    %v1239 = vunpack.c.h.b16 %v836
    %v1240 = vunpack.c.l.b16 %v837
    %v1241 = vunpack.c.h.b16 %v837
    %v1242 = vunpack.c.l.b16 %v838
    %v1243 = vunpack.c.h.b16 %v838
    %v1244 = vunpack.c.l.b16 %v839
    %v1245 = vunpack.c.h.b16 %v839
    %v1246 = vpack.c.b16 %v994, %v990
    %v1247 = vpack.c.b16 %v995, %v991
    %v1248 = vpack.c.b16 %v996, %v992
    %v1249 = vpack.c.b16 %v997, %v993
    %v1250 = vpack.c.b16 %v1002, %v998
    %v1251 = vpack.c.b16 %v1003, %v999
    %v1252 = vpack.c.b16 %v1004, %v1000
    %v1253 = vpack.c.b16 %v1005, %v1001
    %v1254 = vpack.c.b16 %v1010, %v1006
    %v1255 = vpack.c.b16 %v1011, %v1007
    %v1256 = vpack.c.b16 %v1012, %v1008
    %v1257 = vpack.c.b16 %v1013, %v1009
    %v1258 = vpack.c.b16 %v1018, %v1014
    %v1259 = vpack.c.b16 %v1019, %v1015
    %v1260 = vpack.c.b16 %v1020, %v1016
    %v1261 = vpack.c.b16 %v1021, %v1017
    %v1262 = vpack.c.b16 %v1026, %v1022
    %v1263 = vpack.c.b16 %v1027, %v1023
    %v1264 = vpack.c.b16 %v1028, %v1024
    %v1265 = vpack.c.b16 %v1029, %v1025
    %v1266 = vpack.c.b16 %v1034, %v1030
    %v1267 = vpack.c.b16 %v1035, %v1031
    %v1268 = vpack.c.b16 %v1036, %v1032
    %v1269 = vpack.c.b16 %v1037, %v1033
    %v1270 = vpack.c.b16 %v1042, %v1038
    %v1271 = vpack.c.b16 %v1043, %v1039
    %v1272 = vpack.c.b16 %v1044, %v1040
    %v1273 = vpack.c.b16 %v1045, %v1041
    %v1274 = vpack.c.b16 %v1050, %v1046
    %v1275 = vpack.c.b16 %v1051, %v1047
    %v1276 = vpack.c.b16 %v1052, %v1048
    %v1277 = vpack.c.b16 %v1053, %v1049
    %v1278 = vpack.c.b16 %v1058, %v1054
    %v1279 = vpack.c.b16 %v1059, %v1055
    %v1280 = vpack.c.b16 %v1060, %v1056
    %v1281 = vpack.c.b16 %v1061, %v1057
    %v1282 = vpack.c.b16 %v1066, %v1062
    %v1283 = vpack.c.b16 %v1067, %v1063
    %v1284 = vpack.c.b16 %v1068, %v1064
    %v1285 = vpack.c.b16 %v1069, %v1065
    %v1286 = vpack.c.b16 %v1074, %v1070
    %v1287 = vpack.c.b16 %v1075, %v1071
    %v1288 = vpack.c.b16 %v1076, %v1072
    %v1289 = vpack.c.b16 %v1077, %v1073
    %v1290 = vpack.c.b16 %v1082, %v1078
    %v1291 = vpack.c.b16 %v1083, %v1079
    %v1292 = vpack.c.b16 %v1084, %v1080
    %v1293 = vpack.c.b16 %v1085, %v1081
    %v1294 = vpack.c.b16 %v1090, %v1086
    %v1295 = vpack.c.b16 %v1091, %v1087
    %v1296 = vpack.c.b16 %v1092, %v1088
    %v1297 = vpack.c.b16 %v1093, %v1089
    %v1298 = vpack.c.b16 %v1098, %v1094
    %v1299 = vpack.c.b16 %v1099, %v1095
    %v1300 = vpack.c.b16 %v1100, %v1096
    %v1301 = vpack.c.b16 %v1101, %v1097
    %v1302 = vpack.c.b16 %v1106, %v1102
    %v1303 = vpack.c.b16 %v1107, %v1103
    %v1304 = vpack.c.b16 %v1108, %v1104
    %v1305 = vpack.c.b16 %v1109, %v1105
    %v1306 = vpack.c.b16 %v1114, %v1110
    %v1307 = vpack.c.b16 %v1115, %v1111
    %v1308 = vpack.c.b16 %v1116, %v1112
    %v1309 = vpack.c.b16 %v1117, %v1113
    %v1310 = vpack.c.b16 %v1122, %v1118
    %v1311 = vpack.c.b16 %v1123, %v1119
    %v1312 = vpack.c.b16 %v1124, %v1120
    %v1313 = vpack.c.b16 %v1125, %v1121
    %v1314 = vpack.c.b16 %v1130, %v1126
    %v1315 = vpack.c.b16 %v1131, %v1127
    %v1316 = vpack.c.b16 %v1132, %v1128
    %v1317 = vpack.c.b16 %v1133, %v1129
    %v1318 = vpack.c.b16 %v1138, %v1134
    %v1319 = vpack.c.b16 %v1139, %v1135
    %v1320 = vpack.c.b16 %v1140, %v1136
    %v1321 = vpack.c.b16 %v1141, %v1137
    %v1322 = vpack.c.b16 %v1146, %v1142
    %v1323 = vpack.c.b16 %v1147, %v1143
    %v1324 = vpack.c.b16 %v1148, %v1144
    %v1325 = vpack.c.b16 %v1149, %v1145
    %v1326 = vpack.c.b16 %v1154, %v1150
    %v1327 = vpack.c.b16 %v1155, %v1151
    %v1328 = vpack.c.b16 %v1156, %v1152
    %v1329 = vpack.c.b16 %v1157, %v1153
    %v1330 = vpack.c.b16 %v1162, %v1158
    %v1331 = vpack.c.b16 %v1163, %v1159
    %v1332 = vpack.c.b16 %v1164, %v1160
    %v1333 = vpack.c.b16 %v1165, %v1161
    %v1334 = vpack.c.b16 %v1170, %v1166
    %v1335 = vpack.c.b16 %v1171, %v1167
    %v1336 = vpack.c.b16 %v1172, %v1168
    %v1337 = vpack.c.b16 %v1173, %v1169
    %v1338 = vpack.c.b16 %v1178, %v1174
    %v1339 = vpack.c.b16 %v1179, %v1175
    %v1340 = vpack.c.b16 %v1180, %v1176
    %v1341 = vpack.c.b16 %v1181, %v1177
    %v1342 = vpack.c.b16 %v1186, %v1182
    %v1343 = vpack.c.b16 %v1187, %v1183
    %v1344 = vpack.c.b16 %v1188, %v1184
    %v1345 = vpack.c.b16 %v1189, %v1185
    %v1346 = vpack.c.b16 %v1194, %v1190
    %v1347 = vpack.c.b16 %v1195, %v1191
    %v1348 = vpack.c.b16 %v1196, %v1192
    %v1349 = vpack.c.b16 %v1197, %v1193
    %v1350 = vpack.c.b16 %v1202, %v1198
    %v1351 = vpack.c.b16 %v1203, %v1199
    %v1352 = vpack.c.b16 %v1204, %v1200
    %v1353 = vpack.c.b16 %v1205, %v1201
    %v1354 = vpack.c.b16 %v1210, %v1206
    %v1355 = vpack.c.b16 %v1211, %v1207
    %v1356 = vpack.c.b16 %v1212, %v1208
    %v1357 = vpack.c.b16 %v1213, %v1209
    %v1358 = vpack.c.b16 %v1218, %v1214
    %v1359 = vpack.c.b16 %v1219, %v1215
    %v1360 = vpack.c.b16 %v1220, %v1216
    %v1361 = vpack.c.b16 %v1221, %v1217
    %v1362 = vpack.c.b16 %v1226, %v1222
    %v1363 = vpack.c.b16 %v1227, %v1223
    %v1364 = vpack.c.b16 %v1228, %v1224
    %v1365 = vpack.c.b16 %v1229, %v1225
    %v1366 = vpack.c.b16 %v1234, %v1230
    %v1367 = vpack.c.b16 %v1235, %v1231
    %v1368 = vpack.c.b16 %v1236, %v1232
    %v1369 = vpack.c.b16 %v1237, %v1233
    %v1370 = vpack.c.b16 %v1242, %v1238
    %v1371 = vpack.c.b16 %v1243, %v1239
    %v1372 = vpack.c.b16 %v1244, %v1240
    %v1373 = vpack.c.b16 %v1245, %v1241
    %1502 = vmatprep.subr.bf16.mxu0 %v1247
    %1503 = vmatpush1.bf16.msra.mxu0 %v1246
    %1504 = vmatprep.subr.bf16.mxu0 %v1251
    %1505 = vmatpush1.bf16.msra.mxu0 %v1250
    %1506 = vmatprep.subr.bf16.mxu0 %v1255
    %1507 = vmatpush1.bf16.msra.mxu0 %v1254
    %1508 = vmatprep.subr.bf16.mxu0 %v1259
    %1509 = vmatpush1.bf16.msra.mxu0 %v1258
    %1510 = vmatprep.subr.bf16.mxu0 %v1263
    %1511 = vmatpush1.bf16.msra.mxu0 %v1262
    %1512 = vmatprep.subr.bf16.mxu0 %v1267
    %1513 = vmatpush1.bf16.msra.mxu0 %v1266
    %1514 = vmatprep.subr.bf16.mxu0 %v1271
    %1515 = vmatpush1.bf16.msra.mxu0 %v1270
    %1516 = vmatprep.subr.bf16.mxu0 %v1275
    %1517 = vmatpush1.bf16.msra.mxu0 %v1274
    %1518 = vmatprep.subr.bf16.mxu0 %v1279
    %1519 = vmatpush1.bf16.msra.mxu0 %v1278
    %1520 = vmatprep.subr.bf16.mxu0 %v1283
    %1521 = vmatpush1.bf16.msra.mxu0 %v1282
    %1522 = vmatprep.subr.bf16.mxu0 %v1287
    %1523 = vmatpush1.bf16.msra.mxu0 %v1286
    %1524 = vmatprep.subr.bf16.mxu0 %v1291
    %1525 = vmatpush1.bf16.msra.mxu0 %v1290
    %1526 = vmatprep.subr.bf16.mxu0 %v1295
    %1527 = vmatpush1.bf16.msra.mxu0 %v1294
    %1528 = vmatprep.subr.bf16.mxu0 %v1299
    %1529 = vmatpush1.bf16.msra.mxu0 %v1298
    %1530 = vmatprep.subr.bf16.mxu0 %v1303
    %1531 = vmatpush1.bf16.msra.mxu0 %v1302
    %1532 = vmatprep.subr.bf16.mxu0 %v1307
    %1533 = vmatpush1.bf16.msra.mxu0 %v1306
    %1534 = vmatprep.mubr.bf16.mxu0 %v709
    %1535 = vmatmul.mubr.bf16.gmra.mrb[0].mxu0 %v708
    %v1536 = vpop.f32.mrb[0].mxu0
    %v1537 = vadd.f32 %v845, %v1536
    %v1538 = vpop.f32.mrb[0].mxu0
    %v1539 = vadd.f32 %v849, %v1538
    %v1540 = vpop.f32.mrb[0].mxu0
    %v1541 = vpop.f32.mrb[0].mxu0
    %1542 = vdwg.mxu0
    %1543 = vmatprep.subr.bf16.mxu0 %v1311
    %1544 = vmatpush1.bf16.msra.mxu0 %v1310
    %1545 = vmatprep.subr.bf16.mxu0 %v1315
    %1546 = vmatpush1.bf16.msra.mxu0 %v1314
    %1547 = vmatprep.subr.bf16.mxu0 %v1319
    %1548 = vmatpush1.bf16.msra.mxu0 %v1318
    %1549 = vmatprep.subr.bf16.mxu0 %v1323
    %1550 = vmatpush1.bf16.msra.mxu0 %v1322
    %1551 = vmatprep.subr.bf16.mxu0 %v1327
    %1552 = vmatpush1.bf16.msra.mxu0 %v1326
    %1553 = vmatprep.subr.bf16.mxu0 %v1331
    %1554 = vmatpush1.bf16.msra.mxu0 %v1330
    %1555 = vmatprep.subr.bf16.mxu0 %v1335
    %1556 = vmatpush1.bf16.msra.mxu0 %v1334
    %1557 = vmatprep.subr.bf16.mxu0 %v1339
    %1558 = vmatpush1.bf16.msra.mxu0 %v1338
    %1559 = vmatprep.subr.bf16.mxu0 %v1343
    %1560 = vmatpush1.bf16.msra.mxu0 %v1342
    %1561 = vmatprep.subr.bf16.mxu0 %v1347
    %1562 = vmatpush1.bf16.msra.mxu0 %v1346
    %1563 = vmatprep.subr.bf16.mxu0 %v1351
    %1564 = vmatpush1.bf16.msra.mxu0 %v1350
    %1565 = vmatprep.subr.bf16.mxu0 %v1355
    %1566 = vmatpush1.bf16.msra.mxu0 %v1354
    %1567 = vmatprep.subr.bf16.mxu0 %v1359
    %1568 = vmatpush1.bf16.msra.mxu0 %v1358
    %1569 = vmatprep.subr.bf16.mxu0 %v1363
    %1570 = vmatpush1.bf16.msra.mxu0 %v1362
    %1571 = vmatprep.subr.bf16.mxu0 %v1367
    %1572 = vmatpush1.bf16.msra.mxu0 %v1366
    %1573 = vmatprep.subr.bf16.mxu0 %v1371
    %1574 = vmatpush1.bf16.msra.mxu0 %v1370
    %1575 = vmatprep.mubr.bf16.mxu0 %v711
    %1576 = vmatmul.mubr.bf16.gmra.mrb[0].mxu0 %v710
    %v1577 = vpop.f32.mrb[0].mxu0
    %v1578 = vadd.f32 %v1537, %v1577
    %v1579 = vpop.f32.mrb[0].mxu0
    %v1580 = vadd.f32 %v1539, %v1579
    %v1581 = vpop.f32.mrb[0].mxu0
    %v1582 = vpop.f32.mrb[0].mxu0
    %1583 = vdwg.mxu0
    %1584 = vmatprep.subr.bf16.mxu0 %v1249
    %1585 = vmatpush1.bf16.msra.mxu0 %v1248
    %1586 = vmatprep.subr.bf16.mxu0 %v1253
    %1587 = vmatpush1.bf16.msra.mxu0 %v1252
    %1588 = vmatprep.subr.bf16.mxu0 %v1257
    %1589 = vmatpush1.bf16.msra.mxu0 %v1256
    %1590 = vmatprep.subr.bf16.mxu0 %v1261
    %1591 = vmatpush1.bf16.msra.mxu0 %v1260
    %1592 = vmatprep.subr.bf16.mxu0 %v1265
    %1593 = vmatpush1.bf16.msra.mxu0 %v1264
    %1594 = vmatprep.subr.bf16.mxu0 %v1269
    %1595 = vmatpush1.bf16.msra.mxu0 %v1268
    %1596 = vmatprep.subr.bf16.mxu0 %v1273
    %1597 = vmatpush1.bf16.msra.mxu0 %v1272
    %1598 = vmatprep.subr.bf16.mxu0 %v1277
    %1599 = vmatpush1.bf16.msra.mxu0 %v1276
    %1600 = vmatprep.subr.bf16.mxu0 %v1281
    %1601 = vmatpush1.bf16.msra.mxu0 %v1280
    %1602 = vmatprep.subr.bf16.mxu0 %v1285
    %1603 = vmatpush1.bf16.msra.mxu0 %v1284
    %1604 = vmatprep.subr.bf16.mxu0 %v1289
    %1605 = vmatpush1.bf16.msra.mxu0 %v1288
    %1606 = vmatprep.subr.bf16.mxu0 %v1293
    %1607 = vmatpush1.bf16.msra.mxu0 %v1292
    %1608 = vmatprep.subr.bf16.mxu0 %v1297
    %1609 = vmatpush1.bf16.msra.mxu0 %v1296
    %1610 = vmatprep.subr.bf16.mxu0 %v1301
    %1611 = vmatpush1.bf16.msra.mxu0 %v1300
    %1612 = vmatprep.subr.bf16.mxu0 %v1305
    %1613 = vmatpush1.bf16.msra.mxu0 %v1304
    %1614 = vmatprep.subr.bf16.mxu0 %v1309
    %1615 = vmatpush1.bf16.msra.mxu0 %v1308
    %1616 = vmatprep.mubr.bf16.mxu0 %v709
    %1617 = vmatmul.mubr.bf16.gmra.mrb[0].mxu0 %v708
    %v1618 = vpop.f32.mrb[0].mxu0
    %v1619 = vadd.f32 %v853, %v1618
    %v1620 = vpop.f32.mrb[0].mxu0
    %v1621 = vadd.f32 %v857, %v1620
    %v1622 = vpop.f32.mrb[0].mxu0
    %v1623 = vpop.f32.mrb[0].mxu0
    %1624 = vdwg.mxu0
    %1625 = vmatprep.subr.bf16.mxu0 %v1313
    %1626 = vmatpush1.bf16.msra.mxu0 %v1312
    %1627 = vmatprep.subr.bf16.mxu0 %v1317
    %1628 = vmatpush1.bf16.msra.mxu0 %v1316
    %1629 = vmatprep.subr.bf16.mxu0 %v1321
    %1630 = vmatpush1.bf16.msra.mxu0 %v1320
    %1631 = vmatprep.subr.bf16.mxu0 %v1325
    %1632 = vmatpush1.bf16.msra.mxu0 %v1324
    %1633 = vmatprep.subr.bf16.mxu0 %v1329
    %1634 = vmatpush1.bf16.msra.mxu0 %v1328
    %1635 = vmatprep.subr.bf16.mxu0 %v1333
    %1636 = vmatpush1.bf16.msra.mxu0 %v1332
    %1637 = vmatprep.subr.bf16.mxu0 %v1337
    %1638 = vmatpush1.bf16.msra.mxu0 %v1336
    %1639 = vmatprep.subr.bf16.mxu0 %v1341
    %1640 = vmatpush1.bf16.msra.mxu0 %v1340
    %1641 = vmatprep.subr.bf16.mxu0 %v1345
    %1642 = vmatpush1.bf16.msra.mxu0 %v1344
    %1643 = vmatprep.subr.bf16.mxu0 %v1349
    %1644 = vmatpush1.bf16.msra.mxu0 %v1348
    %1645 = vmatprep.subr.bf16.mxu0 %v1353
    %1646 = vmatpush1.bf16.msra.mxu0 %v1352
    %1647 = vmatprep.subr.bf16.mxu0 %v1357
    %1648 = vmatpush1.bf16.msra.mxu0 %v1356
    %1649 = vmatprep.subr.bf16.mxu0 %v1361
    %1650 = vmatpush1.bf16.msra.mxu0 %v1360
    %1651 = vmatprep.subr.bf16.mxu0 %v1365
    %1652 = vmatpush1.bf16.msra.mxu0 %v1364
    %1653 = vmatprep.subr.bf16.mxu0 %v1369
    %1654 = vmatpush1.bf16.msra.mxu0 %v1368
    %1655 = vmatprep.subr.bf16.mxu0 %v1373
    %1656 = vmatpush1.bf16.msra.mxu0 %v1372
    %1657 = vmatprep.mubr.bf16.mxu0 %v711
    %1658 = vmatmul.mubr.bf16.gmra.mrb[0].mxu0 %v710
    %v1659 = vpop.f32.mrb[0].mxu0
    %v1660 = vadd.f32 %v1619, %v1659
    %v1661 = vpop.f32.mrb[0].mxu0
    %v1662 = vadd.f32 %v1621, %v1661
    %v1663 = vpop.f32.mrb[0].mxu0
    %v1664 = vpop.f32.mrb[0].mxu0
    %1665 = vdwg.mxu0
    %v1666 = vmax.f32 %v1578, 0.0
    %v1667 = vmax.f32 %v1580, 0.0
    %v1668 = vmax.f32 %v1660, 0.0
    %v1669 = vmax.f32 %v1662, 0.0
    %v1670 = vpack.c.bf16 %v1666, %v1666
    %v1671 = vpack.c.bf16 %v1667, %v1667
    %v1672 = vpack.c.bf16 %v1668, %v1668
    %v1673 = vpack.c.bf16 %v1669, %v1669
    %v1674 = vld [vmem:[%s6] sm:$0xf]
    %v1675 = vld [vmem:[%s6 + $0x4] sm:$0xf]
    %v1676 = vld [vmem:[%s6 + $0x8] sm:$0xf]
    %v1677 = vld [vmem:[%s6 + $0xc] sm:$0xf]
    %v1678 = vld [vmem:[%s6 + $0x10] sm:$0xf]
    %v1679 = vld [vmem:[%s6 + $0x14] sm:$0xf]
    %v1680 = vld [vmem:[%s6 + $0x18] sm:$0xf]
    %v1681 = vld [vmem:[%s6 + $0x1c] sm:$0xf]
    %v1682 = vld [vmem:[%s6 + $0x20] sm:$0xf]
    %v1683 = vld [vmem:[%s6 + $0x24] sm:$0xf]
    %v1684 = vld [vmem:[%s6 + $0x28] sm:$0xf]
    %v1685 = vld [vmem:[%s6 + $0x2c] sm:$0xf]
    %v1686 = vld [vmem:[%s6 + $0x30] sm:$0xf]
    %v1687 = vld [vmem:[%s6 + $0x34] sm:$0xf]
    %v1688 = vld [vmem:[%s6 + $0x38] sm:$0xf]
    %v1689 = vld [vmem:[%s6 + $0x3c] sm:$0xf]
    %v1690 = vld [vmem:[%s6 + $0x40] sm:$0xf]
    %v1691 = vld [vmem:[%s6 + $0x44] sm:$0xf]
    %v1692 = vld [vmem:[%s6 + $0x48] sm:$0xf]
    %v1693 = vld [vmem:[%s6 + $0x4c] sm:$0xf]
    %v1694 = vld [vmem:[%s6 + $0x50] sm:$0xf]
    %v1695 = vld [vmem:[%s6 + $0x54] sm:$0xf]
    %v1696 = vld [vmem:[%s6 + $0x58] sm:$0xf]
    %v1697 = vld [vmem:[%s6 + $0x5c] sm:$0xf]
    %v1698 = vld [vmem:[%s6 + $0x60] sm:$0xf]
    %v1699 = vld [vmem:[%s6 + $0x64] sm:$0xf]
    %v1700 = vld [vmem:[%s6 + $0x68] sm:$0xf]
    %v1701 = vld [vmem:[%s6 + $0x6c] sm:$0xf]
    %v1702 = vld [vmem:[%s6 + $0x70] sm:$0xf]
    %v1703 = vld [vmem:[%s6 + $0x74] sm:$0xf]
    %v1704 = vld [vmem:[%s6 + $0x78] sm:$0xf]
    %v1705 = vld [vmem:[%s6 + $0x7c] sm:$0xf]
    %v1706 = vld [vmem:[%s6 + $0x80] sm:$0xf]
    %v1707 = vld [vmem:[%s6 + $0x84] sm:$0xf]
    %v1708 = vld [vmem:[%s6 + $0x88] sm:$0xf]
    %v1709 = vld [vmem:[%s6 + $0x8c] sm:$0xf]
    %v1710 = vld [vmem:[%s6 + $0x90] sm:$0xf]
    %v1711 = vld [vmem:[%s6 + $0x94] sm:$0xf]
    %v1712 = vld [vmem:[%s6 + $0x98] sm:$0xf]
    %v1713 = vld [vmem:[%s6 + $0x9c] sm:$0xf]
    %v1714 = vld [vmem:[%s6 + $0xa0] sm:$0xf]
    %v1715 = vld [vmem:[%s6 + $0xa4] sm:$0xf]
    %v1716 = vld [vmem:[%s6 + $0xa8] sm:$0xf]
    %v1717 = vld [vmem:[%s6 + $0xac] sm:$0xf]
    %v1718 = vld [vmem:[%s6 + $0xb0] sm:$0xf]
    %v1719 = vld [vmem:[%s6 + $0xb4] sm:$0xf]
    %v1720 = vld [vmem:[%s6 + $0xb8] sm:$0xf]
    %v1721 = vld [vmem:[%s6 + $0xbc] sm:$0xf]
    %v1722 = vld [vmem:[%s6 + $0xc0] sm:$0xf]
    %v1723 = vld [vmem:[%s6 + $0xc4] sm:$0xf]
    %v1724 = vld [vmem:[%s6 + $0xc8] sm:$0xf]
    %v1725 = vld [vmem:[%s6 + $0xcc] sm:$0xf]
    %v1726 = vld [vmem:[%s6 + $0xd0] sm:$0xf]
    %v1727 = vld [vmem:[%s6 + $0xd4] sm:$0xf]
    %v1728 = vld [vmem:[%s6 + $0xd8] sm:$0xf]
    %v1729 = vld [vmem:[%s6 + $0xdc] sm:$0xf]
    %v1730 = vld [vmem:[%s6 + $0xe0] sm:$0xf]
    %v1731 = vld [vmem:[%s6 + $0xe4] sm:$0xf]
    %v1732 = vld [vmem:[%s6 + $0xe8] sm:$0xf]
    %v1733 = vld [vmem:[%s6 + $0xec] sm:$0xf]
    %v1734 = vld [vmem:[%s6 + $0xf0] sm:$0xf]
    %v1735 = vld [vmem:[%s6 + $0xf4] sm:$0xf]
    %v1736 = vld [vmem:[%s6 + $0xf8] sm:$0xf]
    %v1737 = vld [vmem:[%s6 + $0xfc] sm:$0xf]
    %v1738 = vld [vmem:[%s7] sm:$0x1]
    %v1740 = vlaneseq
    %v1741 = vshrl.u32 %v1740, 7
    %v1742 = vsub.s32 0, %v1741
    %v1743 = vrot.slane %v1738, %v1742
    %v1809 = vunpack.c.l.b16 %v1674
    %v1810 = vunpack.c.l.b16 %v1675
    %v1811 = vunpack.c.l.b16 %v1676
    %v1812 = vunpack.c.l.b16 %v1677
    %v1813 = vunpack.c.l.b16 %v1678
    %v1814 = vunpack.c.l.b16 %v1679
    %v1815 = vunpack.c.l.b16 %v1680
    %v1816 = vunpack.c.l.b16 %v1681
    %v1817 = vunpack.c.l.b16 %v1682
    %v1818 = vunpack.c.l.b16 %v1683
    %v1819 = vunpack.c.l.b16 %v1684
    %v1820 = vunpack.c.l.b16 %v1685
    %v1821 = vunpack.c.l.b16 %v1686
    %v1822 = vunpack.c.l.b16 %v1687
    %v1823 = vunpack.c.l.b16 %v1688
    %v1824 = vunpack.c.l.b16 %v1689
    %v1825 = vunpack.c.l.b16 %v1690
    %v1826 = vunpack.c.l.b16 %v1691
    %v1827 = vunpack.c.l.b16 %v1692
    %v1828 = vunpack.c.l.b16 %v1693
    %v1829 = vunpack.c.l.b16 %v1694
    %v1830 = vunpack.c.l.b16 %v1695
    %v1831 = vunpack.c.l.b16 %v1696
    %v1832 = vunpack.c.l.b16 %v1697
    %v1833 = vunpack.c.l.b16 %v1698
    %v1834 = vunpack.c.l.b16 %v1699
    %v1835 = vunpack.c.l.b16 %v1700
    %v1836 = vunpack.c.l.b16 %v1701
    %v1837 = vunpack.c.l.b16 %v1702
    %v1838 = vunpack.c.l.b16 %v1703
    %v1839 = vunpack.c.l.b16 %v1704
    %v1840 = vunpack.c.l.b16 %v1705
    %v1841 = vunpack.c.l.b16 %v1706
    %v1842 = vunpack.c.l.b16 %v1707
    %v1843 = vunpack.c.l.b16 %v1708
    %v1844 = vunpack.c.l.b16 %v1709
    %v1845 = vunpack.c.l.b16 %v1710
    %v1846 = vunpack.c.l.b16 %v1711
    %v1847 = vunpack.c.l.b16 %v1712
    %v1848 = vunpack.c.l.b16 %v1713
    %v1849 = vunpack.c.l.b16 %v1714
    %v1850 = vunpack.c.l.b16 %v1715
    %v1851 = vunpack.c.l.b16 %v1716
    %v1852 = vunpack.c.l.b16 %v1717
    %v1853 = vunpack.c.l.b16 %v1718
    %v1854 = vunpack.c.l.b16 %v1719
    %v1855 = vunpack.c.l.b16 %v1720
    %v1856 = vunpack.c.l.b16 %v1721
    %v1857 = vunpack.c.l.b16 %v1722
    %v1858 = vunpack.c.l.b16 %v1723
    %v1859 = vunpack.c.l.b16 %v1724
    %v1860 = vunpack.c.l.b16 %v1725
    %v1861 = vunpack.c.l.b16 %v1726
    %v1862 = vunpack.c.l.b16 %v1727
    %v1863 = vunpack.c.l.b16 %v1728
    %v1864 = vunpack.c.l.b16 %v1729
    %v1865 = vunpack.c.l.b16 %v1730
    %v1866 = vunpack.c.l.b16 %v1731
    %v1867 = vunpack.c.l.b16 %v1732
    %v1868 = vunpack.c.l.b16 %v1733
    %v1869 = vunpack.c.l.b16 %v1734
    %v1870 = vunpack.c.l.b16 %v1735
    %v1871 = vunpack.c.l.b16 %v1736
    %v1872 = vunpack.c.l.b16 %v1737
    %v1873 = vpack.c.b16 %v1810, %v1809
    %v1874 = vpack.c.b16 %v1812, %v1811
    %v1875 = vpack.c.b16 %v1814, %v1813
    %v1876 = vpack.c.b16 %v1816, %v1815
    %v1877 = vpack.c.b16 %v1818, %v1817
    %v1878 = vpack.c.b16 %v1820, %v1819
    %v1879 = vpack.c.b16 %v1822, %v1821
    %v1880 = vpack.c.b16 %v1824, %v1823
    %v1881 = vpack.c.b16 %v1826, %v1825
    %v1882 = vpack.c.b16 %v1828, %v1827
    %v1883 = vpack.c.b16 %v1830, %v1829
    %v1884 = vpack.c.b16 %v1832, %v1831
    %v1885 = vpack.c.b16 %v1834, %v1833
    %v1886 = vpack.c.b16 %v1836, %v1835
    %v1887 = vpack.c.b16 %v1838, %v1837
    %v1888 = vpack.c.b16 %v1840, %v1839
    %v1889 = vpack.c.b16 %v1842, %v1841
    %v1890 = vpack.c.b16 %v1844, %v1843
    %v1891 = vpack.c.b16 %v1846, %v1845
    %v1892 = vpack.c.b16 %v1848, %v1847
    %v1893 = vpack.c.b16 %v1850, %v1849
    %v1894 = vpack.c.b16 %v1852, %v1851
    %v1895 = vpack.c.b16 %v1854, %v1853
    %v1896 = vpack.c.b16 %v1856, %v1855
    %v1897 = vpack.c.b16 %v1858, %v1857
    %v1898 = vpack.c.b16 %v1860, %v1859
    %v1899 = vpack.c.b16 %v1862, %v1861
    %v1900 = vpack.c.b16 %v1864, %v1863
    %v1901 = vpack.c.b16 %v1866, %v1865
    %v1902 = vpack.c.b16 %v1868, %v1867
    %v1903 = vpack.c.b16 %v1870, %v1869
    %v1904 = vpack.c.b16 %v1872, %v1871
    %1937 = vmatprep.subr.bf16.mxu0 0
    %1938 = vmatpush1.bf16.msra.mxu0 %v1873
    %1939 = vmatprep.subr.bf16.mxu0 0
    %1940 = vmatpush1.bf16.msra.mxu0 %v1874
    %1941 = vmatprep.subr.bf16.mxu0 0
    %1942 = vmatpush1.bf16.msra.mxu0 %v1875
    %1943 = vmatprep.subr.bf16.mxu0 0
    %1944 = vmatpush1.bf16.msra.mxu0 %v1876
    %1945 = vmatprep.subr.bf16.mxu0 0
    %1946 = vmatpush1.bf16.msra.mxu0 %v1877
    %1947 = vmatprep.subr.bf16.mxu0 0
    %1948 = vmatpush1.bf16.msra.mxu0 %v1878
    %1949 = vmatprep.subr.bf16.mxu0 0
    %1950 = vmatpush1.bf16.msra.mxu0 %v1879
    %1951 = vmatprep.subr.bf16.mxu0 0
    %1952 = vmatpush1.bf16.msra.mxu0 %v1880
    %1953 = vmatprep.subr.bf16.mxu0 0
    %1954 = vmatpush1.bf16.msra.mxu0 %v1881
    %1955 = vmatprep.subr.bf16.mxu0 0
    %1956 = vmatpush1.bf16.msra.mxu0 %v1882
    %1957 = vmatprep.subr.bf16.mxu0 0
    %1958 = vmatpush1.bf16.msra.mxu0 %v1883
    %1959 = vmatprep.subr.bf16.mxu0 0
    %1960 = vmatpush1.bf16.msra.mxu0 %v1884
    %1961 = vmatprep.subr.bf16.mxu0 0
    %1962 = vmatpush1.bf16.msra.mxu0 %v1885
    %1963 = vmatprep.subr.bf16.mxu0 0
    %1964 = vmatpush1.bf16.msra.mxu0 %v1886
    %1965 = vmatprep.subr.bf16.mxu0 0
    %1966 = vmatpush1.bf16.msra.mxu0 %v1887
    %1967 = vmatprep.subr.bf16.mxu0 0
    %1968 = vmatpush1.bf16.msra.mxu0 %v1888
    %1969 = vmatprep.mubr.bf16.mxu0 %v1671
    %1970 = vmatmul.mubr.bf16.gmra.mrb[0].mxu0 %v1670
    %v1971 = vpop.f32.mrb[0].mxu0
    %v1972 = vadd.f32 %v1743, %v1971
    %v1973 = vpop.f32.mrb[0].mxu0
    %v1974 = vpop.f32.mrb[0].mxu0
    %v1975 = vpop.f32.mrb[0].mxu0
    %1976 = vdwg.mxu0
    %1977 = vmatprep.subr.bf16.mxu0 0
    %1978 = vmatpush1.bf16.msra.mxu0 %v1889
    %1979 = vmatprep.subr.bf16.mxu0 0
    %1980 = vmatpush1.bf16.msra.mxu0 %v1890
    %1981 = vmatprep.subr.bf16.mxu0 0
    %1982 = vmatpush1.bf16.msra.mxu0 %v1891
    %1983 = vmatprep.subr.bf16.mxu0 0
    %1984 = vmatpush1.bf16.msra.mxu0 %v1892
    %1985 = vmatprep.subr.bf16.mxu0 0
    %1986 = vmatpush1.bf16.msra.mxu0 %v1893
    %1987 = vmatprep.subr.bf16.mxu0 0
    %1988 = vmatpush1.bf16.msra.mxu0 %v1894
    %1989 = vmatprep.subr.bf16.mxu0 0
    %1990 = vmatpush1.bf16.msra.mxu0 %v1895
    %1991 = vmatprep.subr.bf16.mxu0 0
    %1992 = vmatpush1.bf16.msra.mxu0 %v1896
    %1993 = vmatprep.subr.bf16.mxu0 0
    %1994 = vmatpush1.bf16.msra.mxu0 %v1897
    %1995 = vmatprep.subr.bf16.mxu0 0
    %1996 = vmatpush1.bf16.msra.mxu0 %v1898
    %1997 = vmatprep.subr.bf16.mxu0 0
    %1998 = vmatpush1.bf16.msra.mxu0 %v1899
    %1999 = vmatprep.subr.bf16.mxu0 0
    %2000 = vmatpush1.bf16.msra.mxu0 %v1900
    %2001 = vmatprep.subr.bf16.mxu0 0
    %2002 = vmatpush1.bf16.msra.mxu0 %v1901
    %2003 = vmatprep.subr.bf16.mxu0 0
    %2004 = vmatpush1.bf16.msra.mxu0 %v1902
    %2005 = vmatprep.subr.bf16.mxu0 0
    %2006 = vmatpush1.bf16.msra.mxu0 %v1903
    %2007 = vmatprep.subr.bf16.mxu0 0
    %2008 = vmatpush1.bf16.msra.mxu0 %v1904
    %2009 = vmatprep.mubr.bf16.mxu0 %v1673
    %2010 = vmatmul.mubr.bf16.gmra.mrb[0].mxu0 %v1672
    %v2011 = vpop.f32.mrb[0].mxu0
    %v2012 = vadd.f32 %v1972, %v2011
    %v2013 = vpop.f32.mrb[0].mxu0
    %v2014 = vpop.f32.mrb[0].mxu0
    %v2015 = vpop.f32.mrb[0].mxu0
    %2016 = vdwg.mxu0
    %vm2017 = vcmask 80896
    %v2018 = vsel %vm2017, %v2012, -inf
    %2019 = vmax.xlane.f32.xlu0 %v2018
    %v2020 = vpop.xlane.xlu0 %2019
    %v2021 = vsub.f32 %v2012, %v2020
    %v2022 = vmul.f32 %v2021, 1.442695
    %v2023 = vpow.pop %v2022
    %v2024 = vsel %vm2017, %v2023, 0.0
    %2025 = vadd.xlane.f32.xlu0 %v2024
    %v2026 = vpop.xlane.xlu0 %2025
    %v2027 = vrcp.pop %v2026
    %v2028 = vmul.f32 %v2023, %v2027
    %v2029 = vadd.f32 %v2012, %v128
    %v2030 = vsel %vm2017, %v2029, -inf
    %2031 = vmax.xlane.f32.xlu0 %v2030
    %v2032 = vpop.xlane.xlu0 %2031
    %v2033 = vsub.f32 %v2029, %v2032
    %v2034 = vmul.f32 %v2033, 1.442695
    %v2035 = vpow.pop %v2034
    %v2036 = vsel %vm2017, %v2035, 0.0
    %2037 = vadd.xlane.f32.xlu0 %v2036
    %v2038 = vpop.xlane.xlu0 %2037
    %v2039 = vrcp.pop %v2038
    %v2040 = vmul.f32 %v2035, %v2039
    %v2041 = vpack.c.bf16 %v2040, %v2040
    %v2042 = vld [vmem:[%s8] sm:$0xff]
    %v2043 = vld [vmem:[%s8 + $0x8] sm:$0xff]
    %v2044 = vld [vmem:[%s8 + $0x10] sm:$0xf]
    %v2045 = vld [vmem:[%s8 + $0x14] sm:$0x11]
    %v2046 = vld [vmem:[%s8 + $0x1c] sm:$0x11]
    %v2047 = vld [vmem:[%s8 + $0x24] sm:$0x1]
    %v2054 = vunpack.c.l.b16 %v2042
    %v2055 = vunpack.c.h.b16 %v2042
    %v2056 = vunpack.c.l.b16 %v2043
    %v2057 = vunpack.c.h.b16 %v2043
    %v2058 = vunpack.c.l.b16 %v2044
    %v2059 = vunpack.c.l.b16 %v2045
    %v2060 = vunpack.c.h.b16 %v2045
    %v2061 = vunpack.c.l.b16 %v2046
    %v2062 = vunpack.c.h.b16 %v2046
    %v2063 = vunpack.c.l.b16 %v2047
    %v2064 = vpack.c.b16 %v2059, %v2054
    %v2065 = vpack.c.b16 %v2060, %v2055
    %v2066 = vpack.c.b16 %v2061, %v2056
    %v2067 = vpack.c.b16 %v2062, %v2057
    %v2068 = vpack.c.b16 %v2063, %v2058
    %v2070 = vsel %vm2017, %v2041, 0
    %vm2072 = vcmask 1044480
    %v2074 = vsel %vm2072, %v2064, 0
    %v2077 = vsel %vm2072, %v2065, 0
    %v2080 = vsel %vm2072, %v2066, 0
    %v2083 = vsel %vm2072, %v2067, 0
    %v2086 = vsel %vm2072, %v2068, 0
    %2088 = vmatprep.subr.bf16.mxu0 %v2077
    %2089 = vmatpush1.bf16.msra.mxu0 %v2074
    %2090 = vmatprep.subr.bf16.mxu0 0
    %2091 = vmatpush1.bf16.msra.mxu0 0
    %2092 = vmatprep.subr.bf16.mxu0 0
    %2093 = vmatpush1.bf16.msra.mxu0 0
    %2094 = vmatprep.subr.bf16.mxu0 0
    %2095 = vmatpush1.bf16.msra.mxu0 0
    %2096 = vmatprep.subr.bf16.mxu0 0
    %2097 = vmatpush1.bf16.msra.mxu0 0
    %2098 = vmatprep.subr.bf16.mxu0 0
    %2099 = vmatpush1.bf16.msra.mxu0 0
    %2100 = vmatprep.subr.bf16.mxu0 0
    %2101 = vmatpush1.bf16.msra.mxu0 0
    %2102 = vmatprep.subr.bf16.mxu0 0
    %2103 = vmatpush1.bf16.msra.mxu0 0
    %2104 = vmatprep.subr.bf16.mxu0 0
    %2105 = vmatpush1.bf16.msra.mxu0 0
    %2106 = vmatprep.subr.bf16.mxu0 0
    %2107 = vmatpush1.bf16.msra.mxu0 0
    %2108 = vmatprep.subr.bf16.mxu0 0
    %2109 = vmatpush1.bf16.msra.mxu0 0
    %2110 = vmatprep.subr.bf16.mxu0 0
    %2111 = vmatpush1.bf16.msra.mxu0 0
    %2112 = vmatprep.subr.bf16.mxu0 0
    %2113 = vmatpush1.bf16.msra.mxu0 0
    %2114 = vmatprep.subr.bf16.mxu0 0
    %2115 = vmatpush1.bf16.msra.mxu0 0
    %2116 = vmatprep.subr.bf16.mxu0 0
    %2117 = vmatpush1.bf16.msra.mxu0 0
    %2118 = vmatprep.subr.bf16.mxu0 0
    %2119 = vmatpush1.bf16.msra.mxu0 0
    %2120 = vmatprep.mubr.bf16.mxu0 0
    %2121 = vmatmul.mubr.bf16.gmra.mrb[0].mxu0 %v2070
    %v2122 = vpop.f32.mrb[0].mxu0
    %v2123 = vadd.f32 0.0, %v2122
    %v2124 = vpop.f32.mrb[0].mxu0
    %v2125 = vadd.f32 0.0, %v2124
    %v2126 = vpop.f32.mrb[0].mxu0
    %v2127 = vpop.f32.mrb[0].mxu0
    %2128 = vdwg.mxu0
    %2129 = vmatprep.subr.bf16.mxu0 %v2083
    %2130 = vmatpush1.bf16.msra.mxu0 %v2080
    %2131 = vmatprep.subr.bf16.mxu0 0
    %2132 = vmatpush1.bf16.msra.mxu0 0
    %2133 = vmatprep.subr.bf16.mxu0 0
    %2134 = vmatpush1.bf16.msra.mxu0 0
    %2135 = vmatprep.subr.bf16.mxu0 0
    %2136 = vmatpush1.bf16.msra.mxu0 0
    %2137 = vmatprep.subr.bf16.mxu0 0
    %2138 = vmatpush1.bf16.msra.mxu0 0
    %2139 = vmatprep.subr.bf16.mxu0 0
    %2140 = vmatpush1.bf16.msra.mxu0 0
    %2141 = vmatprep.subr.bf16.mxu0 0
    %2142 = vmatpush1.bf16.msra.mxu0 0
    %2143 = vmatprep.subr.bf16.mxu0 0
    %2144 = vmatpush1.bf16.msra.mxu0 0
    %2145 = vmatprep.subr.bf16.mxu0 0
    %2146 = vmatpush1.bf16.msra.mxu0 0
    %2147 = vmatprep.subr.bf16.mxu0 0
    %2148 = vmatpush1.bf16.msra.mxu0 0
    %2149 = vmatprep.subr.bf16.mxu0 0
    %2150 = vmatpush1.bf16.msra.mxu0 0
    %2151 = vmatprep.subr.bf16.mxu0 0
    %2152 = vmatpush1.bf16.msra.mxu0 0
    %2153 = vmatprep.subr.bf16.mxu0 0
    %2154 = vmatpush1.bf16.msra.mxu0 0
    %2155 = vmatprep.subr.bf16.mxu0 0
    %2156 = vmatpush1.bf16.msra.mxu0 0
    %2157 = vmatprep.subr.bf16.mxu0 0
    %2158 = vmatpush1.bf16.msra.mxu0 0
    %2159 = vmatprep.subr.bf16.mxu0 0
    %2160 = vmatpush1.bf16.msra.mxu0 0
    %2161 = vmatprep.mubr.bf16.mxu0 0
    %2162 = vmatmul.mubr.bf16.gmra.mrb[0].mxu0 %v2070
    %v2163 = vpop.f32.mrb[0].mxu0
    %v2164 = vadd.f32 0.0, %v2163
    %v2165 = vpop.f32.mrb[0].mxu0
    %v2166 = vadd.f32 0.0, %v2165
    %v2167 = vpop.f32.mrb[0].mxu0
    %v2168 = vpop.f32.mrb[0].mxu0
    %2169 = vdwg.mxu0
    %2170 = vmatprep.subr.bf16.mxu0 0
    %2171 = vmatpush1.bf16.msra.mxu0 %v2086
    %2172 = vmatprep.subr.bf16.mxu0 0
    %2173 = vmatpush1.bf16.msra.mxu0 0
    %2174 = vmatprep.subr.bf16.mxu0 0
    %2175 = vmatpush1.bf16.msra.mxu0 0
    %2176 = vmatprep.subr.bf16.mxu0 0
    %2177 = vmatpush1.bf16.msra.mxu0 0
    %2178 = vmatprep.subr.bf16.mxu0 0
    %2179 = vmatpush1.bf16.msra.mxu0 0
    %2180 = vmatprep.subr.bf16.mxu0 0
    %2181 = vmatpush1.bf16.msra.mxu0 0
    %2182 = vmatprep.subr.bf16.mxu0 0
    %2183 = vmatpush1.bf16.msra.mxu0 0
    %2184 = vmatprep.subr.bf16.mxu0 0
    %2185 = vmatpush1.bf16.msra.mxu0 0
    %2186 = vmatprep.subr.bf16.mxu0 0
    %2187 = vmatpush1.bf16.msra.mxu0 0
    %2188 = vmatprep.subr.bf16.mxu0 0
    %2189 = vmatpush1.bf16.msra.mxu0 0
    %2190 = vmatprep.subr.bf16.mxu0 0
    %2191 = vmatpush1.bf16.msra.mxu0 0
    %2192 = vmatprep.subr.bf16.mxu0 0
    %2193 = vmatpush1.bf16.msra.mxu0 0
    %2194 = vmatprep.subr.bf16.mxu0 0
    %2195 = vmatpush1.bf16.msra.mxu0 0
    %2196 = vmatprep.subr.bf16.mxu0 0
    %2197 = vmatpush1.bf16.msra.mxu0 0
    %2198 = vmatprep.subr.bf16.mxu0 0
    %2199 = vmatpush1.bf16.msra.mxu0 0
    %2200 = vmatprep.subr.bf16.mxu0 0
    %2201 = vmatpush1.bf16.msra.mxu0 0
    %2202 = vmatprep.mubr.bf16.mxu0 0
    %2203 = vmatmul.mubr.bf16.gmra.mrb[0].mxu0 %v2070
    %v2204 = vpop.f32.mrb[0].mxu0
    %v2205 = vadd.f32 0.0, %v2204
    %v2206 = vpop.f32.mrb[0].mxu0
    %v2207 = vpop.f32.mrb[0].mxu0
    %v2208 = vpop.f32.mrb[0].mxu0
    %2209 = vdwg.mxu0
    %v2210 = vadd.f32 %v631, %v2123
    %v2211 = vadd.f32 %v633, %v2125
    %v2212 = vadd.f32 %v672, %v2164
    %v2213 = vadd.f32 %v674, %v2166
    %v2214 = vld [vmem:[%s9] sm:$0xf]
    %v2216 = vlaneseq
    %v2217 = vshrl.u32 %v2216, 7
    %v2218 = vsub.s32 0, %v2217
    %v2219 = vrot.slane %v2214, %v2218
    %v2220 = vlaneseq
    %v2221 = vshrl.u32 %v2220, 7
    %v2222 = vsub.s32 1, %v2221
    %v2223 = vrot.slane %v2214, %v2222
    %v2224 = vlaneseq
    %v2225 = vshrl.u32 %v2224, 7
    %v2226 = vsub.s32 2, %v2225
    %v2227 = vrot.slane %v2214, %v2226
    %v2228 = vlaneseq
    %v2229 = vshrl.u32 %v2228, 7
    %v2230 = vsub.s32 3, %v2229
    %v2231 = vrot.slane %v2214, %v2230
    %v2236 = vadd.f32 %v2210, %v2219
    %v2237 = vadd.f32 %v2211, %v2223
    %v2238 = vadd.f32 %v2212, %v2227
    %v2239 = vadd.f32 %v2213, %v2231
    %v2240 = vmax.f32 %v2236, 0.0
    %v2241 = vmax.f32 %v2237, 0.0
    %v2242 = vmax.f32 %v2238, 0.0
    %v2243 = vmax.f32 %v2239, 0.0
    %v2244 = vpack.c.bf16 %v2240, %v2240
    %v2245 = vpack.c.bf16 %v2241, %v2241
    %v2246 = vpack.c.bf16 %v2242, %v2242
    %v2247 = vpack.c.bf16 %v2243, %v2243
    %v2248 = vld [vmem:[#allocation5] sm:$0xff]
    %v2249 = vld [vmem:[#allocation5 + $0x8] sm:$0xff]
    %v2250 = vld [vmem:[#allocation5 + $0x10] sm:$0xff]
    %v2251 = vld [vmem:[#allocation5 + $0x18] sm:$0xff]
    %v2252 = vld [vmem:[#allocation5 + $0x20] sm:$0xff]
    %v2253 = vld [vmem:[#allocation5 + $0x28] sm:$0xff]
    %v2254 = vld [vmem:[#allocation5 + $0x30] sm:$0xff]
    %v2255 = vld [vmem:[#allocation5 + $0x38] sm:$0xff]
    %v2256 = vld [vmem:[#allocation5 + $0x40] sm:$0xff]
    %v2257 = vld [vmem:[#allocation5 + $0x48] sm:$0xff]
    %v2258 = vld [vmem:[#allocation5 + $0x50] sm:$0xff]
    %v2259 = vld [vmem:[#allocation5 + $0x58] sm:$0xff]
    %v2260 = vld [vmem:[#allocation5 + $0x60] sm:$0xff]
    %v2261 = vld [vmem:[#allocation5 + $0x68] sm:$0xff]
    %v2262 = vld [vmem:[#allocation5 + $0x70] sm:$0xff]
    %v2263 = vld [vmem:[#allocation5 + $0x78] sm:$0xff]
    %v2264 = vld [vmem:[#allocation5 + $0x80] sm:$0xff]
    %v2265 = vld [vmem:[#allocation5 + $0x88] sm:$0xff]
    %v2266 = vld [vmem:[#allocation5 + $0x90] sm:$0xff]
    %v2267 = vld [vmem:[#allocation5 + $0x98] sm:$0xff]
    %v2268 = vld [vmem:[#allocation5 + $0xa0] sm:$0xff]
    %v2269 = vld [vmem:[#allocation5 + $0xa8] sm:$0xff]
    %v2270 = vld [vmem:[#allocation5 + $0xb0] sm:$0xff]
    %v2271 = vld [vmem:[#allocation5 + $0xb8] sm:$0xff]
    %v2272 = vld [vmem:[#allocation5 + $0xc0] sm:$0xff]
    %v2273 = vld [vmem:[#allocation5 + $0xc8] sm:$0xff]
    %v2274 = vld [vmem:[#allocation5 + $0xd0] sm:$0xff]
    %v2275 = vld [vmem:[#allocation5 + $0xd8] sm:$0xff]
    %v2276 = vld [vmem:[#allocation5 + $0xe0] sm:$0xff]
    %v2277 = vld [vmem:[#allocation5 + $0xe8] sm:$0xff]
    %v2278 = vld [vmem:[#allocation5 + $0xf0] sm:$0xff]
    %v2279 = vld [vmem:[#allocation5 + $0xf8] sm:$0xff]
    %v2280 = vld [vmem:[#allocation5 + $0x100] sm:$0xff]
    %v2281 = vld [vmem:[#allocation5 + $0x108] sm:$0xff]
    %v2282 = vld [vmem:[#allocation5 + $0x110] sm:$0xff]
    %v2283 = vld [vmem:[#allocation5 + $0x118] sm:$0xff]
    %v2284 = vld [vmem:[#allocation5 + $0x120] sm:$0xff]
    %v2285 = vld [vmem:[#allocation5 + $0x128] sm:$0xff]
    %v2286 = vld [vmem:[#allocation5 + $0x130] sm:$0xff]
    %v2287 = vld [vmem:[#allocation5 + $0x138] sm:$0xff]
    %v2288 = vld [vmem:[#allocation5 + $0x140] sm:$0xff]
    %v2289 = vld [vmem:[#allocation5 + $0x148] sm:$0xff]
    %v2290 = vld [vmem:[#allocation5 + $0x150] sm:$0xff]
    %v2291 = vld [vmem:[#allocation5 + $0x158] sm:$0xff]
    %v2292 = vld [vmem:[#allocation5 + $0x160] sm:$0xff]
    %v2293 = vld [vmem:[#allocation5 + $0x168] sm:$0xff]
    %v2294 = vld [vmem:[#allocation5 + $0x170] sm:$0xff]
    %v2295 = vld [vmem:[#allocation5 + $0x178] sm:$0xff]
    %v2296 = vld [vmem:[#allocation5 + $0x180] sm:$0xff]
    %v2297 = vld [vmem:[#allocation5 + $0x188] sm:$0xff]
    %v2298 = vld [vmem:[#allocation5 + $0x190] sm:$0xff]
    %v2299 = vld [vmem:[#allocation5 + $0x198] sm:$0xff]
    %v2300 = vld [vmem:[#allocation5 + $0x1a0] sm:$0xff]
    %v2301 = vld [vmem:[#allocation5 + $0x1a8] sm:$0xff]
    %v2302 = vld [vmem:[#allocation5 + $0x1b0] sm:$0xff]
    %v2303 = vld [vmem:[#allocation5 + $0x1b8] sm:$0xff]
    %v2304 = vld [vmem:[#allocation5 + $0x1c0] sm:$0xff]
    %v2305 = vld [vmem:[#allocation5 + $0x1c8] sm:$0xff]
    %v2306 = vld [vmem:[#allocation5 + $0x1d0] sm:$0xff]
    %v2307 = vld [vmem:[#allocation5 + $0x1d8] sm:$0xff]
    %v2308 = vld [vmem:[#allocation5 + $0x1e0] sm:$0xff]
    %v2309 = vld [vmem:[#allocation5 + $0x1e8] sm:$0xff]
    %v2310 = vld [vmem:[#allocation5 + $0x1f0] sm:$0xff]
    %v2311 = vld [vmem:[#allocation5 + $0x1f8] sm:$0xff]
    %v2312 = vld [vmem:[#allocation5 + $0x200] sm:$0xff]
    %v2313 = vld [vmem:[#allocation5 + $0x208] sm:$0xff]
    %v2314 = vld [vmem:[#allocation5 + $0x210] sm:$0xff]
    %v2315 = vld [vmem:[#allocation5 + $0x218] sm:$0xff]
    %v2316 = vld [vmem:[#allocation5 + $0x220] sm:$0xff]
    %v2317 = vld [vmem:[#allocation5 + $0x228] sm:$0xff]
    %v2318 = vld [vmem:[#allocation5 + $0x230] sm:$0xff]
    %v2319 = vld [vmem:[#allocation5 + $0x238] sm:$0xff]
    %v2320 = vld [vmem:[#allocation5 + $0x240] sm:$0xff]
    %v2321 = vld [vmem:[#allocation5 + $0x248] sm:$0xff]
    %v2322 = vld [vmem:[#allocation5 + $0x250] sm:$0xff]
    %v2323 = vld [vmem:[#allocation5 + $0x258] sm:$0xff]
    %v2324 = vld [vmem:[#allocation5 + $0x260] sm:$0xff]
    %v2325 = vld [vmem:[#allocation5 + $0x268] sm:$0xff]
    %v2326 = vld [vmem:[#allocation5 + $0x270] sm:$0xff]
    %v2327 = vld [vmem:[#allocation5 + $0x278] sm:$0xff]
    %v2328 = vld [vmem:[#allocation5 + $0x280] sm:$0xff]
    %v2329 = vld [vmem:[#allocation5 + $0x288] sm:$0xff]
    %v2330 = vld [vmem:[#allocation5 + $0x290] sm:$0xff]
    %v2331 = vld [vmem:[#allocation5 + $0x298] sm:$0xff]
    %v2332 = vld [vmem:[#allocation5 + $0x2a0] sm:$0xff]
    %v2333 = vld [vmem:[#allocation5 + $0x2a8] sm:$0xff]
    %v2334 = vld [vmem:[#allocation5 + $0x2b0] sm:$0xff]
    %v2335 = vld [vmem:[#allocation5 + $0x2b8] sm:$0xff]
    %v2336 = vld [vmem:[#allocation5 + $0x2c0] sm:$0xff]
    %v2337 = vld [vmem:[#allocation5 + $0x2c8] sm:$0xff]
    %v2338 = vld [vmem:[#allocation5 + $0x2d0] sm:$0xff]
    %v2339 = vld [vmem:[#allocation5 + $0x2d8] sm:$0xff]
    %v2340 = vld [vmem:[#allocation5 + $0x2e0] sm:$0xff]
    %v2341 = vld [vmem:[#allocation5 + $0x2e8] sm:$0xff]
    %v2342 = vld [vmem:[#allocation5 + $0x2f0] sm:$0xff]
    %v2343 = vld [vmem:[#allocation5 + $0x2f8] sm:$0xff]
    %v2344 = vld [vmem:[#allocation5 + $0x300] sm:$0xff]
    %v2345 = vld [vmem:[#allocation5 + $0x308] sm:$0xff]
    %v2346 = vld [vmem:[#allocation5 + $0x310] sm:$0xff]
    %v2347 = vld [vmem:[#allocation5 + $0x318] sm:$0xff]
    %v2348 = vld [vmem:[#allocation5 + $0x320] sm:$0xff]
    %v2349 = vld [vmem:[#allocation5 + $0x328] sm:$0xff]
    %v2350 = vld [vmem:[#allocation5 + $0x330] sm:$0xff]
    %v2351 = vld [vmem:[#allocation5 + $0x338] sm:$0xff]
    %v2352 = vld [vmem:[#allocation5 + $0x340] sm:$0xff]
    %v2353 = vld [vmem:[#allocation5 + $0x348] sm:$0xff]
    %v2354 = vld [vmem:[#allocation5 + $0x350] sm:$0xff]
    %v2355 = vld [vmem:[#allocation5 + $0x358] sm:$0xff]
    %v2356 = vld [vmem:[#allocation5 + $0x360] sm:$0xff]
    %v2357 = vld [vmem:[#allocation5 + $0x368] sm:$0xff]
    %v2358 = vld [vmem:[#allocation5 + $0x370] sm:$0xff]
    %v2359 = vld [vmem:[#allocation5 + $0x378] sm:$0xff]
    %v2360 = vld [vmem:[#allocation5 + $0x380] sm:$0xff]
    %v2361 = vld [vmem:[#allocation5 + $0x388] sm:$0xff]
    %v2362 = vld [vmem:[#allocation5 + $0x390] sm:$0xff]
    %v2363 = vld [vmem:[#allocation5 + $0x398] sm:$0xff]
    %v2364 = vld [vmem:[#allocation5 + $0x3a0] sm:$0xff]
    %v2365 = vld [vmem:[#allocation5 + $0x3a8] sm:$0xff]
    %v2366 = vld [vmem:[#allocation5 + $0x3b0] sm:$0xff]
    %v2367 = vld [vmem:[#allocation5 + $0x3b8] sm:$0xff]
    %v2368 = vld [vmem:[#allocation5 + $0x3c0] sm:$0xff]
    %v2369 = vld [vmem:[#allocation5 + $0x3c8] sm:$0xff]
    %v2370 = vld [vmem:[#allocation5 + $0x3d0] sm:$0xff]
    %v2371 = vld [vmem:[#allocation5 + $0x3d8] sm:$0xff]
    %v2372 = vld [vmem:[#allocation5 + $0x3e0] sm:$0xff]
    %v2373 = vld [vmem:[#allocation5 + $0x3e8] sm:$0xff]
    %v2374 = vld [vmem:[#allocation5 + $0x3f0] sm:$0xff]
    %v2375 = vld [vmem:[#allocation5 + $0x3f8] sm:$0xff]
    %v2376 = vld [vmem:[%s12] sm:$0xf]
    %v2378 = vlaneseq
    %v2379 = vshrl.u32 %v2378, 7
    %v2380 = vsub.s32 0, %v2379
    %v2381 = vrot.slane %v2376, %v2380
    %v2382 = vlaneseq
    %v2383 = vshrl.u32 %v2382, 7
    %v2384 = vsub.s32 1, %v2383
    %v2385 = vrot.slane %v2376, %v2384
    %v2386 = vlaneseq
    %v2387 = vshrl.u32 %v2386, 7
    %v2388 = vsub.s32 2, %v2387
    %v2389 = vrot.slane %v2376, %v2388
    %v2390 = vlaneseq
    %v2391 = vshrl.u32 %v2390, 7
    %v2392 = vsub.s32 3, %v2391
    %v2393 = vrot.slane %v2376, %v2392
    %v2526 = vunpack.c.l.b16 %v2248
    %v2527 = vunpack.c.h.b16 %v2248
    %v2528 = vunpack.c.l.b16 %v2249
    %v2529 = vunpack.c.h.b16 %v2249
    %v2530 = vunpack.c.l.b16 %v2250
    %v2531 = vunpack.c.h.b16 %v2250
    %v2532 = vunpack.c.l.b16 %v2251
    %v2533 = vunpack.c.h.b16 %v2251
    %v2534 = vunpack.c.l.b16 %v2252
    %v2535 = vunpack.c.h.b16 %v2252
    %v2536 = vunpack.c.l.b16 %v2253
    %v2537 = vunpack.c.h.b16 %v2253
    %v2538 = vunpack.c.l.b16 %v2254
    %v2539 = vunpack.c.h.b16 %v2254
    %v2540 = vunpack.c.l.b16 %v2255
    %v2541 = vunpack.c.h.b16 %v2255
    %v2542 = vunpack.c.l.b16 %v2256
    %v2543 = vunpack.c.h.b16 %v2256
    %v2544 = vunpack.c.l.b16 %v2257
    %v2545 = vunpack.c.h.b16 %v2257
    %v2546 = vunpack.c.l.b16 %v2258
    %v2547 = vunpack.c.h.b16 %v2258
    %v2548 = vunpack.c.l.b16 %v2259
    %v2549 = vunpack.c.h.b16 %v2259
    %v2550 = vunpack.c.l.b16 %v2260
    %v2551 = vunpack.c.h.b16 %v2260
    %v2552 = vunpack.c.l.b16 %v2261
    %v2553 = vunpack.c.h.b16 %v2261
    %v2554 = vunpack.c.l.b16 %v2262
    %v2555 = vunpack.c.h.b16 %v2262
    %v2556 = vunpack.c.l.b16 %v2263
    %v2557 = vunpack.c.h.b16 %v2263
    %v2558 = vunpack.c.l.b16 %v2264
    %v2559 = vunpack.c.h.b16 %v2264
    %v2560 = vunpack.c.l.b16 %v2265
    %v2561 = vunpack.c.h.b16 %v2265
    %v2562 = vunpack.c.l.b16 %v2266
    %v2563 = vunpack.c.h.b16 %v2266
    %v2564 = vunpack.c.l.b16 %v2267
    %v2565 = vunpack.c.h.b16 %v2267
    %v2566 = vunpack.c.l.b16 %v2268
    %v2567 = vunpack.c.h.b16 %v2268
    %v2568 = vunpack.c.l.b16 %v2269
    %v2569 = vunpack.c.h.b16 %v2269
    %v2570 = vunpack.c.l.b16 %v2270
    %v2571 = vunpack.c.h.b16 %v2270
    %v2572 = vunpack.c.l.b16 %v2271
    %v2573 = vunpack.c.h.b16 %v2271
    %v2574 = vunpack.c.l.b16 %v2272
    %v2575 = vunpack.c.h.b16 %v2272
    %v2576 = vunpack.c.l.b16 %v2273
    %v2577 = vunpack.c.h.b16 %v2273
    %v2578 = vunpack.c.l.b16 %v2274
    %v2579 = vunpack.c.h.b16 %v2274
    %v2580 = vunpack.c.l.b16 %v2275
    %v2581 = vunpack.c.h.b16 %v2275
    %v2582 = vunpack.c.l.b16 %v2276
    %v2583 = vunpack.c.h.b16 %v2276
    %v2584 = vunpack.c.l.b16 %v2277
    %v2585 = vunpack.c.h.b16 %v2277
    %v2586 = vunpack.c.l.b16 %v2278
    %v2587 = vunpack.c.h.b16 %v2278
    %v2588 = vunpack.c.l.b16 %v2279
    %v2589 = vunpack.c.h.b16 %v2279
    %v2590 = vunpack.c.l.b16 %v2280
    %v2591 = vunpack.c.h.b16 %v2280
    %v2592 = vunpack.c.l.b16 %v2281
    %v2593 = vunpack.c.h.b16 %v2281
    %v2594 = vunpack.c.l.b16 %v2282
    %v2595 = vunpack.c.h.b16 %v2282
    %v2596 = vunpack.c.l.b16 %v2283
    %v2597 = vunpack.c.h.b16 %v2283
    %v2598 = vunpack.c.l.b16 %v2284
    %v2599 = vunpack.c.h.b16 %v2284
    %v2600 = vunpack.c.l.b16 %v2285
    %v2601 = vunpack.c.h.b16 %v2285
    %v2602 = vunpack.c.l.b16 %v2286
    %v2603 = vunpack.c.h.b16 %v2286
    %v2604 = vunpack.c.l.b16 %v2287
    %v2605 = vunpack.c.h.b16 %v2287
    %v2606 = vunpack.c.l.b16 %v2288
    %v2607 = vunpack.c.h.b16 %v2288
    %v2608 = vunpack.c.l.b16 %v2289
    %v2609 = vunpack.c.h.b16 %v2289
    %v2610 = vunpack.c.l.b16 %v2290
    %v2611 = vunpack.c.h.b16 %v2290
    %v2612 = vunpack.c.l.b16 %v2291
    %v2613 = vunpack.c.h.b16 %v2291
    %v2614 = vunpack.c.l.b16 %v2292
    %v2615 = vunpack.c.h.b16 %v2292
    %v2616 = vunpack.c.l.b16 %v2293
    %v2617 = vunpack.c.h.b16 %v2293
    %v2618 = vunpack.c.l.b16 %v2294
    %v2619 = vunpack.c.h.b16 %v2294
    %v2620 = vunpack.c.l.b16 %v2295
    %v2621 = vunpack.c.h.b16 %v2295
    %v2622 = vunpack.c.l.b16 %v2296
    %v2623 = vunpack.c.h.b16 %v2296
    %v2624 = vunpack.c.l.b16 %v2297
    %v2625 = vunpack.c.h.b16 %v2297
    %v2626 = vunpack.c.l.b16 %v2298
    %v2627 = vunpack.c.h.b16 %v2298
    %v2628 = vunpack.c.l.b16 %v2299
    %v2629 = vunpack.c.h.b16 %v2299
    %v2630 = vunpack.c.l.b16 %v2300
    %v2631 = vunpack.c.h.b16 %v2300
    %v2632 = vunpack.c.l.b16 %v2301
    %v2633 = vunpack.c.h.b16 %v2301
    %v2634 = vunpack.c.l.b16 %v2302
    %v2635 = vunpack.c.h.b16 %v2302
    %v2636 = vunpack.c.l.b16 %v2303
    %v2637 = vunpack.c.h.b16 %v2303
    %v2638 = vunpack.c.l.b16 %v2304
    %v2639 = vunpack.c.h.b16 %v2304
    %v2640 = vunpack.c.l.b16 %v2305
    %v2641 = vunpack.c.h.b16 %v2305
    %v2642 = vunpack.c.l.b16 %v2306
    %v2643 = vunpack.c.h.b16 %v2306
    %v2644 = vunpack.c.l.b16 %v2307
    %v2645 = vunpack.c.h.b16 %v2307
    %v2646 = vunpack.c.l.b16 %v2308
    %v2647 = vunpack.c.h.b16 %v2308
    %v2648 = vunpack.c.l.b16 %v2309
    %v2649 = vunpack.c.h.b16 %v2309
    %v2650 = vunpack.c.l.b16 %v2310
    %v2651 = vunpack.c.h.b16 %v2310
    %v2652 = vunpack.c.l.b16 %v2311
    %v2653 = vunpack.c.h.b16 %v2311
    %v2654 = vunpack.c.l.b16 %v2312
    %v2655 = vunpack.c.h.b16 %v2312
    %v2656 = vunpack.c.l.b16 %v2313
    %v2657 = vunpack.c.h.b16 %v2313
    %v2658 = vunpack.c.l.b16 %v2314
    %v2659 = vunpack.c.h.b16 %v2314
    %v2660 = vunpack.c.l.b16 %v2315
    %v2661 = vunpack.c.h.b16 %v2315
    %v2662 = vunpack.c.l.b16 %v2316
    %v2663 = vunpack.c.h.b16 %v2316
    %v2664 = vunpack.c.l.b16 %v2317
    %v2665 = vunpack.c.h.b16 %v2317
    %v2666 = vunpack.c.l.b16 %v2318
    %v2667 = vunpack.c.h.b16 %v2318
    %v2668 = vunpack.c.l.b16 %v2319
    %v2669 = vunpack.c.h.b16 %v2319
    %v2670 = vunpack.c.l.b16 %v2320
    %v2671 = vunpack.c.h.b16 %v2320
    %v2672 = vunpack.c.l.b16 %v2321
    %v2673 = vunpack.c.h.b16 %v2321
    %v2674 = vunpack.c.l.b16 %v2322
    %v2675 = vunpack.c.h.b16 %v2322
    %v2676 = vunpack.c.l.b16 %v2323
    %v2677 = vunpack.c.h.b16 %v2323
    %v2678 = vunpack.c.l.b16 %v2324
    %v2679 = vunpack.c.h.b16 %v2324
    %v2680 = vunpack.c.l.b16 %v2325
    %v2681 = vunpack.c.h.b16 %v2325
    %v2682 = vunpack.c.l.b16 %v2326
    %v2683 = vunpack.c.h.b16 %v2326
    %v2684 = vunpack.c.l.b16 %v2327
    %v2685 = vunpack.c.h.b16 %v2327
    %v2686 = vunpack.c.l.b16 %v2328
    %v2687 = vunpack.c.h.b16 %v2328
    %v2688 = vunpack.c.l.b16 %v2329
    %v2689 = vunpack.c.h.b16 %v2329
    %v2690 = vunpack.c.l.b16 %v2330
    %v2691 = vunpack.c.h.b16 %v2330
    %v2692 = vunpack.c.l.b16 %v2331
    %v2693 = vunpack.c.h.b16 %v2331
    %v2694 = vunpack.c.l.b16 %v2332
    %v2695 = vunpack.c.h.b16 %v2332
    %v2696 = vunpack.c.l.b16 %v2333
    %v2697 = vunpack.c.h.b16 %v2333
    %v2698 = vunpack.c.l.b16 %v2334
    %v2699 = vunpack.c.h.b16 %v2334
    %v2700 = vunpack.c.l.b16 %v2335
    %v2701 = vunpack.c.h.b16 %v2335
    %v2702 = vunpack.c.l.b16 %v2336
    %v2703 = vunpack.c.h.b16 %v2336
    %v2704 = vunpack.c.l.b16 %v2337
    %v2705 = vunpack.c.h.b16 %v2337
    %v2706 = vunpack.c.l.b16 %v2338
    %v2707 = vunpack.c.h.b16 %v2338
    %v2708 = vunpack.c.l.b16 %v2339
    %v2709 = vunpack.c.h.b16 %v2339
    %v2710 = vunpack.c.l.b16 %v2340
    %v2711 = vunpack.c.h.b16 %v2340
    %v2712 = vunpack.c.l.b16 %v2341
    %v2713 = vunpack.c.h.b16 %v2341
    %v2714 = vunpack.c.l.b16 %v2342
    %v2715 = vunpack.c.h.b16 %v2342
    %v2716 = vunpack.c.l.b16 %v2343
    %v2717 = vunpack.c.h.b16 %v2343
    %v2718 = vunpack.c.l.b16 %v2344
    %v2719 = vunpack.c.h.b16 %v2344
    %v2720 = vunpack.c.l.b16 %v2345
    %v2721 = vunpack.c.h.b16 %v2345
    %v2722 = vunpack.c.l.b16 %v2346
    %v2723 = vunpack.c.h.b16 %v2346
    %v2724 = vunpack.c.l.b16 %v2347
    %v2725 = vunpack.c.h.b16 %v2347
    %v2726 = vunpack.c.l.b16 %v2348
    %v2727 = vunpack.c.h.b16 %v2348
    %v2728 = vunpack.c.l.b16 %v2349
    %v2729 = vunpack.c.h.b16 %v2349
    %v2730 = vunpack.c.l.b16 %v2350
    %v2731 = vunpack.c.h.b16 %v2350
    %v2732 = vunpack.c.l.b16 %v2351
    %v2733 = vunpack.c.h.b16 %v2351
    %v2734 = vunpack.c.l.b16 %v2352
    %v2735 = vunpack.c.h.b16 %v2352
    %v2736 = vunpack.c.l.b16 %v2353
    %v2737 = vunpack.c.h.b16 %v2353
    %v2738 = vunpack.c.l.b16 %v2354
    %v2739 = vunpack.c.h.b16 %v2354
    %v2740 = vunpack.c.l.b16 %v2355
    %v2741 = vunpack.c.h.b16 %v2355
    %v2742 = vunpack.c.l.b16 %v2356
    %v2743 = vunpack.c.h.b16 %v2356
    %v2744 = vunpack.c.l.b16 %v2357
    %v2745 = vunpack.c.h.b16 %v2357
    %v2746 = vunpack.c.l.b16 %v2358
    %v2747 = vunpack.c.h.b16 %v2358
    %v2748 = vunpack.c.l.b16 %v2359
    %v2749 = vunpack.c.h.b16 %v2359
    %v2750 = vunpack.c.l.b16 %v2360
    %v2751 = vunpack.c.h.b16 %v2360
    %v2752 = vunpack.c.l.b16 %v2361
    %v2753 = vunpack.c.h.b16 %v2361
    %v2754 = vunpack.c.l.b16 %v2362
    %v2755 = vunpack.c.h.b16 %v2362
    %v2756 = vunpack.c.l.b16 %v2363
    %v2757 = vunpack.c.h.b16 %v2363
    %v2758 = vunpack.c.l.b16 %v2364
    %v2759 = vunpack.c.h.b16 %v2364
    %v2760 = vunpack.c.l.b16 %v2365
    %v2761 = vunpack.c.h.b16 %v2365
    %v2762 = vunpack.c.l.b16 %v2366
    %v2763 = vunpack.c.h.b16 %v2366
    %v2764 = vunpack.c.l.b16 %v2367
    %v2765 = vunpack.c.h.b16 %v2367
    %v2766 = vunpack.c.l.b16 %v2368
    %v2767 = vunpack.c.h.b16 %v2368
    %v2768 = vunpack.c.l.b16 %v2369
    %v2769 = vunpack.c.h.b16 %v2369
    %v2770 = vunpack.c.l.b16 %v2370
    %v2771 = vunpack.c.h.b16 %v2370
    %v2772 = vunpack.c.l.b16 %v2371
    %v2773 = vunpack.c.h.b16 %v2371
    %v2774 = vunpack.c.l.b16 %v2372
    %v2775 = vunpack.c.h.b16 %v2372
    %v2776 = vunpack.c.l.b16 %v2373
    %v2777 = vunpack.c.h.b16 %v2373
    %v2778 = vunpack.c.l.b16 %v2374
    %v2779 = vunpack.c.h.b16 %v2374
    %v2780 = vunpack.c.l.b16 %v2375
    %v2781 = vunpack.c.h.b16 %v2375
    %v2782 = vpack.c.b16 %v2530, %v2526
    %v2783 = vpack.c.b16 %v2531, %v2527
    %v2784 = vpack.c.b16 %v2532, %v2528
    %v2785 = vpack.c.b16 %v2533, %v2529
    %v2786 = vpack.c.b16 %v2538, %v2534
    %v2787 = vpack.c.b16 %v2539, %v2535
    %v2788 = vpack.c.b16 %v2540, %v2536
    %v2789 = vpack.c.b16 %v2541, %v2537
    %v2790 = vpack.c.b16 %v2546, %v2542
    %v2791 = vpack.c.b16 %v2547, %v2543
    %v2792 = vpack.c.b16 %v2548, %v2544
    %v2793 = vpack.c.b16 %v2549, %v2545
    %v2794 = vpack.c.b16 %v2554, %v2550
    %v2795 = vpack.c.b16 %v2555, %v2551
    %v2796 = vpack.c.b16 %v2556, %v2552
    %v2797 = vpack.c.b16 %v2557, %v2553
    %v2798 = vpack.c.b16 %v2562, %v2558
    %v2799 = vpack.c.b16 %v2563, %v2559
    %v2800 = vpack.c.b16 %v2564, %v2560
    %v2801 = vpack.c.b16 %v2565, %v2561
    %v2802 = vpack.c.b16 %v2570, %v2566
    %v2803 = vpack.c.b16 %v2571, %v2567
    %v2804 = vpack.c.b16 %v2572, %v2568
    %v2805 = vpack.c.b16 %v2573, %v2569
    %v2806 = vpack.c.b16 %v2578, %v2574
    %v2807 = vpack.c.b16 %v2579, %v2575
    %v2808 = vpack.c.b16 %v2580, %v2576
    %v2809 = vpack.c.b16 %v2581, %v2577
    %v2810 = vpack.c.b16 %v2586, %v2582
    %v2811 = vpack.c.b16 %v2587, %v2583
    %v2812 = vpack.c.b16 %v2588, %v2584
    %v2813 = vpack.c.b16 %v2589, %v2585
    %v2814 = vpack.c.b16 %v2594, %v2590
    %v2815 = vpack.c.b16 %v2595, %v2591
    %v2816 = vpack.c.b16 %v2596, %v2592
    %v2817 = vpack.c.b16 %v2597, %v2593
    %v2818 = vpack.c.b16 %v2602, %v2598
    %v2819 = vpack.c.b16 %v2603, %v2599
    %v2820 = vpack.c.b16 %v2604, %v2600
    %v2821 = vpack.c.b16 %v2605, %v2601
    %v2822 = vpack.c.b16 %v2610, %v2606
    %v2823 = vpack.c.b16 %v2611, %v2607
    %v2824 = vpack.c.b16 %v2612, %v2608
    %v2825 = vpack.c.b16 %v2613, %v2609
    %v2826 = vpack.c.b16 %v2618, %v2614
    %v2827 = vpack.c.b16 %v2619, %v2615
    %v2828 = vpack.c.b16 %v2620, %v2616
    %v2829 = vpack.c.b16 %v2621, %v2617
    %v2830 = vpack.c.b16 %v2626, %v2622
    %v2831 = vpack.c.b16 %v2627, %v2623
    %v2832 = vpack.c.b16 %v2628, %v2624
    %v2833 = vpack.c.b16 %v2629, %v2625
    %v2834 = vpack.c.b16 %v2634, %v2630
    %v2835 = vpack.c.b16 %v2635, %v2631
    %v2836 = vpack.c.b16 %v2636, %v2632
    %v2837 = vpack.c.b16 %v2637, %v2633
    %v2838 = vpack.c.b16 %v2642, %v2638
    %v2839 = vpack.c.b16 %v2643, %v2639
    %v2840 = vpack.c.b16 %v2644, %v2640
    %v2841 = vpack.c.b16 %v2645, %v2641
    %v2842 = vpack.c.b16 %v2650, %v2646
    %v2843 = vpack.c.b16 %v2651, %v2647
    %v2844 = vpack.c.b16 %v2652, %v2648
    %v2845 = vpack.c.b16 %v2653, %v2649
    %v2846 = vpack.c.b16 %v2658, %v2654
    %v2847 = vpack.c.b16 %v2659, %v2655
    %v2848 = vpack.c.b16 %v2660, %v2656
    %v2849 = vpack.c.b16 %v2661, %v2657
    %v2850 = vpack.c.b16 %v2666, %v2662
    %v2851 = vpack.c.b16 %v2667, %v2663
    %v2852 = vpack.c.b16 %v2668, %v2664
    %v2853 = vpack.c.b16 %v2669, %v2665
    %v2854 = vpack.c.b16 %v2674, %v2670
    %v2855 = vpack.c.b16 %v2675, %v2671
    %v2856 = vpack.c.b16 %v2676, %v2672
    %v2857 = vpack.c.b16 %v2677, %v2673
    %v2858 = vpack.c.b16 %v2682, %v2678
    %v2859 = vpack.c.b16 %v2683, %v2679
    %v2860 = vpack.c.b16 %v2684, %v2680
    %v2861 = vpack.c.b16 %v2685, %v2681
    %v2862 = vpack.c.b16 %v2690, %v2686
    %v2863 = vpack.c.b16 %v2691, %v2687
    %v2864 = vpack.c.b16 %v2692, %v2688
    %v2865 = vpack.c.b16 %v2693, %v2689
    %v2866 = vpack.c.b16 %v2698, %v2694
    %v2867 = vpack.c.b16 %v2699, %v2695
    %v2868 = vpack.c.b16 %v2700, %v2696
    %v2869 = vpack.c.b16 %v2701, %v2697
    %v2870 = vpack.c.b16 %v2706, %v2702
    %v2871 = vpack.c.b16 %v2707, %v2703
    %v2872 = vpack.c.b16 %v2708, %v2704
    %v2873 = vpack.c.b16 %v2709, %v2705
    %v2874 = vpack.c.b16 %v2714, %v2710
    %v2875 = vpack.c.b16 %v2715, %v2711
    %v2876 = vpack.c.b16 %v2716, %v2712
    %v2877 = vpack.c.b16 %v2717, %v2713
    %v2878 = vpack.c.b16 %v2722, %v2718
    %v2879 = vpack.c.b16 %v2723, %v2719
    %v2880 = vpack.c.b16 %v2724, %v2720
    %v2881 = vpack.c.b16 %v2725, %v2721
    %v2882 = vpack.c.b16 %v2730, %v2726
    %v2883 = vpack.c.b16 %v2731, %v2727
    %v2884 = vpack.c.b16 %v2732, %v2728
    %v2885 = vpack.c.b16 %v2733, %v2729
    %v2886 = vpack.c.b16 %v2738, %v2734
    %v2887 = vpack.c.b16 %v2739, %v2735
    %v2888 = vpack.c.b16 %v2740, %v2736
    %v2889 = vpack.c.b16 %v2741, %v2737
    %v2890 = vpack.c.b16 %v2746, %v2742
    %v2891 = vpack.c.b16 %v2747, %v2743
    %v2892 = vpack.c.b16 %v2748, %v2744
    %v2893 = vpack.c.b16 %v2749, %v2745
    %v2894 = vpack.c.b16 %v2754, %v2750
    %v2895 = vpack.c.b16 %v2755, %v2751
    %v2896 = vpack.c.b16 %v2756, %v2752
    %v2897 = vpack.c.b16 %v2757, %v2753
    %v2898 = vpack.c.b16 %v2762, %v2758
    %v2899 = vpack.c.b16 %v2763, %v2759
    %v2900 = vpack.c.b16 %v2764, %v2760
    %v2901 = vpack.c.b16 %v2765, %v2761
    %v2902 = vpack.c.b16 %v2770, %v2766
    %v2903 = vpack.c.b16 %v2771, %v2767
    %v2904 = vpack.c.b16 %v2772, %v2768
    %v2905 = vpack.c.b16 %v2773, %v2769
    %v2906 = vpack.c.b16 %v2778, %v2774
    %v2907 = vpack.c.b16 %v2779, %v2775
    %v2908 = vpack.c.b16 %v2780, %v2776
    %v2909 = vpack.c.b16 %v2781, %v2777
    %3038 = vmatprep.subr.bf16.mxu0 %v2783
    %3039 = vmatpush1.bf16.msra.mxu0 %v2782
    %3040 = vmatprep.subr.bf16.mxu0 %v2787
    %3041 = vmatpush1.bf16.msra.mxu0 %v2786
    %3042 = vmatprep.subr.bf16.mxu0 %v2791
    %3043 = vmatpush1.bf16.msra.mxu0 %v2790
    %3044 = vmatprep.subr.bf16.mxu0 %v2795
    %3045 = vmatpush1.bf16.msra.mxu0 %v2794
    %3046 = vmatprep.subr.bf16.mxu0 %v2799
    %3047 = vmatpush1.bf16.msra.mxu0 %v2798
    %3048 = vmatprep.subr.bf16.mxu0 %v2803
    %3049 = vmatpush1.bf16.msra.mxu0 %v2802
    %3050 = vmatprep.subr.bf16.mxu0 %v2807
    %3051 = vmatpush1.bf16.msra.mxu0 %v2806
    %3052 = vmatprep.subr.bf16.mxu0 %v2811
    %3053 = vmatpush1.bf16.msra.mxu0 %v2810
    %3054 = vmatprep.subr.bf16.mxu0 %v2815
    %3055 = vmatpush1.bf16.msra.mxu0 %v2814
    %3056 = vmatprep.subr.bf16.mxu0 %v2819
    %3057 = vmatpush1.bf16.msra.mxu0 %v2818
    %3058 = vmatprep.subr.bf16.mxu0 %v2823
    %3059 = vmatpush1.bf16.msra.mxu0 %v2822
    %3060 = vmatprep.subr.bf16.mxu0 %v2827
    %3061 = vmatpush1.bf16.msra.mxu0 %v2826
    %3062 = vmatprep.subr.bf16.mxu0 %v2831
    %3063 = vmatpush1.bf16.msra.mxu0 %v2830
    %3064 = vmatprep.subr.bf16.mxu0 %v2835
    %3065 = vmatpush1.bf16.msra.mxu0 %v2834
    %3066 = vmatprep.subr.bf16.mxu0 %v2839
    %3067 = vmatpush1.bf16.msra.mxu0 %v2838
    %3068 = vmatprep.subr.bf16.mxu0 %v2843
    %3069 = vmatpush1.bf16.msra.mxu0 %v2842
    %3070 = vmatprep.mubr.bf16.mxu0 %v2245
    %3071 = vmatmul.mubr.bf16.gmra.mrb[0].mxu0 %v2244
    %v3072 = vpop.f32.mrb[0].mxu0
    %v3073 = vadd.f32 %v2381, %v3072
    %v3074 = vpop.f32.mrb[0].mxu0
    %v3075 = vadd.f32 %v2385, %v3074
    %v3076 = vpop.f32.mrb[0].mxu0
    %v3077 = vpop.f32.mrb[0].mxu0
    %3078 = vdwg.mxu0
    %3079 = vmatprep.subr.bf16.mxu0 %v2847
    %3080 = vmatpush1.bf16.msra.mxu0 %v2846
    %3081 = vmatprep.subr.bf16.mxu0 %v2851
    %3082 = vmatpush1.bf16.msra.mxu0 %v2850
    %3083 = vmatprep.subr.bf16.mxu0 %v2855
    %3084 = vmatpush1.bf16.msra.mxu0 %v2854
    %3085 = vmatprep.subr.bf16.mxu0 %v2859
    %3086 = vmatpush1.bf16.msra.mxu0 %v2858
    %3087 = vmatprep.subr.bf16.mxu0 %v2863
    %3088 = vmatpush1.bf16.msra.mxu0 %v2862
    %3089 = vmatprep.subr.bf16.mxu0 %v2867
    %3090 = vmatpush1.bf16.msra.mxu0 %v2866
    %3091 = vmatprep.subr.bf16.mxu0 %v2871
    %3092 = vmatpush1.bf16.msra.mxu0 %v2870
    %3093 = vmatprep.subr.bf16.mxu0 %v2875
    %3094 = vmatpush1.bf16.msra.mxu0 %v2874
    %3095 = vmatprep.subr.bf16.mxu0 %v2879
    %3096 = vmatpush1.bf16.msra.mxu0 %v2878
    %3097 = vmatprep.subr.bf16.mxu0 %v2883
    %3098 = vmatpush1.bf16.msra.mxu0 %v2882
    %3099 = vmatprep.subr.bf16.mxu0 %v2887
    %3100 = vmatpush1.bf16.msra.mxu0 %v2886
    %3101 = vmatprep.subr.bf16.mxu0 %v2891
    %3102 = vmatpush1.bf16.msra.mxu0 %v2890
    %3103 = vmatprep.subr.bf16.mxu0 %v2895
    %3104 = vmatpush1.bf16.msra.mxu0 %v2894
    %3105 = vmatprep.subr.bf16.mxu0 %v2899
    %3106 = vmatpush1.bf16.msra.mxu0 %v2898
    %3107 = vmatprep.subr.bf16.mxu0 %v2903
    %3108 = vmatpush1.bf16.msra.mxu0 %v2902
    %3109 = vmatprep.subr.bf16.mxu0 %v2907
    %3110 = vmatpush1.bf16.msra.mxu0 %v2906
    %3111 = vmatprep.mubr.bf16.mxu0 %v2247
    %3112 = vmatmul.mubr.bf16.gmra.mrb[0].mxu0 %v2246
    %v3113 = vpop.f32.mrb[0].mxu0
    %v3114 = vadd.f32 %v3073, %v3113
    %v3115 = vpop.f32.mrb[0].mxu0
    %v3116 = vadd.f32 %v3075, %v3115
    %v3117 = vpop.f32.mrb[0].mxu0
    %v3118 = vpop.f32.mrb[0].mxu0
    %3119 = vdwg.mxu0
    %3120 = vmatprep.subr.bf16.mxu0 %v2785
    %3121 = vmatpush1.bf16.msra.mxu0 %v2784
    %3122 = vmatprep.subr.bf16.mxu0 %v2789
    %3123 = vmatpush1.bf16.msra.mxu0 %v2788
    %3124 = vmatprep.subr.bf16.mxu0 %v2793
    %3125 = vmatpush1.bf16.msra.mxu0 %v2792
    %3126 = vmatprep.subr.bf16.mxu0 %v2797
    %3127 = vmatpush1.bf16.msra.mxu0 %v2796
    %3128 = vmatprep.subr.bf16.mxu0 %v2801
    %3129 = vmatpush1.bf16.msra.mxu0 %v2800
    %3130 = vmatprep.subr.bf16.mxu0 %v2805
    %3131 = vmatpush1.bf16.msra.mxu0 %v2804
    %3132 = vmatprep.subr.bf16.mxu0 %v2809
    %3133 = vmatpush1.bf16.msra.mxu0 %v2808
    %3134 = vmatprep.subr.bf16.mxu0 %v2813
    %3135 = vmatpush1.bf16.msra.mxu0 %v2812
    %3136 = vmatprep.subr.bf16.mxu0 %v2817
    %3137 = vmatpush1.bf16.msra.mxu0 %v2816
    %3138 = vmatprep.subr.bf16.mxu0 %v2821
    %3139 = vmatpush1.bf16.msra.mxu0 %v2820
    %3140 = vmatprep.subr.bf16.mxu0 %v2825
    %3141 = vmatpush1.bf16.msra.mxu0 %v2824
    %3142 = vmatprep.subr.bf16.mxu0 %v2829
    %3143 = vmatpush1.bf16.msra.mxu0 %v2828
    %3144 = vmatprep.subr.bf16.mxu0 %v2833
    %3145 = vmatpush1.bf16.msra.mxu0 %v2832
    %3146 = vmatprep.subr.bf16.mxu0 %v2837
    %3147 = vmatpush1.bf16.msra.mxu0 %v2836
    %3148 = vmatprep.subr.bf16.mxu0 %v2841
    %3149 = vmatpush1.bf16.msra.mxu0 %v2840
    %3150 = vmatprep.subr.bf16.mxu0 %v2845
    %3151 = vmatpush1.bf16.msra.mxu0 %v2844
    %3152 = vmatprep.mubr.bf16.mxu0 %v2245
    %3153 = vmatmul.mubr.bf16.gmra.mrb[0].mxu0 %v2244
    %v3154 = vpop.f32.mrb[0].mxu0
    %v3155 = vadd.f32 %v2389, %v3154
    %v3156 = vpop.f32.mrb[0].mxu0
    %v3157 = vadd.f32 %v2393, %v3156
    %v3158 = vpop.f32.mrb[0].mxu0
    %v3159 = vpop.f32.mrb[0].mxu0
    %3160 = vdwg.mxu0
    %3161 = vmatprep.subr.bf16.mxu0 %v2849
    %3162 = vmatpush1.bf16.msra.mxu0 %v2848
    %3163 = vmatprep.subr.bf16.mxu0 %v2853
    %3164 = vmatpush1.bf16.msra.mxu0 %v2852
    %3165 = vmatprep.subr.bf16.mxu0 %v2857
    %3166 = vmatpush1.bf16.msra.mxu0 %v2856
    %3167 = vmatprep.subr.bf16.mxu0 %v2861
    %3168 = vmatpush1.bf16.msra.mxu0 %v2860
    %3169 = vmatprep.subr.bf16.mxu0 %v2865
    %3170 = vmatpush1.bf16.msra.mxu0 %v2864
    %3171 = vmatprep.subr.bf16.mxu0 %v2869
    %3172 = vmatpush1.bf16.msra.mxu0 %v2868
    %3173 = vmatprep.subr.bf16.mxu0 %v2873
    %3174 = vmatpush1.bf16.msra.mxu0 %v2872
    %3175 = vmatprep.subr.bf16.mxu0 %v2877
    %3176 = vmatpush1.bf16.msra.mxu0 %v2876
    %3177 = vmatprep.subr.bf16.mxu0 %v2881
    %3178 = vmatpush1.bf16.msra.mxu0 %v2880
    %3179 = vmatprep.subr.bf16.mxu0 %v2885
    %3180 = vmatpush1.bf16.msra.mxu0 %v2884
    %3181 = vmatprep.subr.bf16.mxu0 %v2889
    %3182 = vmatpush1.bf16.msra.mxu0 %v2888
    %3183 = vmatprep.subr.bf16.mxu0 %v2893
    %3184 = vmatpush1.bf16.msra.mxu0 %v2892
    %3185 = vmatprep.subr.bf16.mxu0 %v2897
    %3186 = vmatpush1.bf16.msra.mxu0 %v2896
    %3187 = vmatprep.subr.bf16.mxu0 %v2901
    %3188 = vmatpush1.bf16.msra.mxu0 %v2900
    %3189 = vmatprep.subr.bf16.mxu0 %v2905
    %3190 = vmatpush1.bf16.msra.mxu0 %v2904
    %3191 = vmatprep.subr.bf16.mxu0 %v2909
    %3192 = vmatpush1.bf16.msra.mxu0 %v2908
    %3193 = vmatprep.mubr.bf16.mxu0 %v2247
    %3194 = vmatmul.mubr.bf16.gmra.mrb[0].mxu0 %v2246
    %v3195 = vpop.f32.mrb[0].mxu0
    %v3196 = vadd.f32 %v3155, %v3195
    %v3197 = vpop.f32.mrb[0].mxu0
    %v3198 = vadd.f32 %v3157, %v3197
    %v3199 = vpop.f32.mrb[0].mxu0
    %v3200 = vpop.f32.mrb[0].mxu0
    %3201 = vdwg.mxu0
    %v3202 = vmax.f32 %v3114, 0.0
    %v3203 = vmax.f32 %v3116, 0.0
    %v3204 = vmax.f32 %v3196, 0.0
    %v3205 = vmax.f32 %v3198, 0.0
    %v3206 = vpack.c.bf16 %v3202, %v3202
    %v3207 = vpack.c.bf16 %v3203, %v3203
    %v3208 = vpack.c.bf16 %v3204, %v3204
    %v3209 = vpack.c.bf16 %v3205, %v3205
    %v3210 = vld [vmem:[%s13] sm:$0xf]
    %v3211 = vld [vmem:[%s13 + $0x4] sm:$0xf]
    %v3212 = vld [vmem:[%s13 + $0x8] sm:$0xf]
    %v3213 = vld [vmem:[%s13 + $0xc] sm:$0xf]
    %v3214 = vld [vmem:[%s13 + $0x10] sm:$0xf]
    %v3215 = vld [vmem:[%s13 + $0x14] sm:$0xf]
    %v3216 = vld [vmem:[%s13 + $0x18] sm:$0xf]
    %v3217 = vld [vmem:[%s13 + $0x1c] sm:$0xf]
    %v3218 = vld [vmem:[%s13 + $0x20] sm:$0xf]
    %v3219 = vld [vmem:[%s13 + $0x24] sm:$0xf]
    %v3220 = vld [vmem:[%s13 + $0x28] sm:$0xf]
    %v3221 = vld [vmem:[%s13 + $0x2c] sm:$0xf]
    %v3222 = vld [vmem:[%s13 + $0x30] sm:$0xf]
    %v3223 = vld [vmem:[%s13 + $0x34] sm:$0xf]
    %v3224 = vld [vmem:[%s13 + $0x38] sm:$0xf]
    %v3225 = vld [vmem:[%s13 + $0x3c] sm:$0xf]
    %v3226 = vld [vmem:[%s13 + $0x40] sm:$0xf]
    %v3227 = vld [vmem:[%s13 + $0x44] sm:$0xf]
    %v3228 = vld [vmem:[%s13 + $0x48] sm:$0xf]
    %v3229 = vld [vmem:[%s13 + $0x4c] sm:$0xf]
    %v3230 = vld [vmem:[%s13 + $0x50] sm:$0xf]
    %v3231 = vld [vmem:[%s13 + $0x54] sm:$0xf]
    %v3232 = vld [vmem:[%s13 + $0x58] sm:$0xf]
    %v3233 = vld [vmem:[%s13 + $0x5c] sm:$0xf]
    %v3234 = vld [vmem:[%s13 + $0x60] sm:$0xf]
    %v3235 = vld [vmem:[%s13 + $0x64] sm:$0xf]
    %v3236 = vld [vmem:[%s13 + $0x68] sm:$0xf]
    %v3237 = vld [vmem:[%s13 + $0x6c] sm:$0xf]
    %v3238 = vld [vmem:[%s13 + $0x70] sm:$0xf]
    %v3239 = vld [vmem:[%s13 + $0x74] sm:$0xf]
    %v3240 = vld [vmem:[%s13 + $0x78] sm:$0xf]
    %v3241 = vld [vmem:[%s13 + $0x7c] sm:$0xf]
    %v3242 = vld [vmem:[%s13 + $0x80] sm:$0xf]
    %v3243 = vld [vmem:[%s13 + $0x84] sm:$0xf]
    %v3244 = vld [vmem:[%s13 + $0x88] sm:$0xf]
    %v3245 = vld [vmem:[%s13 + $0x8c] sm:$0xf]
    %v3246 = vld [vmem:[%s13 + $0x90] sm:$0xf]
    %v3247 = vld [vmem:[%s13 + $0x94] sm:$0xf]
    %v3248 = vld [vmem:[%s13 + $0x98] sm:$0xf]
    %v3249 = vld [vmem:[%s13 + $0x9c] sm:$0xf]
    %v3250 = vld [vmem:[%s13 + $0xa0] sm:$0xf]
    %v3251 = vld [vmem:[%s13 + $0xa4] sm:$0xf]
    %v3252 = vld [vmem:[%s13 + $0xa8] sm:$0xf]
    %v3253 = vld [vmem:[%s13 + $0xac] sm:$0xf]
    %v3254 = vld [vmem:[%s13 + $0xb0] sm:$0xf]
    %v3255 = vld [vmem:[%s13 + $0xb4] sm:$0xf]
    %v3256 = vld [vmem:[%s13 + $0xb8] sm:$0xf]
    %v3257 = vld [vmem:[%s13 + $0xbc] sm:$0xf]
    %v3258 = vld [vmem:[%s13 + $0xc0] sm:$0xf]
    %v3259 = vld [vmem:[%s13 + $0xc4] sm:$0xf]
    %v3260 = vld [vmem:[%s13 + $0xc8] sm:$0xf]
    %v3261 = vld [vmem:[%s13 + $0xcc] sm:$0xf]
    %v3262 = vld [vmem:[%s13 + $0xd0] sm:$0xf]
    %v3263 = vld [vmem:[%s13 + $0xd4] sm:$0xf]
    %v3264 = vld [vmem:[%s13 + $0xd8] sm:$0xf]
    %v3265 = vld [vmem:[%s13 + $0xdc] sm:$0xf]
    %v3266 = vld [vmem:[%s13 + $0xe0] sm:$0xf]
    %v3267 = vld [vmem:[%s13 + $0xe4] sm:$0xf]
    %v3268 = vld [vmem:[%s13 + $0xe8] sm:$0xf]
    %v3269 = vld [vmem:[%s13 + $0xec] sm:$0xf]
    %v3270 = vld [vmem:[%s13 + $0xf0] sm:$0xf]
    %v3271 = vld [vmem:[%s13 + $0xf4] sm:$0xf]
    %v3272 = vld [vmem:[%s13 + $0xf8] sm:$0xf]
    %v3273 = vld [vmem:[%s13 + $0xfc] sm:$0xf]
    %v3274 = vld [vmem:[%s14] sm:$0x1]
    %v3276 = vlaneseq
    %v3277 = vshrl.u32 %v3276, 7
    %v3278 = vsub.s32 0, %v3277
    %v3279 = vrot.slane %v3274, %v3278
    %v3345 = vunpack.c.l.b16 %v3210
    %v3346 = vunpack.c.l.b16 %v3211
    %v3347 = vunpack.c.l.b16 %v3212
    %v3348 = vunpack.c.l.b16 %v3213
    %v3349 = vunpack.c.l.b16 %v3214
    %v3350 = vunpack.c.l.b16 %v3215
    %v3351 = vunpack.c.l.b16 %v3216
    %v3352 = vunpack.c.l.b16 %v3217
    %v3353 = vunpack.c.l.b16 %v3218
    %v3354 = vunpack.c.l.b16 %v3219
    %v3355 = vunpack.c.l.b16 %v3220
    %v3356 = vunpack.c.l.b16 %v3221
    %v3357 = vunpack.c.l.b16 %v3222
    %v3358 = vunpack.c.l.b16 %v3223
    %v3359 = vunpack.c.l.b16 %v3224
    %v3360 = vunpack.c.l.b16 %v3225
    %v3361 = vunpack.c.l.b16 %v3226
    %v3362 = vunpack.c.l.b16 %v3227
    %v3363 = vunpack.c.l.b16 %v3228
    %v3364 = vunpack.c.l.b16 %v3229
    %v3365 = vunpack.c.l.b16 %v3230
    %v3366 = vunpack.c.l.b16 %v3231
    %v3367 = vunpack.c.l.b16 %v3232
    %v3368 = vunpack.c.l.b16 %v3233
    %v3369 = vunpack.c.l.b16 %v3234
    %v3370 = vunpack.c.l.b16 %v3235
    %v3371 = vunpack.c.l.b16 %v3236
    %v3372 = vunpack.c.l.b16 %v3237
    %v3373 = vunpack.c.l.b16 %v3238
    %v3374 = vunpack.c.l.b16 %v3239
    %v3375 = vunpack.c.l.b16 %v3240
    %v3376 = vunpack.c.l.b16 %v3241
    %v3377 = vunpack.c.l.b16 %v3242
    %v3378 = vunpack.c.l.b16 %v3243
    %v3379 = vunpack.c.l.b16 %v3244
    %v3380 = vunpack.c.l.b16 %v3245
    %v3381 = vunpack.c.l.b16 %v3246
    %v3382 = vunpack.c.l.b16 %v3247
    %v3383 = vunpack.c.l.b16 %v3248
    %v3384 = vunpack.c.l.b16 %v3249
    %v3385 = vunpack.c.l.b16 %v3250
    %v3386 = vunpack.c.l.b16 %v3251
    %v3387 = vunpack.c.l.b16 %v3252
    %v3388 = vunpack.c.l.b16 %v3253
    %v3389 = vunpack.c.l.b16 %v3254
    %v3390 = vunpack.c.l.b16 %v3255
    %v3391 = vunpack.c.l.b16 %v3256
    %v3392 = vunpack.c.l.b16 %v3257
    %v3393 = vunpack.c.l.b16 %v3258
    %v3394 = vunpack.c.l.b16 %v3259
    %v3395 = vunpack.c.l.b16 %v3260
    %v3396 = vunpack.c.l.b16 %v3261
    %v3397 = vunpack.c.l.b16 %v3262
    %v3398 = vunpack.c.l.b16 %v3263
    %v3399 = vunpack.c.l.b16 %v3264
    %v3400 = vunpack.c.l.b16 %v3265
    %v3401 = vunpack.c.l.b16 %v3266
    %v3402 = vunpack.c.l.b16 %v3267
    %v3403 = vunpack.c.l.b16 %v3268
    %v3404 = vunpack.c.l.b16 %v3269
    %v3405 = vunpack.c.l.b16 %v3270
    %v3406 = vunpack.c.l.b16 %v3271
    %v3407 = vunpack.c.l.b16 %v3272
    %v3408 = vunpack.c.l.b16 %v3273
    %v3409 = vpack.c.b16 %v3346, %v3345
    %v3410 = vpack.c.b16 %v3348, %v3347
    %v3411 = vpack.c.b16 %v3350, %v3349
    %v3412 = vpack.c.b16 %v3352, %v3351
    %v3413 = vpack.c.b16 %v3354, %v3353
    %v3414 = vpack.c.b16 %v3356, %v3355
    %v3415 = vpack.c.b16 %v3358, %v3357
    %v3416 = vpack.c.b16 %v3360, %v3359
    %v3417 = vpack.c.b16 %v3362, %v3361
    %v3418 = vpack.c.b16 %v3364, %v3363
    %v3419 = vpack.c.b16 %v3366, %v3365
    %v3420 = vpack.c.b16 %v3368, %v3367
    %v3421 = vpack.c.b16 %v3370, %v3369
    %v3422 = vpack.c.b16 %v3372, %v3371
    %v3423 = vpack.c.b16 %v3374, %v3373
    %v3424 = vpack.c.b16 %v3376, %v3375
    %v3425 = vpack.c.b16 %v3378, %v3377
    %v3426 = vpack.c.b16 %v3380, %v3379
    %v3427 = vpack.c.b16 %v3382, %v3381
    %v3428 = vpack.c.b16 %v3384, %v3383
    %v3429 = vpack.c.b16 %v3386, %v3385
    %v3430 = vpack.c.b16 %v3388, %v3387
    %v3431 = vpack.c.b16 %v3390, %v3389
    %v3432 = vpack.c.b16 %v3392, %v3391
    %v3433 = vpack.c.b16 %v3394, %v3393
    %v3434 = vpack.c.b16 %v3396, %v3395
    %v3435 = vpack.c.b16 %v3398, %v3397
    %v3436 = vpack.c.b16 %v3400, %v3399
    %v3437 = vpack.c.b16 %v3402, %v3401
    %v3438 = vpack.c.b16 %v3404, %v3403
    %v3439 = vpack.c.b16 %v3406, %v3405
    %v3440 = vpack.c.b16 %v3408, %v3407
    %3473 = vmatprep.subr.bf16.mxu0 0
    %3474 = vmatpush1.bf16.msra.mxu0 %v3409
    %3475 = vmatprep.subr.bf16.mxu0 0
    %3476 = vmatpush1.bf16.msra.mxu0 %v3410
    %3477 = vmatprep.subr.bf16.mxu0 0
    %3478 = vmatpush1.bf16.msra.mxu0 %v3411
    %3479 = vmatprep.subr.bf16.mxu0 0
    %3480 = vmatpush1.bf16.msra.mxu0 %v3412
    %3481 = vmatprep.subr.bf16.mxu0 0
    %3482 = vmatpush1.bf16.msra.mxu0 %v3413
    %3483 = vmatprep.subr.bf16.mxu0 0
    %3484 = vmatpush1.bf16.msra.mxu0 %v3414
    %3485 = vmatprep.subr.bf16.mxu0 0
    %3486 = vmatpush1.bf16.msra.mxu0 %v3415
    %3487 = vmatprep.subr.bf16.mxu0 0
    %3488 = vmatpush1.bf16.msra.mxu0 %v3416
    %3489 = vmatprep.subr.bf16.mxu0 0
    %3490 = vmatpush1.bf16.msra.mxu0 %v3417
    %3491 = vmatprep.subr.bf16.mxu0 0
    %3492 = vmatpush1.bf16.msra.mxu0 %v3418
    %3493 = vmatprep.subr.bf16.mxu0 0
    %3494 = vmatpush1.bf16.msra.mxu0 %v3419
    %3495 = vmatprep.subr.bf16.mxu0 0
    %3496 = vmatpush1.bf16.msra.mxu0 %v3420
    %3497 = vmatprep.subr.bf16.mxu0 0
    %3498 = vmatpush1.bf16.msra.mxu0 %v3421
    %3499 = vmatprep.subr.bf16.mxu0 0
    %3500 = vmatpush1.bf16.msra.mxu0 %v3422
    %3501 = vmatprep.subr.bf16.mxu0 0
    %3502 = vmatpush1.bf16.msra.mxu0 %v3423
    %3503 = vmatprep.subr.bf16.mxu0 0
    %3504 = vmatpush1.bf16.msra.mxu0 %v3424
    %3505 = vmatprep.mubr.bf16.mxu0 %v3207
    %3506 = vmatmul.mubr.bf16.gmra.mrb[0].mxu0 %v3206
    %v3507 = vpop.f32.mrb[0].mxu0
    %v3508 = vadd.f32 %v3279, %v3507
    %v3509 = vpop.f32.mrb[0].mxu0
    %v3510 = vpop.f32.mrb[0].mxu0
    %v3511 = vpop.f32.mrb[0].mxu0
    %3512 = vdwg.mxu0
    %3513 = vmatprep.subr.bf16.mxu0 0
    %3514 = vmatpush1.bf16.msra.mxu0 %v3425
    %3515 = vmatprep.subr.bf16.mxu0 0
    %3516 = vmatpush1.bf16.msra.mxu0 %v3426
    %3517 = vmatprep.subr.bf16.mxu0 0
    %3518 = vmatpush1.bf16.msra.mxu0 %v3427
    %3519 = vmatprep.subr.bf16.mxu0 0
    %3520 = vmatpush1.bf16.msra.mxu0 %v3428
    %3521 = vmatprep.subr.bf16.mxu0 0
    %3522 = vmatpush1.bf16.msra.mxu0 %v3429
    %3523 = vmatprep.subr.bf16.mxu0 0
    %3524 = vmatpush1.bf16.msra.mxu0 %v3430
    %3525 = vmatprep.subr.bf16.mxu0 0
    %3526 = vmatpush1.bf16.msra.mxu0 %v3431
    %3527 = vmatprep.subr.bf16.mxu0 0
    %3528 = vmatpush1.bf16.msra.mxu0 %v3432
    %3529 = vmatprep.subr.bf16.mxu0 0
    %3530 = vmatpush1.bf16.msra.mxu0 %v3433
    %3531 = vmatprep.subr.bf16.mxu0 0
    %3532 = vmatpush1.bf16.msra.mxu0 %v3434
    %3533 = vmatprep.subr.bf16.mxu0 0
    %3534 = vmatpush1.bf16.msra.mxu0 %v3435
    %3535 = vmatprep.subr.bf16.mxu0 0
    %3536 = vmatpush1.bf16.msra.mxu0 %v3436
    %3537 = vmatprep.subr.bf16.mxu0 0
    %3538 = vmatpush1.bf16.msra.mxu0 %v3437
    %3539 = vmatprep.subr.bf16.mxu0 0
    %3540 = vmatpush1.bf16.msra.mxu0 %v3438
    %3541 = vmatprep.subr.bf16.mxu0 0
    %3542 = vmatpush1.bf16.msra.mxu0 %v3439
    %3543 = vmatprep.subr.bf16.mxu0 0
    %3544 = vmatpush1.bf16.msra.mxu0 %v3440
    %3545 = vmatprep.mubr.bf16.mxu0 %v3209
    %3546 = vmatmul.mubr.bf16.gmra.mrb[0].mxu0 %v3208
    %v3547 = vpop.f32.mrb[0].mxu0
    %v3548 = vadd.f32 %v3508, %v3547
    %v3549 = vpop.f32.mrb[0].mxu0
    %v3550 = vpop.f32.mrb[0].mxu0
    %v3551 = vpop.f32.mrb[0].mxu0
    %3552 = vdwg.mxu0
    %v3553 = vmax.f32 %v3548, 0.0
    %v3554 = vand.u32 2147483647, %v3548
    %v3555 = vsub.f32 0.0, %v3554
    %v3556 = vmul.f32 %v3555, 1.442695
    %v3557 = vpow.pop %v3556
    %v3558 = vadd.f32 %v3557, 1.0
    %v3559 = vlog2.pop %v3558
    %v3560 = vmul.f32 %v3559, 0.6931472
    %v3561 = vmul.f32 -0.5, %v3557
    %v3562 = vadd.f32 %v3561, 1.0
    %v3563 = vmul.f32 %v3562, %v3557
    %v3564 = vand.u32 2147483647, %v3557
    %vm3565 = vcmp.lt.f32.partialorder %v3564, 0.0004427343
    %v3566 = vsel %vm3565, %v3563, %v3560
    %v3567 = vadd.f32 %v3553, %v3566
    %v3568 = vadd.f32 %v3567, 1e-10
    %v3569 = vrsqrt.pop %v3568
    %v3570 = vmul.f32 %v3568, %v3569
    %vm3571 = vcmp.eq.f32.partialorder %v3568, inf
    %v3572 = vsel %vm3571, %v3568, %v3570
    %vm3573 = vcmp.eq.f32.partialorder %v3568, 0.0
    %v3574 = vand.u32 %v3568, 2147483648
    %v3575 = vsel %vm3573, %v3574, %v3572
    %3577 = vrot.lane.b32.xlu0 %v3575, 118
    %v3578 = vpop.permute.xlu0 %3577
    %v3580 = vmul.f32 %v129, %v3578
    %v3581 = vadd.f32 %v3548, %v3580
    %v3582 = vld [vmem:[%s10] sm:$0x1]
    %v3584 = vlaneseq
    %v3585 = vshrl.u32 %v3584, 7
    %v3586 = vsub.s32 0, %v3585
    %v3587 = vrot.slane %v3582, %v3586
    %v3589 = vadd.f32 %v2205, %v3587
    %v3590 = vmax.f32 %v3589, 0.0
    %v3591 = vand.u32 2147483647, %v3589
    %v3592 = vsub.f32 0.0, %v3591
    %v3593 = vmul.f32 %v3592, 1.442695
    %v3594 = vpow.pop %v3593
    %v3595 = vadd.f32 %v3594, 1.0
    %v3596 = vlog2.pop %v3595
    %v3597 = vmul.f32 %v3596, 0.6931472
    %v3598 = vmul.f32 -0.5, %v3594
    %v3599 = vadd.f32 %v3598, 1.0
    %v3600 = vmul.f32 %v3599, %v3594
    %v3601 = vand.u32 2147483647, %v3594
    %vm3602 = vcmp.lt.f32.partialorder %v3601, 0.0004427343
    %v3603 = vsel %vm3602, %v3600, %v3597
    %v3604 = vadd.f32 %v3590, %v3603
    %v3605 = vpack.c.bf16 %v3581, %v3581
    %v3606 = vld [vmem:[%s15] sm:$0xff]
    %v3607 = vld [vmem:[%s15 + $0x8] sm:$0xff]
    %v3608 = vld [vmem:[%s15 + $0x10] sm:$0x11]
    %v3609 = vld [vmem:[%s15 + $0x18] sm:$0x11]
    %v3610 = vld [vmem:[%s16] sm:$0xf]
    %v3612 = vlaneseq
    %v3613 = vshrl.u32 %v3612, 7
    %v3614 = vsub.s32 0, %v3613
    %v3615 = vrot.slane %v3610, %v3614
    %v3616 = vlaneseq
    %v3617 = vshrl.u32 %v3616, 7
    %v3618 = vsub.s32 1, %v3617
    %v3619 = vrot.slane %v3610, %v3618
    %v3620 = vlaneseq
    %v3621 = vshrl.u32 %v3620, 7
    %v3622 = vsub.s32 2, %v3621
    %v3623 = vrot.slane %v3610, %v3622
    %v3624 = vlaneseq
    %v3625 = vshrl.u32 %v3624, 7
    %v3626 = vsub.s32 3, %v3625
    %v3627 = vrot.slane %v3610, %v3626
    %v3636 = vunpack.c.l.b16 %v3606
    %v3637 = vunpack.c.h.b16 %v3606
    %v3638 = vunpack.c.l.b16 %v3607
    %v3639 = vunpack.c.h.b16 %v3607
    %v3640 = vunpack.c.l.b16 %v3608
    %v3641 = vunpack.c.h.b16 %v3608
    %v3642 = vunpack.c.l.b16 %v3609
    %v3643 = vunpack.c.h.b16 %v3609
    %v3644 = vpack.c.b16 %v3640, %v3636
    %v3645 = vpack.c.b16 %v3641, %v3637
    %v3646 = vpack.c.b16 %v3642, %v3638
    %v3647 = vpack.c.b16 %v3643, %v3639
    %v3649 = vsel %vm2017, %v3605, 0
    %v3652 = vsel %vm2072, %v3644, 0
    %v3655 = vsel %vm2072, %v3645, 0
    %v3658 = vsel %vm2072, %v3646, 0
    %v3661 = vsel %vm2072, %v3647, 0
    %3663 = vmatprep.subr.bf16.mxu0 %v3655
    %3664 = vmatpush1.bf16.msra.mxu0 %v3652
    %3665 = vmatprep.subr.bf16.mxu0 0
    %3666 = vmatpush1.bf16.msra.mxu0 0
    %3667 = vmatprep.subr.bf16.mxu0 0
    %3668 = vmatpush1.bf16.msra.mxu0 0
    %3669 = vmatprep.subr.bf16.mxu0 0
    %3670 = vmatpush1.bf16.msra.mxu0 0
    %3671 = vmatprep.subr.bf16.mxu0 0
    %3672 = vmatpush1.bf16.msra.mxu0 0
    %3673 = vmatprep.subr.bf16.mxu0 0
    %3674 = vmatpush1.bf16.msra.mxu0 0
    %3675 = vmatprep.subr.bf16.mxu0 0
    %3676 = vmatpush1.bf16.msra.mxu0 0
    %3677 = vmatprep.subr.bf16.mxu0 0
    %3678 = vmatpush1.bf16.msra.mxu0 0
    %3679 = vmatprep.subr.bf16.mxu0 0
    %3680 = vmatpush1.bf16.msra.mxu0 0
    %3681 = vmatprep.subr.bf16.mxu0 0
    %3682 = vmatpush1.bf16.msra.mxu0 0
    %3683 = vmatprep.subr.bf16.mxu0 0
    %3684 = vmatpush1.bf16.msra.mxu0 0
    %3685 = vmatprep.subr.bf16.mxu0 0
    %3686 = vmatpush1.bf16.msra.mxu0 0
    %3687 = vmatprep.subr.bf16.mxu0 0
    %3688 = vmatpush1.bf16.msra.mxu0 0
    %3689 = vmatprep.subr.bf16.mxu0 0
    %3690 = vmatpush1.bf16.msra.mxu0 0
    %3691 = vmatprep.subr.bf16.mxu0 0
    %3692 = vmatpush1.bf16.msra.mxu0 0
    %3693 = vmatprep.subr.bf16.mxu0 0
    %3694 = vmatpush1.bf16.msra.mxu0 0
    %3695 = vmatprep.mubr.bf16.mxu0 0
    %3696 = vmatmul.mubr.bf16.gmra.mrb[0].mxu0 %v3649
    %v3697 = vpop.f32.mrb[0].mxu0
    %v3698 = vadd.f32 %v3615, %v3697
    %v3699 = vpop.f32.mrb[0].mxu0
    %v3700 = vadd.f32 %v3619, %v3699
    %v3701 = vpop.f32.mrb[0].mxu0
    %v3702 = vpop.f32.mrb[0].mxu0
    %3703 = vdwg.mxu0
    %3704 = vmatprep.subr.bf16.mxu0 %v3661
    %3705 = vmatpush1.bf16.msra.mxu0 %v3658
    %3706 = vmatprep.subr.bf16.mxu0 0
    %3707 = vmatpush1.bf16.msra.mxu0 0
    %3708 = vmatprep.subr.bf16.mxu0 0
    %3709 = vmatpush1.bf16.msra.mxu0 0
    %3710 = vmatprep.subr.bf16.mxu0 0
    %3711 = vmatpush1.bf16.msra.mxu0 0
    %3712 = vmatprep.subr.bf16.mxu0 0
    %3713 = vmatpush1.bf16.msra.mxu0 0
    %3714 = vmatprep.subr.bf16.mxu0 0
    %3715 = vmatpush1.bf16.msra.mxu0 0
    %3716 = vmatprep.subr.bf16.mxu0 0
    %3717 = vmatpush1.bf16.msra.mxu0 0
    %3718 = vmatprep.subr.bf16.mxu0 0
    %3719 = vmatpush1.bf16.msra.mxu0 0
    %3720 = vmatprep.subr.bf16.mxu0 0
    %3721 = vmatpush1.bf16.msra.mxu0 0
    %3722 = vmatprep.subr.bf16.mxu0 0
    %3723 = vmatpush1.bf16.msra.mxu0 0
    %3724 = vmatprep.subr.bf16.mxu0 0
    %3725 = vmatpush1.bf16.msra.mxu0 0
    %3726 = vmatprep.subr.bf16.mxu0 0
    %3727 = vmatpush1.bf16.msra.mxu0 0
    %3728 = vmatprep.subr.bf16.mxu0 0
    %3729 = vmatpush1.bf16.msra.mxu0 0
    %3730 = vmatprep.subr.bf16.mxu0 0
    %3731 = vmatpush1.bf16.msra.mxu0 0
    %3732 = vmatprep.subr.bf16.mxu0 0
    %3733 = vmatpush1.bf16.msra.mxu0 0
    %3734 = vmatprep.subr.bf16.mxu0 0
    %3735 = vmatpush1.bf16.msra.mxu0 0
    %3736 = vmatprep.mubr.bf16.mxu0 0
    %3737 = vmatmul.mubr.bf16.gmra.mrb[0].mxu0 %v3649
    %v3738 = vpop.f32.mrb[0].mxu0
    %v3739 = vadd.f32 %v3623, %v3738
    %v3740 = vpop.f32.mrb[0].mxu0
    %v3741 = vadd.f32 %v3627, %v3740
    %v3742 = vpop.f32.mrb[0].mxu0
    %v3743 = vpop.f32.mrb[0].mxu0
    %3744 = vdwg.mxu0
    %v3745 = vmax.f32 %v3698, 0.0
    %v3746 = vmax.f32 %v3700, 0.0
    %v3747 = vmax.f32 %v3739, 0.0
    %v3748 = vmax.f32 %v3741, 0.0
    %v3749 = vpack.c.bf16 %v3745, %v3745
    %v3750 = vpack.c.bf16 %v3746, %v3746
    %v3751 = vpack.c.bf16 %v3747, %v3747
    %v3752 = vpack.c.bf16 %v3748, %v3748
    %v3753 = vld [vmem:[#allocation7] sm:$0xff]
    %v3754 = vld [vmem:[#allocation7 + $0x8] sm:$0xff]
    %v3755 = vld [vmem:[#allocation7 + $0x10] sm:$0xff]
    %v3756 = vld [vmem:[#allocation7 + $0x18] sm:$0xff]
    %v3757 = vld [vmem:[#allocation7 + $0x20] sm:$0xff]
    %v3758 = vld [vmem:[#allocation7 + $0x28] sm:$0xff]
    %v3759 = vld [vmem:[#allocation7 + $0x30] sm:$0xff]
    %v3760 = vld [vmem:[#allocation7 + $0x38] sm:$0xff]
    %v3761 = vld [vmem:[#allocation7 + $0x40] sm:$0xff]
    %v3762 = vld [vmem:[#allocation7 + $0x48] sm:$0xff]
    %v3763 = vld [vmem:[#allocation7 + $0x50] sm:$0xff]
    %v3764 = vld [vmem:[#allocation7 + $0x58] sm:$0xff]
    %v3765 = vld [vmem:[#allocation7 + $0x60] sm:$0xff]
    %v3766 = vld [vmem:[#allocation7 + $0x68] sm:$0xff]
    %v3767 = vld [vmem:[#allocation7 + $0x70] sm:$0xff]
    %v3768 = vld [vmem:[#allocation7 + $0x78] sm:$0xff]
    %v3769 = vld [vmem:[#allocation7 + $0x80] sm:$0xff]
    %v3770 = vld [vmem:[#allocation7 + $0x88] sm:$0xff]
    %v3771 = vld [vmem:[#allocation7 + $0x90] sm:$0xff]
    %v3772 = vld [vmem:[#allocation7 + $0x98] sm:$0xff]
    %v3773 = vld [vmem:[#allocation7 + $0xa0] sm:$0xff]
    %v3774 = vld [vmem:[#allocation7 + $0xa8] sm:$0xff]
    %v3775 = vld [vmem:[#allocation7 + $0xb0] sm:$0xff]
    %v3776 = vld [vmem:[#allocation7 + $0xb8] sm:$0xff]
    %v3777 = vld [vmem:[#allocation7 + $0xc0] sm:$0xff]
    %v3778 = vld [vmem:[#allocation7 + $0xc8] sm:$0xff]
    %v3779 = vld [vmem:[#allocation7 + $0xd0] sm:$0xff]
    %v3780 = vld [vmem:[#allocation7 + $0xd8] sm:$0xff]
    %v3781 = vld [vmem:[#allocation7 + $0xe0] sm:$0xff]
    %v3782 = vld [vmem:[#allocation7 + $0xe8] sm:$0xff]
    %v3783 = vld [vmem:[#allocation7 + $0xf0] sm:$0xff]
    %v3784 = vld [vmem:[#allocation7 + $0xf8] sm:$0xff]
    %v3785 = vld [vmem:[#allocation7 + $0x100] sm:$0xff]
    %v3786 = vld [vmem:[#allocation7 + $0x108] sm:$0xff]
    %v3787 = vld [vmem:[#allocation7 + $0x110] sm:$0xff]
    %v3788 = vld [vmem:[#allocation7 + $0x118] sm:$0xff]
    %v3789 = vld [vmem:[#allocation7 + $0x120] sm:$0xff]
    %v3790 = vld [vmem:[#allocation7 + $0x128] sm:$0xff]
    %v3791 = vld [vmem:[#allocation7 + $0x130] sm:$0xff]
    %v3792 = vld [vmem:[#allocation7 + $0x138] sm:$0xff]
    %v3793 = vld [vmem:[#allocation7 + $0x140] sm:$0xff]
    %v3794 = vld [vmem:[#allocation7 + $0x148] sm:$0xff]
    %v3795 = vld [vmem:[#allocation7 + $0x150] sm:$0xff]
    %v3796 = vld [vmem:[#allocation7 + $0x158] sm:$0xff]
    %v3797 = vld [vmem:[#allocation7 + $0x160] sm:$0xff]
    %v3798 = vld [vmem:[#allocation7 + $0x168] sm:$0xff]
    %v3799 = vld [vmem:[#allocation7 + $0x170] sm:$0xff]
    %v3800 = vld [vmem:[#allocation7 + $0x178] sm:$0xff]
    %v3801 = vld [vmem:[#allocation7 + $0x180] sm:$0xff]
    %v3802 = vld [vmem:[#allocation7 + $0x188] sm:$0xff]
    %v3803 = vld [vmem:[#allocation7 + $0x190] sm:$0xff]
    %v3804 = vld [vmem:[#allocation7 + $0x198] sm:$0xff]
    %v3805 = vld [vmem:[#allocation7 + $0x1a0] sm:$0xff]
    %v3806 = vld [vmem:[#allocation7 + $0x1a8] sm:$0xff]
    %v3807 = vld [vmem:[#allocation7 + $0x1b0] sm:$0xff]
    %v3808 = vld [vmem:[#allocation7 + $0x1b8] sm:$0xff]
    %v3809 = vld [vmem:[#allocation7 + $0x1c0] sm:$0xff]
    %v3810 = vld [vmem:[#allocation7 + $0x1c8] sm:$0xff]
    %v3811 = vld [vmem:[#allocation7 + $0x1d0] sm:$0xff]
    %v3812 = vld [vmem:[#allocation7 + $0x1d8] sm:$0xff]
    %v3813 = vld [vmem:[#allocation7 + $0x1e0] sm:$0xff]
    %v3814 = vld [vmem:[#allocation7 + $0x1e8] sm:$0xff]
    %v3815 = vld [vmem:[#allocation7 + $0x1f0] sm:$0xff]
    %v3816 = vld [vmem:[#allocation7 + $0x1f8] sm:$0xff]
    %v3817 = vld [vmem:[#allocation7 + $0x200] sm:$0xff]
    %v3818 = vld [vmem:[#allocation7 + $0x208] sm:$0xff]
    %v3819 = vld [vmem:[#allocation7 + $0x210] sm:$0xff]
    %v3820 = vld [vmem:[#allocation7 + $0x218] sm:$0xff]
    %v3821 = vld [vmem:[#allocation7 + $0x220] sm:$0xff]
    %v3822 = vld [vmem:[#allocation7 + $0x228] sm:$0xff]
    %v3823 = vld [vmem:[#allocation7 + $0x230] sm:$0xff]
    %v3824 = vld [vmem:[#allocation7 + $0x238] sm:$0xff]
    %v3825 = vld [vmem:[#allocation7 + $0x240] sm:$0xff]
    %v3826 = vld [vmem:[#allocation7 + $0x248] sm:$0xff]
    %v3827 = vld [vmem:[#allocation7 + $0x250] sm:$0xff]
    %v3828 = vld [vmem:[#allocation7 + $0x258] sm:$0xff]
    %v3829 = vld [vmem:[#allocation7 + $0x260] sm:$0xff]
    %v3830 = vld [vmem:[#allocation7 + $0x268] sm:$0xff]
    %v3831 = vld [vmem:[#allocation7 + $0x270] sm:$0xff]
    %v3832 = vld [vmem:[#allocation7 + $0x278] sm:$0xff]
    %v3833 = vld [vmem:[#allocation7 + $0x280] sm:$0xff]
    %v3834 = vld [vmem:[#allocation7 + $0x288] sm:$0xff]
    %v3835 = vld [vmem:[#allocation7 + $0x290] sm:$0xff]
    %v3836 = vld [vmem:[#allocation7 + $0x298] sm:$0xff]
    %v3837 = vld [vmem:[#allocation7 + $0x2a0] sm:$0xff]
    %v3838 = vld [vmem:[#allocation7 + $0x2a8] sm:$0xff]
    %v3839 = vld [vmem:[#allocation7 + $0x2b0] sm:$0xff]
    %v3840 = vld [vmem:[#allocation7 + $0x2b8] sm:$0xff]
    %v3841 = vld [vmem:[#allocation7 + $0x2c0] sm:$0xff]
    %v3842 = vld [vmem:[#allocation7 + $0x2c8] sm:$0xff]
    %v3843 = vld [vmem:[#allocation7 + $0x2d0] sm:$0xff]
    %v3844 = vld [vmem:[#allocation7 + $0x2d8] sm:$0xff]
    %v3845 = vld [vmem:[#allocation7 + $0x2e0] sm:$0xff]
    %v3846 = vld [vmem:[#allocation7 + $0x2e8] sm:$0xff]
    %v3847 = vld [vmem:[#allocation7 + $0x2f0] sm:$0xff]
    %v3848 = vld [vmem:[#allocation7 + $0x2f8] sm:$0xff]
    %v3849 = vld [vmem:[#allocation7 + $0x300] sm:$0xff]
    %v3850 = vld [vmem:[#allocation7 + $0x308] sm:$0xff]
    %v3851 = vld [vmem:[#allocation7 + $0x310] sm:$0xff]
    %v3852 = vld [vmem:[#allocation7 + $0x318] sm:$0xff]
    %v3853 = vld [vmem:[#allocation7 + $0x320] sm:$0xff]
    %v3854 = vld [vmem:[#allocation7 + $0x328] sm:$0xff]
    %v3855 = vld [vmem:[#allocation7 + $0x330] sm:$0xff]
    %v3856 = vld [vmem:[#allocation7 + $0x338] sm:$0xff]
    %v3857 = vld [vmem:[#allocation7 + $0x340] sm:$0xff]
    %v3858 = vld [vmem:[#allocation7 + $0x348] sm:$0xff]
    %v3859 = vld [vmem:[#allocation7 + $0x350] sm:$0xff]
    %v3860 = vld [vmem:[#allocation7 + $0x358] sm:$0xff]
    %v3861 = vld [vmem:[#allocation7 + $0x360] sm:$0xff]
    %v3862 = vld [vmem:[#allocation7 + $0x368] sm:$0xff]
    %v3863 = vld [vmem:[#allocation7 + $0x370] sm:$0xff]
    %v3864 = vld [vmem:[#allocation7 + $0x378] sm:$0xff]
    %v3865 = vld [vmem:[#allocation7 + $0x380] sm:$0xff]
    %v3866 = vld [vmem:[#allocation7 + $0x388] sm:$0xff]
    %v3867 = vld [vmem:[#allocation7 + $0x390] sm:$0xff]
    %v3868 = vld [vmem:[#allocation7 + $0x398] sm:$0xff]
    %v3869 = vld [vmem:[#allocation7 + $0x3a0] sm:$0xff]
    %v3870 = vld [vmem:[#allocation7 + $0x3a8] sm:$0xff]
    %v3871 = vld [vmem:[#allocation7 + $0x3b0] sm:$0xff]
    %v3872 = vld [vmem:[#allocation7 + $0x3b8] sm:$0xff]
    %v3873 = vld [vmem:[#allocation7 + $0x3c0] sm:$0xff]
    %v3874 = vld [vmem:[#allocation7 + $0x3c8] sm:$0xff]
    %v3875 = vld [vmem:[#allocation7 + $0x3d0] sm:$0xff]
    %v3876 = vld [vmem:[#allocation7 + $0x3d8] sm:$0xff]
    %v3877 = vld [vmem:[#allocation7 + $0x3e0] sm:$0xff]
    %v3878 = vld [vmem:[#allocation7 + $0x3e8] sm:$0xff]
    %v3879 = vld [vmem:[#allocation7 + $0x3f0] sm:$0xff]
    %v3880 = vld [vmem:[#allocation7 + $0x3f8] sm:$0xff]
    %v3881 = vld [vmem:[%s18] sm:$0xf]
    %v3883 = vlaneseq
    %v3884 = vshrl.u32 %v3883, 7
    %v3885 = vsub.s32 0, %v3884
    %v3886 = vrot.slane %v3881, %v3885
    %v3887 = vlaneseq
    %v3888 = vshrl.u32 %v3887, 7
    %v3889 = vsub.s32 1, %v3888
    %v3890 = vrot.slane %v3881, %v3889
    %v3891 = vlaneseq
    %v3892 = vshrl.u32 %v3891, 7
    %v3893 = vsub.s32 2, %v3892
    %v3894 = vrot.slane %v3881, %v3893
    %v3895 = vlaneseq
    %v3896 = vshrl.u32 %v3895, 7
    %v3897 = vsub.s32 3, %v3896
    %v3898 = vrot.slane %v3881, %v3897
    %v4031 = vunpack.c.l.b16 %v3753
    %v4032 = vunpack.c.h.b16 %v3753
    %v4033 = vunpack.c.l.b16 %v3754
    %v4034 = vunpack.c.h.b16 %v3754
    %v4035 = vunpack.c.l.b16 %v3755
    %v4036 = vunpack.c.h.b16 %v3755
    %v4037 = vunpack.c.l.b16 %v3756
    %v4038 = vunpack.c.h.b16 %v3756
    %v4039 = vunpack.c.l.b16 %v3757
    %v4040 = vunpack.c.h.b16 %v3757
    %v4041 = vunpack.c.l.b16 %v3758
    %v4042 = vunpack.c.h.b16 %v3758
    %v4043 = vunpack.c.l.b16 %v3759
    %v4044 = vunpack.c.h.b16 %v3759
    %v4045 = vunpack.c.l.b16 %v3760
    %v4046 = vunpack.c.h.b16 %v3760
    %v4047 = vunpack.c.l.b16 %v3761
    %v4048 = vunpack.c.h.b16 %v3761
    %v4049 = vunpack.c.l.b16 %v3762
    %v4050 = vunpack.c.h.b16 %v3762
    %v4051 = vunpack.c.l.b16 %v3763
    %v4052 = vunpack.c.h.b16 %v3763
    %v4053 = vunpack.c.l.b16 %v3764
    %v4054 = vunpack.c.h.b16 %v3764
    %v4055 = vunpack.c.l.b16 %v3765
    %v4056 = vunpack.c.h.b16 %v3765
    %v4057 = vunpack.c.l.b16 %v3766
    %v4058 = vunpack.c.h.b16 %v3766
    %v4059 = vunpack.c.l.b16 %v3767
    %v4060 = vunpack.c.h.b16 %v3767
    %v4061 = vunpack.c.l.b16 %v3768
    %v4062 = vunpack.c.h.b16 %v3768
    %v4063 = vunpack.c.l.b16 %v3769
    %v4064 = vunpack.c.h.b16 %v3769
    %v4065 = vunpack.c.l.b16 %v3770
    %v4066 = vunpack.c.h.b16 %v3770
    %v4067 = vunpack.c.l.b16 %v3771
    %v4068 = vunpack.c.h.b16 %v3771
    %v4069 = vunpack.c.l.b16 %v3772
    %v4070 = vunpack.c.h.b16 %v3772
    %v4071 = vunpack.c.l.b16 %v3773
    %v4072 = vunpack.c.h.b16 %v3773
    %v4073 = vunpack.c.l.b16 %v3774
    %v4074 = vunpack.c.h.b16 %v3774
    %v4075 = vunpack.c.l.b16 %v3775
    %v4076 = vunpack.c.h.b16 %v3775
    %v4077 = vunpack.c.l.b16 %v3776
    %v4078 = vunpack.c.h.b16 %v3776
    %v4079 = vunpack.c.l.b16 %v3777
    %v4080 = vunpack.c.h.b16 %v3777
    %v4081 = vunpack.c.l.b16 %v3778
    %v4082 = vunpack.c.h.b16 %v3778
    %v4083 = vunpack.c.l.b16 %v3779
    %v4084 = vunpack.c.h.b16 %v3779
    %v4085 = vunpack.c.l.b16 %v3780
    %v4086 = vunpack.c.h.b16 %v3780
    %v4087 = vunpack.c.l.b16 %v3781
    %v4088 = vunpack.c.h.b16 %v3781
    %v4089 = vunpack.c.l.b16 %v3782
    %v4090 = vunpack.c.h.b16 %v3782
    %v4091 = vunpack.c.l.b16 %v3783
    %v4092 = vunpack.c.h.b16 %v3783
    %v4093 = vunpack.c.l.b16 %v3784
    %v4094 = vunpack.c.h.b16 %v3784
    %v4095 = vunpack.c.l.b16 %v3785
    %v4096 = vunpack.c.h.b16 %v3785
    %v4097 = vunpack.c.l.b16 %v3786
    %v4098 = vunpack.c.h.b16 %v3786
    %v4099 = vunpack.c.l.b16 %v3787
    %v4100 = vunpack.c.h.b16 %v3787
    %v4101 = vunpack.c.l.b16 %v3788
    %v4102 = vunpack.c.h.b16 %v3788
    %v4103 = vunpack.c.l.b16 %v3789
    %v4104 = vunpack.c.h.b16 %v3789
    %v4105 = vunpack.c.l.b16 %v3790
    %v4106 = vunpack.c.h.b16 %v3790
    %v4107 = vunpack.c.l.b16 %v3791
    %v4108 = vunpack.c.h.b16 %v3791
    %v4109 = vunpack.c.l.b16 %v3792
    %v4110 = vunpack.c.h.b16 %v3792
    %v4111 = vunpack.c.l.b16 %v3793
    %v4112 = vunpack.c.h.b16 %v3793
    %v4113 = vunpack.c.l.b16 %v3794
    %v4114 = vunpack.c.h.b16 %v3794
    %v4115 = vunpack.c.l.b16 %v3795
    %v4116 = vunpack.c.h.b16 %v3795
    %v4117 = vunpack.c.l.b16 %v3796
    %v4118 = vunpack.c.h.b16 %v3796
    %v4119 = vunpack.c.l.b16 %v3797
    %v4120 = vunpack.c.h.b16 %v3797
    %v4121 = vunpack.c.l.b16 %v3798
    %v4122 = vunpack.c.h.b16 %v3798
    %v4123 = vunpack.c.l.b16 %v3799
    %v4124 = vunpack.c.h.b16 %v3799
    %v4125 = vunpack.c.l.b16 %v3800
    %v4126 = vunpack.c.h.b16 %v3800
    %v4127 = vunpack.c.l.b16 %v3801
    %v4128 = vunpack.c.h.b16 %v3801
    %v4129 = vunpack.c.l.b16 %v3802
    %v4130 = vunpack.c.h.b16 %v3802
    %v4131 = vunpack.c.l.b16 %v3803
    %v4132 = vunpack.c.h.b16 %v3803
    %v4133 = vunpack.c.l.b16 %v3804
    %v4134 = vunpack.c.h.b16 %v3804
    %v4135 = vunpack.c.l.b16 %v3805
    %v4136 = vunpack.c.h.b16 %v3805
    %v4137 = vunpack.c.l.b16 %v3806
    %v4138 = vunpack.c.h.b16 %v3806
    %v4139 = vunpack.c.l.b16 %v3807
    %v4140 = vunpack.c.h.b16 %v3807
    %v4141 = vunpack.c.l.b16 %v3808
    %v4142 = vunpack.c.h.b16 %v3808
    %v4143 = vunpack.c.l.b16 %v3809
    %v4144 = vunpack.c.h.b16 %v3809
    %v4145 = vunpack.c.l.b16 %v3810
    %v4146 = vunpack.c.h.b16 %v3810
    %v4147 = vunpack.c.l.b16 %v3811
    %v4148 = vunpack.c.h.b16 %v3811
    %v4149 = vunpack.c.l.b16 %v3812
    %v4150 = vunpack.c.h.b16 %v3812
    %v4151 = vunpack.c.l.b16 %v3813
    %v4152 = vunpack.c.h.b16 %v3813
    %v4153 = vunpack.c.l.b16 %v3814
    %v4154 = vunpack.c.h.b16 %v3814
    %v4155 = vunpack.c.l.b16 %v3815
    %v4156 = vunpack.c.h.b16 %v3815
    %v4157 = vunpack.c.l.b16 %v3816
    %v4158 = vunpack.c.h.b16 %v3816
    %v4159 = vunpack.c.l.b16 %v3817
    %v4160 = vunpack.c.h.b16 %v3817
    %v4161 = vunpack.c.l.b16 %v3818
    %v4162 = vunpack.c.h.b16 %v3818
    %v4163 = vunpack.c.l.b16 %v3819
    %v4164 = vunpack.c.h.b16 %v3819
    %v4165 = vunpack.c.l.b16 %v3820
    %v4166 = vunpack.c.h.b16 %v3820
    %v4167 = vunpack.c.l.b16 %v3821
    %v4168 = vunpack.c.h.b16 %v3821
    %v4169 = vunpack.c.l.b16 %v3822
    %v4170 = vunpack.c.h.b16 %v3822
    %v4171 = vunpack.c.l.b16 %v3823
    %v4172 = vunpack.c.h.b16 %v3823
    %v4173 = vunpack.c.l.b16 %v3824
    %v4174 = vunpack.c.h.b16 %v3824
    %v4175 = vunpack.c.l.b16 %v3825
    %v4176 = vunpack.c.h.b16 %v3825
    %v4177 = vunpack.c.l.b16 %v3826
    %v4178 = vunpack.c.h.b16 %v3826
    %v4179 = vunpack.c.l.b16 %v3827
    %v4180 = vunpack.c.h.b16 %v3827
    %v4181 = vunpack.c.l.b16 %v3828
    %v4182 = vunpack.c.h.b16 %v3828
    %v4183 = vunpack.c.l.b16 %v3829
    %v4184 = vunpack.c.h.b16 %v3829
    %v4185 = vunpack.c.l.b16 %v3830
    %v4186 = vunpack.c.h.b16 %v3830
    %v4187 = vunpack.c.l.b16 %v3831
    %v4188 = vunpack.c.h.b16 %v3831
    %v4189 = vunpack.c.l.b16 %v3832
    %v4190 = vunpack.c.h.b16 %v3832
    %v4191 = vunpack.c.l.b16 %v3833
    %v4192 = vunpack.c.h.b16 %v3833
    %v4193 = vunpack.c.l.b16 %v3834
    %v4194 = vunpack.c.h.b16 %v3834
    %v4195 = vunpack.c.l.b16 %v3835
    %v4196 = vunpack.c.h.b16 %v3835
    %v4197 = vunpack.c.l.b16 %v3836
    %v4198 = vunpack.c.h.b16 %v3836
    %v4199 = vunpack.c.l.b16 %v3837
    %v4200 = vunpack.c.h.b16 %v3837
    %v4201 = vunpack.c.l.b16 %v3838
    %v4202 = vunpack.c.h.b16 %v3838
    %v4203 = vunpack.c.l.b16 %v3839
    %v4204 = vunpack.c.h.b16 %v3839
    %v4205 = vunpack.c.l.b16 %v3840
    %v4206 = vunpack.c.h.b16 %v3840
    %v4207 = vunpack.c.l.b16 %v3841
    %v4208 = vunpack.c.h.b16 %v3841
    %v4209 = vunpack.c.l.b16 %v3842
    %v4210 = vunpack.c.h.b16 %v3842
    %v4211 = vunpack.c.l.b16 %v3843
    %v4212 = vunpack.c.h.b16 %v3843
    %v4213 = vunpack.c.l.b16 %v3844
    %v4214 = vunpack.c.h.b16 %v3844
    %v4215 = vunpack.c.l.b16 %v3845
    %v4216 = vunpack.c.h.b16 %v3845
    %v4217 = vunpack.c.l.b16 %v3846
    %v4218 = vunpack.c.h.b16 %v3846
    %v4219 = vunpack.c.l.b16 %v3847
    %v4220 = vunpack.c.h.b16 %v3847
    %v4221 = vunpack.c.l.b16 %v3848
    %v4222 = vunpack.c.h.b16 %v3848
    %v4223 = vunpack.c.l.b16 %v3849
    %v4224 = vunpack.c.h.b16 %v3849
    %v4225 = vunpack.c.l.b16 %v3850
    %v4226 = vunpack.c.h.b16 %v3850
    %v4227 = vunpack.c.l.b16 %v3851
    %v4228 = vunpack.c.h.b16 %v3851
    %v4229 = vunpack.c.l.b16 %v3852
    %v4230 = vunpack.c.h.b16 %v3852
    %v4231 = vunpack.c.l.b16 %v3853
    %v4232 = vunpack.c.h.b16 %v3853
    %v4233 = vunpack.c.l.b16 %v3854
    %v4234 = vunpack.c.h.b16 %v3854
    %v4235 = vunpack.c.l.b16 %v3855
    %v4236 = vunpack.c.h.b16 %v3855
    %v4237 = vunpack.c.l.b16 %v3856
    %v4238 = vunpack.c.h.b16 %v3856
    %v4239 = vunpack.c.l.b16 %v3857
    %v4240 = vunpack.c.h.b16 %v3857
    %v4241 = vunpack.c.l.b16 %v3858
    %v4242 = vunpack.c.h.b16 %v3858
    %v4243 = vunpack.c.l.b16 %v3859
    %v4244 = vunpack.c.h.b16 %v3859
    %v4245 = vunpack.c.l.b16 %v3860
    %v4246 = vunpack.c.h.b16 %v3860
    %v4247 = vunpack.c.l.b16 %v3861
    %v4248 = vunpack.c.h.b16 %v3861
    %v4249 = vunpack.c.l.b16 %v3862
    %v4250 = vunpack.c.h.b16 %v3862
    %v4251 = vunpack.c.l.b16 %v3863
    %v4252 = vunpack.c.h.b16 %v3863
    %v4253 = vunpack.c.l.b16 %v3864
    %v4254 = vunpack.c.h.b16 %v3864
    %v4255 = vunpack.c.l.b16 %v3865
    %v4256 = vunpack.c.h.b16 %v3865
    %v4257 = vunpack.c.l.b16 %v3866
    %v4258 = vunpack.c.h.b16 %v3866
    %v4259 = vunpack.c.l.b16 %v3867
    %v4260 = vunpack.c.h.b16 %v3867
    %v4261 = vunpack.c.l.b16 %v3868
    %v4262 = vunpack.c.h.b16 %v3868
    %v4263 = vunpack.c.l.b16 %v3869
    %v4264 = vunpack.c.h.b16 %v3869
    %v4265 = vunpack.c.l.b16 %v3870
    %v4266 = vunpack.c.h.b16 %v3870
    %v4267 = vunpack.c.l.b16 %v3871
    %v4268 = vunpack.c.h.b16 %v3871
    %v4269 = vunpack.c.l.b16 %v3872
    %v4270 = vunpack.c.h.b16 %v3872
    %v4271 = vunpack.c.l.b16 %v3873
    %v4272 = vunpack.c.h.b16 %v3873
    %v4273 = vunpack.c.l.b16 %v3874
    %v4274 = vunpack.c.h.b16 %v3874
    %v4275 = vunpack.c.l.b16 %v3875
    %v4276 = vunpack.c.h.b16 %v3875
    %v4277 = vunpack.c.l.b16 %v3876
    %v4278 = vunpack.c.h.b16 %v3876
    %v4279 = vunpack.c.l.b16 %v3877
    %v4280 = vunpack.c.h.b16 %v3877
    %v4281 = vunpack.c.l.b16 %v3878
    %v4282 = vunpack.c.h.b16 %v3878
    %v4283 = vunpack.c.l.b16 %v3879
    %v4284 = vunpack.c.h.b16 %v3879
    %v4285 = vunpack.c.l.b16 %v3880
    %v4286 = vunpack.c.h.b16 %v3880
    %v4287 = vpack.c.b16 %v4035, %v4031
    %v4288 = vpack.c.b16 %v4036, %v4032
    %v4289 = vpack.c.b16 %v4037, %v4033
    %v4290 = vpack.c.b16 %v4038, %v4034
    %v4291 = vpack.c.b16 %v4043, %v4039
    %v4292 = vpack.c.b16 %v4044, %v4040
    %v4293 = vpack.c.b16 %v4045, %v4041
    %v4294 = vpack.c.b16 %v4046, %v4042
    %v4295 = vpack.c.b16 %v4051, %v4047
    %v4296 = vpack.c.b16 %v4052, %v4048
    %v4297 = vpack.c.b16 %v4053, %v4049
    %v4298 = vpack.c.b16 %v4054, %v4050
    %v4299 = vpack.c.b16 %v4059, %v4055
    %v4300 = vpack.c.b16 %v4060, %v4056
    %v4301 = vpack.c.b16 %v4061, %v4057
    %v4302 = vpack.c.b16 %v4062, %v4058
    %v4303 = vpack.c.b16 %v4067, %v4063
    %v4304 = vpack.c.b16 %v4068, %v4064
    %v4305 = vpack.c.b16 %v4069, %v4065
    %v4306 = vpack.c.b16 %v4070, %v4066
    %v4307 = vpack.c.b16 %v4075, %v4071
    %v4308 = vpack.c.b16 %v4076, %v4072
    %v4309 = vpack.c.b16 %v4077, %v4073
    %v4310 = vpack.c.b16 %v4078, %v4074
    %v4311 = vpack.c.b16 %v4083, %v4079
    %v4312 = vpack.c.b16 %v4084, %v4080
    %v4313 = vpack.c.b16 %v4085, %v4081
    %v4314 = vpack.c.b16 %v4086, %v4082
    %v4315 = vpack.c.b16 %v4091, %v4087
    %v4316 = vpack.c.b16 %v4092, %v4088
    %v4317 = vpack.c.b16 %v4093, %v4089
    %v4318 = vpack.c.b16 %v4094, %v4090
    %v4319 = vpack.c.b16 %v4099, %v4095
    %v4320 = vpack.c.b16 %v4100, %v4096
    %v4321 = vpack.c.b16 %v4101, %v4097
    %v4322 = vpack.c.b16 %v4102, %v4098
    %v4323 = vpack.c.b16 %v4107, %v4103
    %v4324 = vpack.c.b16 %v4108, %v4104
    %v4325 = vpack.c.b16 %v4109, %v4105
    %v4326 = vpack.c.b16 %v4110, %v4106
    %v4327 = vpack.c.b16 %v4115, %v4111
    %v4328 = vpack.c.b16 %v4116, %v4112
    %v4329 = vpack.c.b16 %v4117, %v4113
    %v4330 = vpack.c.b16 %v4118, %v4114
    %v4331 = vpack.c.b16 %v4123, %v4119
    %v4332 = vpack.c.b16 %v4124, %v4120
    %v4333 = vpack.c.b16 %v4125, %v4121
    %v4334 = vpack.c.b16 %v4126, %v4122
    %v4335 = vpack.c.b16 %v4131, %v4127
    %v4336 = vpack.c.b16 %v4132, %v4128
    %v4337 = vpack.c.b16 %v4133, %v4129
    %v4338 = vpack.c.b16 %v4134, %v4130
    %v4339 = vpack.c.b16 %v4139, %v4135
    %v4340 = vpack.c.b16 %v4140, %v4136
    %v4341 = vpack.c.b16 %v4141, %v4137
    %v4342 = vpack.c.b16 %v4142, %v4138
    %v4343 = vpack.c.b16 %v4147, %v4143
    %v4344 = vpack.c.b16 %v4148, %v4144
    %v4345 = vpack.c.b16 %v4149, %v4145
    %v4346 = vpack.c.b16 %v4150, %v4146
    %v4347 = vpack.c.b16 %v4155, %v4151
    %v4348 = vpack.c.b16 %v4156, %v4152
    %v4349 = vpack.c.b16 %v4157, %v4153
    %v4350 = vpack.c.b16 %v4158, %v4154
    %v4351 = vpack.c.b16 %v4163, %v4159
    %v4352 = vpack.c.b16 %v4164, %v4160
    %v4353 = vpack.c.b16 %v4165, %v4161
    %v4354 = vpack.c.b16 %v4166, %v4162
    %v4355 = vpack.c.b16 %v4171, %v4167
    %v4356 = vpack.c.b16 %v4172, %v4168
    %v4357 = vpack.c.b16 %v4173, %v4169
    %v4358 = vpack.c.b16 %v4174, %v4170
    %v4359 = vpack.c.b16 %v4179, %v4175
    %v4360 = vpack.c.b16 %v4180, %v4176
    %v4361 = vpack.c.b16 %v4181, %v4177
    %v4362 = vpack.c.b16 %v4182, %v4178
    %v4363 = vpack.c.b16 %v4187, %v4183
    %v4364 = vpack.c.b16 %v4188, %v4184
    %v4365 = vpack.c.b16 %v4189, %v4185
    %v4366 = vpack.c.b16 %v4190, %v4186
    %v4367 = vpack.c.b16 %v4195, %v4191
    %v4368 = vpack.c.b16 %v4196, %v4192
    %v4369 = vpack.c.b16 %v4197, %v4193
    %v4370 = vpack.c.b16 %v4198, %v4194
    %v4371 = vpack.c.b16 %v4203, %v4199
    %v4372 = vpack.c.b16 %v4204, %v4200
    %v4373 = vpack.c.b16 %v4205, %v4201
    %v4374 = vpack.c.b16 %v4206, %v4202
    %v4375 = vpack.c.b16 %v4211, %v4207
    %v4376 = vpack.c.b16 %v4212, %v4208
    %v4377 = vpack.c.b16 %v4213, %v4209
    %v4378 = vpack.c.b16 %v4214, %v4210
    %v4379 = vpack.c.b16 %v4219, %v4215
    %v4380 = vpack.c.b16 %v4220, %v4216
    %v4381 = vpack.c.b16 %v4221, %v4217
    %v4382 = vpack.c.b16 %v4222, %v4218
    %v4383 = vpack.c.b16 %v4227, %v4223
    %v4384 = vpack.c.b16 %v4228, %v4224
    %v4385 = vpack.c.b16 %v4229, %v4225
    %v4386 = vpack.c.b16 %v4230, %v4226
    %v4387 = vpack.c.b16 %v4235, %v4231
    %v4388 = vpack.c.b16 %v4236, %v4232
    %v4389 = vpack.c.b16 %v4237, %v4233
    %v4390 = vpack.c.b16 %v4238, %v4234
    %v4391 = vpack.c.b16 %v4243, %v4239
    %v4392 = vpack.c.b16 %v4244, %v4240
    %v4393 = vpack.c.b16 %v4245, %v4241
    %v4394 = vpack.c.b16 %v4246, %v4242
    %v4395 = vpack.c.b16 %v4251, %v4247
    %v4396 = vpack.c.b16 %v4252, %v4248
    %v4397 = vpack.c.b16 %v4253, %v4249
    %v4398 = vpack.c.b16 %v4254, %v4250
    %v4399 = vpack.c.b16 %v4259, %v4255
    %v4400 = vpack.c.b16 %v4260, %v4256
    %v4401 = vpack.c.b16 %v4261, %v4257
    %v4402 = vpack.c.b16 %v4262, %v4258
    %v4403 = vpack.c.b16 %v4267, %v4263
    %v4404 = vpack.c.b16 %v4268, %v4264
    %v4405 = vpack.c.b16 %v4269, %v4265
    %v4406 = vpack.c.b16 %v4270, %v4266
    %v4407 = vpack.c.b16 %v4275, %v4271
    %v4408 = vpack.c.b16 %v4276, %v4272
    %v4409 = vpack.c.b16 %v4277, %v4273
    %v4410 = vpack.c.b16 %v4278, %v4274
    %v4411 = vpack.c.b16 %v4283, %v4279
    %v4412 = vpack.c.b16 %v4284, %v4280
    %v4413 = vpack.c.b16 %v4285, %v4281
    %v4414 = vpack.c.b16 %v4286, %v4282
    %4543 = vmatprep.subr.bf16.mxu0 %v4288
    %4544 = vmatpush1.bf16.msra.mxu0 %v4287
    %4545 = vmatprep.subr.bf16.mxu0 %v4292
    %4546 = vmatpush1.bf16.msra.mxu0 %v4291
    %4547 = vmatprep.subr.bf16.mxu0 %v4296
    %4548 = vmatpush1.bf16.msra.mxu0 %v4295
    %4549 = vmatprep.subr.bf16.mxu0 %v4300
    %4550 = vmatpush1.bf16.msra.mxu0 %v4299
    %4551 = vmatprep.subr.bf16.mxu0 %v4304
    %4552 = vmatpush1.bf16.msra.mxu0 %v4303
    %4553 = vmatprep.subr.bf16.mxu0 %v4308
    %4554 = vmatpush1.bf16.msra.mxu0 %v4307
    %4555 = vmatprep.subr.bf16.mxu0 %v4312
    %4556 = vmatpush1.bf16.msra.mxu0 %v4311
    %4557 = vmatprep.subr.bf16.mxu0 %v4316
    %4558 = vmatpush1.bf16.msra.mxu0 %v4315
    %4559 = vmatprep.subr.bf16.mxu0 %v4320
    %4560 = vmatpush1.bf16.msra.mxu0 %v4319
    %4561 = vmatprep.subr.bf16.mxu0 %v4324
    %4562 = vmatpush1.bf16.msra.mxu0 %v4323
    %4563 = vmatprep.subr.bf16.mxu0 %v4328
    %4564 = vmatpush1.bf16.msra.mxu0 %v4327
    %4565 = vmatprep.subr.bf16.mxu0 %v4332
    %4566 = vmatpush1.bf16.msra.mxu0 %v4331
    %4567 = vmatprep.subr.bf16.mxu0 %v4336
    %4568 = vmatpush1.bf16.msra.mxu0 %v4335
    %4569 = vmatprep.subr.bf16.mxu0 %v4340
    %4570 = vmatpush1.bf16.msra.mxu0 %v4339
    %4571 = vmatprep.subr.bf16.mxu0 %v4344
    %4572 = vmatpush1.bf16.msra.mxu0 %v4343
    %4573 = vmatprep.subr.bf16.mxu0 %v4348
    %4574 = vmatpush1.bf16.msra.mxu0 %v4347
    %4575 = vmatprep.mubr.bf16.mxu0 %v3750
    %4576 = vmatmul.mubr.bf16.gmra.mrb[0].mxu0 %v3749
    %v4577 = vpop.f32.mrb[0].mxu0
    %v4578 = vadd.f32 %v3886, %v4577
    %v4579 = vpop.f32.mrb[0].mxu0
    %v4580 = vadd.f32 %v3890, %v4579
    %v4581 = vpop.f32.mrb[0].mxu0
    %v4582 = vpop.f32.mrb[0].mxu0
    %4583 = vdwg.mxu0
    %4584 = vmatprep.subr.bf16.mxu0 %v4352
    %4585 = vmatpush1.bf16.msra.mxu0 %v4351
    %4586 = vmatprep.subr.bf16.mxu0 %v4356
    %4587 = vmatpush1.bf16.msra.mxu0 %v4355
    %4588 = vmatprep.subr.bf16.mxu0 %v4360
    %4589 = vmatpush1.bf16.msra.mxu0 %v4359
    %4590 = vmatprep.subr.bf16.mxu0 %v4364
    %4591 = vmatpush1.bf16.msra.mxu0 %v4363
    %4592 = vmatprep.subr.bf16.mxu0 %v4368
    %4593 = vmatpush1.bf16.msra.mxu0 %v4367
    %4594 = vmatprep.subr.bf16.mxu0 %v4372
    %4595 = vmatpush1.bf16.msra.mxu0 %v4371
    %4596 = vmatprep.subr.bf16.mxu0 %v4376
    %4597 = vmatpush1.bf16.msra.mxu0 %v4375
    %4598 = vmatprep.subr.bf16.mxu0 %v4380
    %4599 = vmatpush1.bf16.msra.mxu0 %v4379
    %4600 = vmatprep.subr.bf16.mxu0 %v4384
    %4601 = vmatpush1.bf16.msra.mxu0 %v4383
    %4602 = vmatprep.subr.bf16.mxu0 %v4388
    %4603 = vmatpush1.bf16.msra.mxu0 %v4387
    %4604 = vmatprep.subr.bf16.mxu0 %v4392
    %4605 = vmatpush1.bf16.msra.mxu0 %v4391
    %4606 = vmatprep.subr.bf16.mxu0 %v4396
    %4607 = vmatpush1.bf16.msra.mxu0 %v4395
    %4608 = vmatprep.subr.bf16.mxu0 %v4400
    %4609 = vmatpush1.bf16.msra.mxu0 %v4399
    %4610 = vmatprep.subr.bf16.mxu0 %v4404
    %4611 = vmatpush1.bf16.msra.mxu0 %v4403
    %4612 = vmatprep.subr.bf16.mxu0 %v4408
    %4613 = vmatpush1.bf16.msra.mxu0 %v4407
    %4614 = vmatprep.subr.bf16.mxu0 %v4412
    %4615 = vmatpush1.bf16.msra.mxu0 %v4411
    %4616 = vmatprep.mubr.bf16.mxu0 %v3752
    %4617 = vmatmul.mubr.bf16.gmra.mrb[0].mxu0 %v3751
    %v4618 = vpop.f32.mrb[0].mxu0
    %v4619 = vadd.f32 %v4578, %v4618
    %v4620 = vpop.f32.mrb[0].mxu0
    %v4621 = vadd.f32 %v4580, %v4620
    %v4622 = vpop.f32.mrb[0].mxu0
    %v4623 = vpop.f32.mrb[0].mxu0
    %4624 = vdwg.mxu0
    %4625 = vmatprep.subr.bf16.mxu0 %v4290
    %4626 = vmatpush1.bf16.msra.mxu0 %v4289
    %4627 = vmatprep.subr.bf16.mxu0 %v4294
    %4628 = vmatpush1.bf16.msra.mxu0 %v4293
    %4629 = vmatprep.subr.bf16.mxu0 %v4298
    %4630 = vmatpush1.bf16.msra.mxu0 %v4297
    %4631 = vmatprep.subr.bf16.mxu0 %v4302
    %4632 = vmatpush1.bf16.msra.mxu0 %v4301
    %4633 = vmatprep.subr.bf16.mxu0 %v4306
    %4634 = vmatpush1.bf16.msra.mxu0 %v4305
    %4635 = vmatprep.subr.bf16.mxu0 %v4310
    %4636 = vmatpush1.bf16.msra.mxu0 %v4309
    %4637 = vmatprep.subr.bf16.mxu0 %v4314
    %4638 = vmatpush1.bf16.msra.mxu0 %v4313
    %4639 = vmatprep.subr.bf16.mxu0 %v4318
    %4640 = vmatpush1.bf16.msra.mxu0 %v4317
    %4641 = vmatprep.subr.bf16.mxu0 %v4322
    %4642 = vmatpush1.bf16.msra.mxu0 %v4321
    %4643 = vmatprep.subr.bf16.mxu0 %v4326
    %4644 = vmatpush1.bf16.msra.mxu0 %v4325
    %4645 = vmatprep.subr.bf16.mxu0 %v4330
    %4646 = vmatpush1.bf16.msra.mxu0 %v4329
    %4647 = vmatprep.subr.bf16.mxu0 %v4334
    %4648 = vmatpush1.bf16.msra.mxu0 %v4333
    %4649 = vmatprep.subr.bf16.mxu0 %v4338
    %4650 = vmatpush1.bf16.msra.mxu0 %v4337
    %4651 = vmatprep.subr.bf16.mxu0 %v4342
    %4652 = vmatpush1.bf16.msra.mxu0 %v4341
    %4653 = vmatprep.subr.bf16.mxu0 %v4346
    %4654 = vmatpush1.bf16.msra.mxu0 %v4345
    %4655 = vmatprep.subr.bf16.mxu0 %v4350
    %4656 = vmatpush1.bf16.msra.mxu0 %v4349
    %4657 = vmatprep.mubr.bf16.mxu0 %v3750
    %4658 = vmatmul.mubr.bf16.gmra.mrb[0].mxu0 %v3749
    %v4659 = vpop.f32.mrb[0].mxu0
    %v4660 = vadd.f32 %v3894, %v4659
    %v4661 = vpop.f32.mrb[0].mxu0
    %v4662 = vadd.f32 %v3898, %v4661
    %v4663 = vpop.f32.mrb[0].mxu0
    %v4664 = vpop.f32.mrb[0].mxu0
    %4665 = vdwg.mxu0
    %4666 = vmatprep.subr.bf16.mxu0 %v4354
    %4667 = vmatpush1.bf16.msra.mxu0 %v4353
    %4668 = vmatprep.subr.bf16.mxu0 %v4358
    %4669 = vmatpush1.bf16.msra.mxu0 %v4357
    %4670 = vmatprep.subr.bf16.mxu0 %v4362
    %4671 = vmatpush1.bf16.msra.mxu0 %v4361
    %4672 = vmatprep.subr.bf16.mxu0 %v4366
    %4673 = vmatpush1.bf16.msra.mxu0 %v4365
    %4674 = vmatprep.subr.bf16.mxu0 %v4370
    %4675 = vmatpush1.bf16.msra.mxu0 %v4369
    %4676 = vmatprep.subr.bf16.mxu0 %v4374
    %4677 = vmatpush1.bf16.msra.mxu0 %v4373
    %4678 = vmatprep.subr.bf16.mxu0 %v4378
    %4679 = vmatpush1.bf16.msra.mxu0 %v4377
    %4680 = vmatprep.subr.bf16.mxu0 %v4382
    %4681 = vmatpush1.bf16.msra.mxu0 %v4381
    %4682 = vmatprep.subr.bf16.mxu0 %v4386
    %4683 = vmatpush1.bf16.msra.mxu0 %v4385
    %4684 = vmatprep.subr.bf16.mxu0 %v4390
    %4685 = vmatpush1.bf16.msra.mxu0 %v4389
    %4686 = vmatprep.subr.bf16.mxu0 %v4394
    %4687 = vmatpush1.bf16.msra.mxu0 %v4393
    %4688 = vmatprep.subr.bf16.mxu0 %v4398
    %4689 = vmatpush1.bf16.msra.mxu0 %v4397
    %4690 = vmatprep.subr.bf16.mxu0 %v4402
    %4691 = vmatpush1.bf16.msra.mxu0 %v4401
    %4692 = vmatprep.subr.bf16.mxu0 %v4406
    %4693 = vmatpush1.bf16.msra.mxu0 %v4405
    %4694 = vmatprep.subr.bf16.mxu0 %v4410
    %4695 = vmatpush1.bf16.msra.mxu0 %v4409
    %4696 = vmatprep.subr.bf16.mxu0 %v4414
    %4697 = vmatpush1.bf16.msra.mxu0 %v4413
    %4698 = vmatprep.mubr.bf16.mxu0 %v3752
    %4699 = vmatmul.mubr.bf16.gmra.mrb[0].mxu0 %v3751
    %v4700 = vpop.f32.mrb[0].mxu0
    %v4701 = vadd.f32 %v4660, %v4700
    %v4702 = vpop.f32.mrb[0].mxu0
    %v4703 = vadd.f32 %v4662, %v4702
    %v4704 = vpop.f32.mrb[0].mxu0
    %v4705 = vpop.f32.mrb[0].mxu0
    %4706 = vdwg.mxu0
    %v4707 = vmax.f32 %v4619, 0.0
    %v4708 = vmax.f32 %v4621, 0.0
    %v4709 = vmax.f32 %v4701, 0.0
    %v4710 = vmax.f32 %v4703, 0.0
    %v4711 = vpack.c.bf16 %v4707, %v4707
    %v4712 = vpack.c.bf16 %v4708, %v4708
    %v4713 = vpack.c.bf16 %v4709, %v4709
    %v4714 = vpack.c.bf16 %v4710, %v4710
    %v4715 = vld [vmem:[#allocation8] sm:$0xf]
    %v4716 = vld [vmem:[#allocation8 + $0x4] sm:$0xf]
    %v4717 = vld [vmem:[#allocation8 + $0x8] sm:$0xf]
    %v4718 = vld [vmem:[#allocation8 + $0xc] sm:$0xf]
    %v4719 = vld [vmem:[#allocation8 + $0x10] sm:$0xf]
    %v4720 = vld [vmem:[#allocation8 + $0x14] sm:$0xf]
    %v4721 = vld [vmem:[#allocation8 + $0x18] sm:$0xf]
    %v4722 = vld [vmem:[#allocation8 + $0x1c] sm:$0xf]
    %v4723 = vld [vmem:[#allocation8 + $0x20] sm:$0xf]
    %v4724 = vld [vmem:[#allocation8 + $0x24] sm:$0xf]
    %v4725 = vld [vmem:[#allocation8 + $0x28] sm:$0xf]
    %v4726 = vld [vmem:[#allocation8 + $0x2c] sm:$0xf]
    %v4727 = vld [vmem:[#allocation8 + $0x30] sm:$0xf]
    %v4728 = vld [vmem:[#allocation8 + $0x34] sm:$0xf]
    %v4729 = vld [vmem:[#allocation8 + $0x38] sm:$0xf]
    %v4730 = vld [vmem:[#allocation8 + $0x3c] sm:$0xf]
    %v4731 = vld [vmem:[#allocation8 + $0x40] sm:$0xf]
    %v4732 = vld [vmem:[#allocation8 + $0x44] sm:$0xf]
    %v4733 = vld [vmem:[#allocation8 + $0x48] sm:$0xf]
    %v4734 = vld [vmem:[#allocation8 + $0x4c] sm:$0xf]
    %v4735 = vld [vmem:[#allocation8 + $0x50] sm:$0xf]
    %v4736 = vld [vmem:[#allocation8 + $0x54] sm:$0xf]
    %v4737 = vld [vmem:[#allocation8 + $0x58] sm:$0xf]
    %v4738 = vld [vmem:[#allocation8 + $0x5c] sm:$0xf]
    %v4739 = vld [vmem:[#allocation8 + $0x60] sm:$0xf]
    %v4740 = vld [vmem:[#allocation8 + $0x64] sm:$0xf]
    %v4741 = vld [vmem:[#allocation8 + $0x68] sm:$0xf]
    %v4742 = vld [vmem:[#allocation8 + $0x6c] sm:$0xf]
    %v4743 = vld [vmem:[#allocation8 + $0x70] sm:$0xf]
    %v4744 = vld [vmem:[#allocation8 + $0x74] sm:$0xf]
    %v4745 = vld [vmem:[#allocation8 + $0x78] sm:$0xf]
    %v4746 = vld [vmem:[#allocation8 + $0x7c] sm:$0xf]
    %v4747 = vld [vmem:[#allocation8 + $0x80] sm:$0xf]
    %v4748 = vld [vmem:[#allocation8 + $0x84] sm:$0xf]
    %v4749 = vld [vmem:[#allocation8 + $0x88] sm:$0xf]
    %v4750 = vld [vmem:[#allocation8 + $0x8c] sm:$0xf]
    %v4751 = vld [vmem:[#allocation8 + $0x90] sm:$0xf]
    %v4752 = vld [vmem:[#allocation8 + $0x94] sm:$0xf]
    %v4753 = vld [vmem:[#allocation8 + $0x98] sm:$0xf]
    %v4754 = vld [vmem:[#allocation8 + $0x9c] sm:$0xf]
    %v4755 = vld [vmem:[#allocation8 + $0xa0] sm:$0xf]
    %v4756 = vld [vmem:[#allocation8 + $0xa4] sm:$0xf]
    %v4757 = vld [vmem:[#allocation8 + $0xa8] sm:$0xf]
    %v4758 = vld [vmem:[#allocation8 + $0xac] sm:$0xf]
    %v4759 = vld [vmem:[#allocation8 + $0xb0] sm:$0xf]
    %v4760 = vld [vmem:[#allocation8 + $0xb4] sm:$0xf]
    %v4761 = vld [vmem:[#allocation8 + $0xb8] sm:$0xf]
    %v4762 = vld [vmem:[#allocation8 + $0xbc] sm:$0xf]
    %v4763 = vld [vmem:[#allocation8 + $0xc0] sm:$0xf]
    %v4764 = vld [vmem:[#allocation8 + $0xc4] sm:$0xf]
    %v4765 = vld [vmem:[#allocation8 + $0xc8] sm:$0xf]
    %v4766 = vld [vmem:[#allocation8 + $0xcc] sm:$0xf]
    %v4767 = vld [vmem:[#allocation8 + $0xd0] sm:$0xf]
    %v4768 = vld [vmem:[#allocation8 + $0xd4] sm:$0xf]
    %v4769 = vld [vmem:[#allocation8 + $0xd8] sm:$0xf]
    %v4770 = vld [vmem:[#allocation8 + $0xdc] sm:$0xf]
    %v4771 = vld [vmem:[#allocation8 + $0xe0] sm:$0xf]
    %v4772 = vld [vmem:[#allocation8 + $0xe4] sm:$0xf]
    %v4773 = vld [vmem:[#allocation8 + $0xe8] sm:$0xf]
    %v4774 = vld [vmem:[#allocation8 + $0xec] sm:$0xf]
    %v4775 = vld [vmem:[#allocation8 + $0xf0] sm:$0xf]
    %v4776 = vld [vmem:[#allocation8 + $0xf4] sm:$0xf]
    %v4777 = vld [vmem:[#allocation8 + $0xf8] sm:$0xf]
    %v4778 = vld [vmem:[#allocation8 + $0xfc] sm:$0xf]
    %v4779 = vld [vmem:[%s20] sm:$0x1]
    %v4781 = vlaneseq
    %v4782 = vshrl.u32 %v4781, 7
    %v4783 = vsub.s32 0, %v4782
    %v4784 = vrot.slane %v4779, %v4783
    %v4850 = vunpack.c.l.b16 %v4715
    %v4851 = vunpack.c.l.b16 %v4716
    %v4852 = vunpack.c.l.b16 %v4717
    %v4853 = vunpack.c.l.b16 %v4718
    %v4854 = vunpack.c.l.b16 %v4719
    %v4855 = vunpack.c.l.b16 %v4720
    %v4856 = vunpack.c.l.b16 %v4721
    %v4857 = vunpack.c.l.b16 %v4722
    %v4858 = vunpack.c.l.b16 %v4723
    %v4859 = vunpack.c.l.b16 %v4724
    %v4860 = vunpack.c.l.b16 %v4725
    %v4861 = vunpack.c.l.b16 %v4726
    %v4862 = vunpack.c.l.b16 %v4727
    %v4863 = vunpack.c.l.b16 %v4728
    %v4864 = vunpack.c.l.b16 %v4729
    %v4865 = vunpack.c.l.b16 %v4730
    %v4866 = vunpack.c.l.b16 %v4731
    %v4867 = vunpack.c.l.b16 %v4732
    %v4868 = vunpack.c.l.b16 %v4733
    %v4869 = vunpack.c.l.b16 %v4734
    %v4870 = vunpack.c.l.b16 %v4735
    %v4871 = vunpack.c.l.b16 %v4736
    %v4872 = vunpack.c.l.b16 %v4737
    %v4873 = vunpack.c.l.b16 %v4738
    %v4874 = vunpack.c.l.b16 %v4739
    %v4875 = vunpack.c.l.b16 %v4740
    %v4876 = vunpack.c.l.b16 %v4741
    %v4877 = vunpack.c.l.b16 %v4742
    %v4878 = vunpack.c.l.b16 %v4743
    %v4879 = vunpack.c.l.b16 %v4744
    %v4880 = vunpack.c.l.b16 %v4745
    %v4881 = vunpack.c.l.b16 %v4746
    %v4882 = vunpack.c.l.b16 %v4747
    %v4883 = vunpack.c.l.b16 %v4748
    %v4884 = vunpack.c.l.b16 %v4749
    %v4885 = vunpack.c.l.b16 %v4750
    %v4886 = vunpack.c.l.b16 %v4751
    %v4887 = vunpack.c.l.b16 %v4752
    %v4888 = vunpack.c.l.b16 %v4753
    %v4889 = vunpack.c.l.b16 %v4754
    %v4890 = vunpack.c.l.b16 %v4755
    %v4891 = vunpack.c.l.b16 %v4756
    %v4892 = vunpack.c.l.b16 %v4757
    %v4893 = vunpack.c.l.b16 %v4758
    %v4894 = vunpack.c.l.b16 %v4759
    %v4895 = vunpack.c.l.b16 %v4760
    %v4896 = vunpack.c.l.b16 %v4761
    %v4897 = vunpack.c.l.b16 %v4762
    %v4898 = vunpack.c.l.b16 %v4763
    %v4899 = vunpack.c.l.b16 %v4764
    %v4900 = vunpack.c.l.b16 %v4765
    %v4901 = vunpack.c.l.b16 %v4766
    %v4902 = vunpack.c.l.b16 %v4767
    %v4903 = vunpack.c.l.b16 %v4768
    %v4904 = vunpack.c.l.b16 %v4769
    %v4905 = vunpack.c.l.b16 %v4770
    %v4906 = vunpack.c.l.b16 %v4771
    %v4907 = vunpack.c.l.b16 %v4772
    %v4908 = vunpack.c.l.b16 %v4773
    %v4909 = vunpack.c.l.b16 %v4774
    %v4910 = vunpack.c.l.b16 %v4775
    %v4911 = vunpack.c.l.b16 %v4776
    %v4912 = vunpack.c.l.b16 %v4777
    %v4913 = vunpack.c.l.b16 %v4778
    %v4914 = vpack.c.b16 %v4851, %v4850
    %v4915 = vpack.c.b16 %v4853, %v4852
    %v4916 = vpack.c.b16 %v4855, %v4854
    %v4917 = vpack.c.b16 %v4857, %v4856
    %v4918 = vpack.c.b16 %v4859, %v4858
    %v4919 = vpack.c.b16 %v4861, %v4860
    %v4920 = vpack.c.b16 %v4863, %v4862
    %v4921 = vpack.c.b16 %v4865, %v4864
    %v4922 = vpack.c.b16 %v4867, %v4866
    %v4923 = vpack.c.b16 %v4869, %v4868
    %v4924 = vpack.c.b16 %v4871, %v4870
    %v4925 = vpack.c.b16 %v4873, %v4872
    %v4926 = vpack.c.b16 %v4875, %v4874
    %v4927 = vpack.c.b16 %v4877, %v4876
    %v4928 = vpack.c.b16 %v4879, %v4878
    %v4929 = vpack.c.b16 %v4881, %v4880
    %v4930 = vpack.c.b16 %v4883, %v4882
    %v4931 = vpack.c.b16 %v4885, %v4884
    %v4932 = vpack.c.b16 %v4887, %v4886
    %v4933 = vpack.c.b16 %v4889, %v4888
    %v4934 = vpack.c.b16 %v4891, %v4890
    %v4935 = vpack.c.b16 %v4893, %v4892
    %v4936 = vpack.c.b16 %v4895, %v4894
    %v4937 = vpack.c.b16 %v4897, %v4896
    %v4938 = vpack.c.b16 %v4899, %v4898
    %v4939 = vpack.c.b16 %v4901, %v4900
    %v4940 = vpack.c.b16 %v4903, %v4902
    %v4941 = vpack.c.b16 %v4905, %v4904
    %v4942 = vpack.c.b16 %v4907, %v4906
    %v4943 = vpack.c.b16 %v4909, %v4908
    %v4944 = vpack.c.b16 %v4911, %v4910
    %v4945 = vpack.c.b16 %v4913, %v4912
    %4978 = vmatprep.subr.bf16.mxu0 0
    %4979 = vmatpush1.bf16.msra.mxu0 %v4914
    %4980 = vmatprep.subr.bf16.mxu0 0
    %4981 = vmatpush1.bf16.msra.mxu0 %v4915
    %4982 = vmatprep.subr.bf16.mxu0 0
    %4983 = vmatpush1.bf16.msra.mxu0 %v4916
    %4984 = vmatprep.subr.bf16.mxu0 0
    %4985 = vmatpush1.bf16.msra.mxu0 %v4917
    %4986 = vmatprep.subr.bf16.mxu0 0
    %4987 = vmatpush1.bf16.msra.mxu0 %v4918
    %4988 = vmatprep.subr.bf16.mxu0 0
    %4989 = vmatpush1.bf16.msra.mxu0 %v4919
    %4990 = vmatprep.subr.bf16.mxu0 0
    %4991 = vmatpush1.bf16.msra.mxu0 %v4920
    %4992 = vmatprep.subr.bf16.mxu0 0
    %4993 = vmatpush1.bf16.msra.mxu0 %v4921
    %4994 = vmatprep.subr.bf16.mxu0 0
    %4995 = vmatpush1.bf16.msra.mxu0 %v4922
    %4996 = vmatprep.subr.bf16.mxu0 0
    %4997 = vmatpush1.bf16.msra.mxu0 %v4923
    %4998 = vmatprep.subr.bf16.mxu0 0
    %4999 = vmatpush1.bf16.msra.mxu0 %v4924
    %5000 = vmatprep.subr.bf16.mxu0 0
    %5001 = vmatpush1.bf16.msra.mxu0 %v4925
    %5002 = vmatprep.subr.bf16.mxu0 0
    %5003 = vmatpush1.bf16.msra.mxu0 %v4926
    %5004 = vmatprep.subr.bf16.mxu0 0
    %5005 = vmatpush1.bf16.msra.mxu0 %v4927
    %5006 = vmatprep.subr.bf16.mxu0 0
    %5007 = vmatpush1.bf16.msra.mxu0 %v4928
    %5008 = vmatprep.subr.bf16.mxu0 0
    %5009 = vmatpush1.bf16.msra.mxu0 %v4929
    %5010 = vmatprep.mubr.bf16.mxu0 %v4712
    %5011 = vmatmul.mubr.bf16.gmra.mrb[0].mxu0 %v4711
    %v5012 = vpop.f32.mrb[0].mxu0
    %v5013 = vadd.f32 %v4784, %v5012
    %v5014 = vpop.f32.mrb[0].mxu0
    %v5015 = vpop.f32.mrb[0].mxu0
    %v5016 = vpop.f32.mrb[0].mxu0
    %5017 = vdwg.mxu0
    %5018 = vmatprep.subr.bf16.mxu0 0
    %5019 = vmatpush1.bf16.msra.mxu0 %v4930
    %5020 = vmatprep.subr.bf16.mxu0 0
    %5021 = vmatpush1.bf16.msra.mxu0 %v4931
    %5022 = vmatprep.subr.bf16.mxu0 0
    %5023 = vmatpush1.bf16.msra.mxu0 %v4932
    %5024 = vmatprep.subr.bf16.mxu0 0
    %5025 = vmatpush1.bf16.msra.mxu0 %v4933
    %5026 = vmatprep.subr.bf16.mxu0 0
    %5027 = vmatpush1.bf16.msra.mxu0 %v4934
    %5028 = vmatprep.subr.bf16.mxu0 0
    %5029 = vmatpush1.bf16.msra.mxu0 %v4935
    %5030 = vmatprep.subr.bf16.mxu0 0
    %5031 = vmatpush1.bf16.msra.mxu0 %v4936
    %5032 = vmatprep.subr.bf16.mxu0 0
    %5033 = vmatpush1.bf16.msra.mxu0 %v4937
    %5034 = vmatprep.subr.bf16.mxu0 0
    %5035 = vmatpush1.bf16.msra.mxu0 %v4938
    %5036 = vmatprep.subr.bf16.mxu0 0
    %5037 = vmatpush1.bf16.msra.mxu0 %v4939
    %5038 = vmatprep.subr.bf16.mxu0 0
    %5039 = vmatpush1.bf16.msra.mxu0 %v4940
    %5040 = vmatprep.subr.bf16.mxu0 0
    %5041 = vmatpush1.bf16.msra.mxu0 %v4941
    %5042 = vmatprep.subr.bf16.mxu0 0
    %5043 = vmatpush1.bf16.msra.mxu0 %v4942
    %5044 = vmatprep.subr.bf16.mxu0 0
    %5045 = vmatpush1.bf16.msra.mxu0 %v4943
    %5046 = vmatprep.subr.bf16.mxu0 0
    %5047 = vmatpush1.bf16.msra.mxu0 %v4944
    %5048 = vmatprep.subr.bf16.mxu0 0
    %5049 = vmatpush1.bf16.msra.mxu0 %v4945
    %5050 = vmatprep.mubr.bf16.mxu0 %v4714
    %5051 = vmatmul.mubr.bf16.gmra.mrb[0].mxu0 %v4713
    %v5052 = vpop.f32.mrb[0].mxu0
    %v5053 = vadd.f32 %v5013, %v5052
    %v5054 = vpop.f32.mrb[0].mxu0
    %v5055 = vpop.f32.mrb[0].mxu0
    %v5056 = vpop.f32.mrb[0].mxu0
    %5057 = vdwg.mxu0
    %v5058 = vxor.u32 %v5053, 2147483648
    %v5059 = vmul.f32 %v5058, 1.442695
    %v5060 = vpow.pop %v5059
    %v5061 = vadd.f32 %v5060, 1.0
    %v5062 = vrcp.pop %v5061
    %v5063 = vmul.f32 1.0, %v5062
    %5065 = vrot.lane.b32.xlu0 %v3581, 20
    %v5066 = vpop.permute.xlu0 %5065
    %5069 = vrot.lane.b32.xlu0 %v2012, 30
    %v5070 = vpop.permute.xlu0 %5069
    %5073 = vrot.lane.b32.xlu0 %v2028, 40
    %v5074 = vpop.permute.xlu0 %5073
    %5077 = vrot.lane.b32.xlu0 %v2040, 50
    %v5078 = vpop.permute.xlu0 %5077
    %5081 = vrot.lane.b32.xlu0 %v3589, 60
    %v5082 = vpop.permute.xlu0 %5081
    %5085 = vrot.lane.b32.xlu0 %v3604, 60
    %v5086 = vpop.permute.xlu0 %5085
    %v5088 = vsel %vm2017, %v3548, %v3567
    %vm5089 = vcmask 162816
    %v5090 = vsel %vm5089, %v5088, %v5066
    %vm5091 = vcmask 244736
    %v5092 = vsel %vm5091, %v5090, %v5070
    %vm5093 = vcmask 326656
    %v5094 = vsel %vm5093, %v5092, %v5074
    %vm5095 = vcmask 408576
    %v5096 = vsel %vm5095, %v5094, %v5078
    %vm5097 = vcmask 490496
    %v5098 = vsel %vm5097, %v5096, %v5082
    %vm5099 = vcmask 572416
    %v5100 = vsel %vm5099, %v5098, %v5086
    %vm5101 = vcmask 654336
    %v5102 = vsel %vm5101, %v5100, 0.0
    %5103 = vst [vmem:[%s21] sm:$0xff] %v5102
    %5104 = vst [vmem:[#allocation10] sm:$0xff] %v5063
    // Predicated region
    $region102: #{gmvae_forward.1} parent=1 // pred_check
      _
    $region103: #{gmvae_forward.1} parent=1 // pred_check_branch
      %5106 = sbr.rel (0) target = $region105
    $region104: #{gmvae_forward.1} parent=1 // pred_region
      _
    $region105: #{gmvae_forward.1} parent=1 // pred_fallthru
      _
    // Predicated region
    $region106: #{gmvae_forward.1} parent=1 // pred_check
      _
    $region107: #{gmvae_forward.1} parent=1 // pred_check_branch
      %5108 = sbr.rel (0) target = $region109
    $region108: #{gmvae_forward.1} parent=1 // pred_region
      %s5110 = ssub.s32 128, 128
      %5111 = vsyncadd [#allocation4], %s5110
      %s5113 = sshll.u32 [#allocation10], 4
      %s5114 = int_to_ptr.vmem [resolvable:$true] %s5113
      %5116 = dma.vmem_to_hbm [thread:$0]  %s5114, 128, %s22, [#allocation4]
    $region109: #{gmvae_forward.1} parent=1 // pred_fallthru
      _
    // Predicated region
    $region110: #{gmvae_forward.1} parent=1 // pred_check
      _
    $region111: #{gmvae_forward.1} parent=1 // pred_check_branch
      %5118 = sbr.rel (0) target = $region113
    $region112: #{gmvae_forward.1} parent=1 // pred_region
      _
    $region113: #{gmvae_forward.1} parent=1 // pred_fallthru
      _
    // Predicated region
    $region114: #{gmvae_forward.1} parent=1 // pred_check
      _
    $region115: #{gmvae_forward.1} parent=1 // pred_check_branch
      %5120 = sbr.rel (0) target = $region117
    $region116: #{gmvae_forward.1} parent=1 // pred_region
      %5121 = dma.done [#allocation4], 128
    $region117: #{gmvae_forward.1} parent=1 // pred_fallthru
      _
    %5122 = vsyncpa [#allocation3], 1
    %5123 = vsyncpa [#allocation6], 1
    %5124 = vsyncpa [#allocation9], 1
    %5125 = vsyncpa [#allocation4], 1

</llo_original>
